<compile_context>
chip_gen: v6e
topology: v6e:2x2x1
jax: 0.10.0
libtpu: 0.0.40
codegen_flags: <defaults>
</compile_context>

<pallas_src>
import functools
import math

import jax
import jax.numpy as jnp
from jax.experimental import pallas as pl
from jax.experimental.pallas import tpu as pltpu


# --------------------------------------------------------------------------
# tiling helpers
# --------------------------------------------------------------------------
def _round_up(x, m):
    return (x + m - 1) // m * m


def _pick_tile(dim, target, mult):
    """Largest t <= target with dim % t == 0 and t a multiple of `mult`
    (or the full dim if dim <= target)."""
    if dim <= target:
        return dim
    t = (target // mult) * mult
    while t >= mult and dim % t:
        t -= mult
    assert t >= mult, f"cannot tile {dim} into multiples of {mult}"
    return t


def _row_tiling(M, target):
    """(tm, Mp): row tile of at least 8 sublanes; M padded up to a tile multiple."""
    tm = min(target, _round_up(M, 8))
    Mp = _round_up(M, tm)
    return tm, Mp


def _pad_rows(x, Mp):
    M = x.shape[0]
    if Mp == M:
        return x
    return jnp.pad(x, ((0, Mp - M), (0, 0)))


def _head_group_size(nH, dH):
    """Smallest head-group size hg (dividing nH) with hg*dH a multiple of 128."""
    hg = 1
    while (hg * dH) % 128 != 0:
        hg *= 2
        assert nH % hg == 0, "cannot form 128-lane-aligned head groups"
    return hg


# --------------------------------------------------------------------------
# Tiled dense: y = act(x @ w + b), bf16 in / f32 accumulate
# --------------------------------------------------------------------------
def _dense_kernel(x_ref, w_ref, b_ref, o_ref, acc_ref, *, act):
    @pl.when(pl.program_id(2) == 0)
    def _():
        acc_ref[...] = jnp.zeros_like(acc_ref)

    acc_ref[...] += jnp.dot(x_ref[...], w_ref[...],
                            preferred_element_type=jnp.float32)

    @pl.when(pl.program_id(2) == pl.num_programs(2) - 1)
    def _():
        y = acc_ref[...] + b_ref[...].astype(jnp.float32)
        if act == "gelu":          # ALBERT uses gelu_new == tanh-approx GELU
            y = jax.nn.gelu(y, approximate=True)
        o_ref[...] = y.astype(o_ref.dtype)


def dense(x, w, b, act="none", *, tm=512, tn=512, tk=512):
    """act(x @ w + b); large tm amortizes (shared) weight streaming from HBM."""
    M, K = x.shape
    N = w.shape[1]
    tn = _pick_tile(N, tn, 128)
    tk = _pick_tile(K, tk, 128)
    tm, Mp = _row_tiling(M, tm)
    xp = _pad_rows(x, Mp)
    out = pl.pallas_call(
        functools.partial(_dense_kernel, act=act),
        out_shape=jax.ShapeDtypeStruct((Mp, N), x.dtype),
        grid=(Mp // tm, N // tn, K // tk),
        in_specs=[
            pl.BlockSpec((tm, tk), lambda i, j, k: (i, k)),
            pl.BlockSpec((tk, tn), lambda i, j, k: (k, j)),
            pl.BlockSpec((1, tn), lambda i, j, k: (0, j)),
        ],
        out_specs=pl.BlockSpec((tm, tn), lambda i, j, k: (i, j)),
        scratch_shapes=[pltpu.VMEM((tm, tn), jnp.float32)],
        compiler_params=pltpu.CompilerParams(
            dimension_semantics=("parallel", "parallel", "arbitrary")),
    )(xp, w, b.reshape(1, N))
    return out if Mp == M else out[:M]


# --------------------------------------------------------------------------
# Dense + residual-add + LayerNorm fused into the matmul finalize.
# tn == N == H so the full row is present for the LN reduction.
# --------------------------------------------------------------------------
def _dense_res_ln_kernel(x_ref, w_ref, b_ref, r_ref, g_ref, bb_ref,
                         o_ref, acc_ref, *, eps):
    @pl.when(pl.program_id(1) == 0)
    def _():
        acc_ref[...] = jnp.zeros_like(acc_ref)

    acc_ref[...] += jnp.dot(x_ref[...], w_ref[...],
                            preferred_element_type=jnp.float32)

    @pl.when(pl.program_id(1) == pl.num_programs(1) - 1)
    def _():
        y = acc_ref[...] + b_ref[...].astype(jnp.float32) \
            + r_ref[...].astype(jnp.float32)
        mu = jnp.mean(y, axis=-1, keepdims=True)
        yc = y - mu
        var = jnp.mean(yc * yc, axis=-1, keepdims=True)
        out = yc * jax.lax.rsqrt(var + eps) * g_ref[...].astype(jnp.float32) \
              + bb_ref[...].astype(jnp.float32)
        o_ref[...] = out.astype(o_ref.dtype)


def dense_res_ln(x, w, b, residual, gamma, beta, *, eps=1e-12, tm=256, tk=512):
    """LayerNorm(x @ w + b + residual) with LN fused into the matmul finalize."""
    M, K = x.shape
    N = w.shape[1]
    assert residual.shape == (M, N)
    tk = _pick_tile(K, tk, 128)
    tm, Mp = _row_tiling(M, tm)          # (tm, N) f32 acc: 4 MiB at tm=256, N=4096
    xp = _pad_rows(x, Mp)
    rp = _pad_rows(residual, Mp)
    out = pl.pallas_call(
        functools.partial(_dense_res_ln_kernel, eps=eps),
        out_shape=jax.ShapeDtypeStruct((Mp, N), x.dtype),
        grid=(Mp // tm, K // tk),
        in_specs=[
            pl.BlockSpec((tm, tk), lambda i, k: (i, k)),
            pl.BlockSpec((tk, N), lambda i, k: (k, 0)),
            pl.BlockSpec((1, N), lambda i, k: (0, 0)),
            pl.BlockSpec((tm, N), lambda i, k: (i, 0)),   # residual (fetched once per i)
            pl.BlockSpec((1, N), lambda i, k: (0, 0)),
            pl.BlockSpec((1, N), lambda i, k: (0, 0)),
        ],
        out_specs=pl.BlockSpec((tm, N), lambda i, k: (i, 0)),
        scratch_shapes=[pltpu.VMEM((tm, N), jnp.float32)],
        compiler_params=pltpu.CompilerParams(
            dimension_semantics=("parallel", "arbitrary")),
    )(xp, w, b.reshape(1, N), rp, gamma.reshape(1, N), beta.reshape(1, N))
    return out if Mp == M else out[:M]


# --------------------------------------------------------------------------
# Standalone LayerNorm (used for the embedding LN only)
# --------------------------------------------------------------------------
def _ln_kernel(x_ref, g_ref, b_ref, o_ref, *, eps):
    x = x_ref[...].astype(jnp.float32)
    mu = jnp.mean(x, axis=-1, keepdims=True)
    xc = x - mu
    var = jnp.mean(xc * xc, axis=-1, keepdims=True)
    y = xc * jax.lax.rsqrt(var + eps) * g_ref[...].astype(jnp.float32) \
        + b_ref[...].astype(jnp.float32)
    o_ref[...] = y.astype(o_ref.dtype)


def layernorm(x, g, b, eps=1e-12, tm=256):
    M, H = x.shape
    tm, Mp = _row_tiling(M, tm)
    xp = _pad_rows(x, Mp)
    out = pl.pallas_call(
        functools.partial(_ln_kernel, eps=eps),
        out_shape=jax.ShapeDtypeStruct((Mp, H), x.dtype),
        grid=(Mp // tm,),
        in_specs=[pl.BlockSpec((tm, H), lambda i: (i, 0)),
                  pl.BlockSpec((1, H), lambda i: (0, 0)),
                  pl.BlockSpec((1, H), lambda i: (0, 0))],
        out_specs=pl.BlockSpec((tm, H), lambda i: (i, 0)),
        compiler_params=pltpu.CompilerParams(dimension_semantics=("parallel",)),
    )(xp, g.reshape(1, H), b.reshape(1, H))
    return out if Mp == M else out[:M]


# --------------------------------------------------------------------------
# Attention: grid=(batch, head-group, kv-tile), flash-style online softmax.
# q/k/v are column-offset views into the SAME packed (B, S, 3H) projection
# (no XLA-side split); each head group is hg*dH >= 128 lanes -> lane-dense IO.
# --------------------------------------------------------------------------
def _attn_kernel(q_ref, k_ref, v_ref, m_ref, o_ref,
                 m_sc, l_sc, acc_sc, *, hg, dH, scale):
    kv = pl.program_id(2)

    @pl.when(kv == 0)
    def _():
        m_sc[...] = jnp.full_like(m_sc, -jnp.inf)
        l_sc[...] = jnp.zeros_like(l_sc)
        acc_sc[...] = jnp.zeros_like(acc_sc)

    bias = m_ref[0].astype(jnp.float32)                     # (1, tkv) additive key bias

    for h in range(hg):                                     # tiny static unroll (<=2)
        sl = slice(h * dH, (h + 1) * dH)
        q_h = q_ref[0, :, sl] * scale                       # scale S*dH elems, not S*tkv
        k_h = k_ref[0, :, sl]
        v_h = v_ref[0, :, sl]
        # q @ k^T without materializing a transpose: contract the last dims.
        s = jax.lax.dot_general(q_h, k_h, (((1,), (1,)), ((), ())),
                                preferred_element_type=jnp.float32)   # (S, tkv)
        s = s + bias
        m_prev = m_sc[h]                                    # (S, 1)
        m_new = jnp.maximum(m_prev, jnp.max(s, axis=-1, keepdims=True))
        alpha = jnp.exp(m_prev - m_new)
        p = jnp.exp(s - m_new)
        l_sc[h] = alpha * l_sc[h] + jnp.sum(p, axis=-1, keepdims=True)
        acc_sc[h] = alpha * acc_sc[h] + jnp.dot(p.astype(v_h.dtype), v_h,
                                                preferred_element_type=jnp.float32)
        m_sc[h] = m_new

    @pl.when(kv == pl.num_programs(2) - 1)
    def _():
        ctxs = [acc_sc[h] * pl.reciprocal(l_sc[h], approx=True) for h in range(hg)]
        out = ctxs[0] if hg == 1 else jnp.concatenate(ctxs, axis=-1)
        o_ref[0] = out.astype(o_ref.dtype)                  # lane-dense (S, hg*dH) store


def attention_core(qkv3, mask_bias, *, nH, dH, hg, scale, tkv):
    """qkv3: packed (B, S, 3H) [Wq|Wk|Wv] projection; mask_bias: (B, 1, S) f32."""
    B, S, threeH = qkv3.shape
    H = threeH // 3
    gw = hg * dH                                            # head-group width (>=128)
    nHG = H // gw
    assert S % tkv == 0
    grid = (B, nHG, S // tkv)

    q_spec = pl.BlockSpec((1, S, gw), lambda b, g, kv: (b, 0, g))
    k_spec = pl.BlockSpec((1, tkv, gw), lambda b, g, kv: (b, kv, nHG + g))
    v_spec = pl.BlockSpec((1, tkv, gw), lambda b, g, kv: (b, kv, 2 * nHG + g))
    m_spec = pl.BlockSpec((1, 1, tkv), lambda b, g, kv: (b, 0, kv))
    o_spec = pl.BlockSpec((1, S, gw), lambda b, g, kv: (b, 0, g))

    # TODO(synk): on v6e/v7x, cast scores to bf16 before the exp (EUP bf16 2x rate);
    # kept f32 here so the same kernel is also correct/fast-enough on v5e.
    return pl.pallas_call(
        functools.partial(_attn_kernel, hg=hg, dH=dH, scale=scale),
        out_shape=jax.ShapeDtypeStruct((B, S, H), qkv3.dtype),
        grid=grid,
        in_specs=[q_spec, k_spec, v_spec, m_spec],
        out_specs=o_spec,
        scratch_shapes=[pltpu.VMEM((hg, S, 1), jnp.float32),     # running max
                        pltpu.VMEM((hg, S, 1), jnp.float32),     # running sum
                        pltpu.VMEM((hg, S, dH), jnp.float32)],   # running context
        compiler_params=pltpu.CompilerParams(
            dimension_semantics=("parallel", "parallel", "arbitrary")),
    )(qkv3, qkv3, qkv3, mask_bias)


# --------------------------------------------------------------------------
# Model definition (parameter setup, embedding gathers, glue)
# --------------------------------------------------------------------------
CFG = dict(
    vocab=100, type_vocab=2, max_pos=16,
    E=128,         # ALBERT embedding size (128 in real model)
    H=256,         # hidden size (4096 in real model)
    nH=2, dH=128,  # heads / head dim (64 / 64 in real model -> head groups of 2)
    I=512,         # intermediate FFN size (16384 in real model)
    num_layers=2,  # shared-parameter ALBERT layers (12 in real model)
    num_classes=6,
)


def init_params(key, cfg):
    std = 0.02
    bf = jnp.bfloat16

    def nrm(k, shape, dtype=bf):
        return (jax.random.normal(k, shape, jnp.float32) * std).astype(dtype)

    keys = iter(jax.random.split(key, 32))
    H, E, I = cfg["H"], cfg["E"], cfg["I"]
    p = {
        "word_emb": nrm(next(keys), (cfg["vocab"], E)),
        "pos_emb": nrm(next(keys), (cfg["max_pos"], E)),
        "type_emb": nrm(next(keys), (cfg["type_vocab"], E)),
        "emb_ln_g": jnp.ones((E,), bf), "emb_ln_b": jnp.zeros((E,), bf),
        "emb_proj_w": nrm(next(keys), (E, H)), "emb_proj_b": jnp.zeros((H,), bf),
        # single shared ALBERT layer, with fused [Wq | Wk | Wv] projection weight
        "layer": {
            "qkv_w": nrm(next(keys), (H, 3 * H)), "qkv_b": jnp.zeros((3 * H,), bf),
            "o_w": nrm(next(keys), (H, H)), "o_b": jnp.zeros((H,), bf),
            "attn_ln_g": jnp.ones((H,), bf), "attn_ln_b": jnp.zeros((H,), bf),
            "ffn_w": nrm(next(keys), (H, I)), "ffn_b": jnp.zeros((I,), bf),
            "ffn_o_w": nrm(next(keys), (I, H)), "ffn_o_b": jnp.zeros((H,), bf),
            "ffn_ln_g": jnp.ones((H,), bf), "ffn_ln_b": jnp.zeros((H,), bf),
        },
        # tiny pooler / classifier head kept in f32 plain XLA
        "pool_w": nrm(next(keys), (H, H), jnp.float32),
        "pool_b": jnp.zeros((H,), jnp.float32),
        "cls_w": nrm(next(keys), (H, cfg["num_classes"]), jnp.float32),
        "cls_b": jnp.zeros((cfg["num_classes"],), jnp.float32),
    }
    return p


def albert_layer(h2d, p, mask_bias, cfg, B, S):
    H, nH, dH = cfg["H"], cfg["nH"], cfg["dH"]
    hg = _head_group_size(nH, dH)
    tkv = S if S <= 256 else _pick_tile(S, 256, 128)

    # Fused QKV projection: one launch, one activation read, lane-dense 3H out.
    qkv = dense(h2d, p["qkv_w"], p["qkv_b"])                 # (B*S, 3H) bf16
    qkv3 = qkv.reshape(B, S, 3 * H)                          # free reshape, no split

    ctx = attention_core(qkv3, mask_bias, nH=nH, dH=dH, hg=hg,
                         scale=1.0 / math.sqrt(dH), tkv=tkv)
    ctx2d = ctx.reshape(B * S, H)

    # attn output projection with residual + LayerNorm fused into the finalize
    h2d = dense_res_ln(ctx2d, p["o_w"], p["o_b"], h2d,
                       p["attn_ln_g"], p["attn_ln_b"])

    ffn = dense(h2d, p["ffn_w"], p["ffn_b"], act="gelu")
    # ffn output projection with residual + LayerNorm fused into the finalize
    h2d = dense_res_ln(ffn, p["ffn_o_w"], p["ffn_o_b"], h2d,
                       p["ffn_ln_g"], p["ffn_ln_b"])
    return h2d


def mybert_forward(params, input_ids, segment_ids, attention_mask, cfg=CFG):
    B, S = input_ids.shape
    E, H = cfg["E"], cfg["H"]

    # Embeddings (table gathers stay in plain JAX glue).
    we = params["word_emb"][input_ids]                       # (B, S, E)
    pe = params["pos_emb"][jnp.arange(S)][None, :, :]        # (1, S, E)
    te = params["type_emb"][segment_ids]                     # (B, S, E)
    emb = (we + pe + te).reshape(B * S, E)
    emb = layernorm(emb, params["emb_ln_g"], params["emb_ln_b"])
    h = dense(emb, params["emb_proj_w"], params["emb_proj_b"])   # (B*S, H) bf16

    # Additive attention mask bias: 0 for attend, -1e9 for padding.
    mask_bias = ((1.0 - attention_mask.astype(jnp.float32)) * -1e9)[:, None, :]

    lyr = params["layer"]
    # TODO(synk): at full albert-xxlarge size, hide each layer's (re-used) weight
    # DMA behind the previous layer's compute via cross-call prefetch
    # (semaphore+VMEM outputs) instead of re-streaming from HBM every layer.
    for _ in range(cfg["num_layers"]):                       # ALBERT shares params
        h = albert_layer(h, lyr, mask_bias, cfg, B, S)

    h = h.reshape(B, S, H)
    cls = h[:, 0, :].astype(jnp.float32)                     # (B, H) first token
    # Pooler + 6-way classifier: tiny (out dims << 128 lanes) -> plain XLA,
    # avoiding masked partial stores and per-call Pallas overhead.
    pooled = jnp.tanh(cls @ params["pool_w"] + params["pool_b"])
    # Dropout(p=0.3) is identity at inference (eval mode).
    logits = pooled @ params["cls_w"] + params["cls_b"]      # (B, 6) f32
    return logits


# --------------------------------------------------------------------------
if __name__ == "__main__":
    key = jax.random.PRNGKey(0)
    k_param, k_ids, k_seg = jax.random.split(key, 3)

    B, S = 2, 8
    params = init_params(k_param, CFG)

    input_ids = jax.random.randint(k_ids, (B, S), 0, CFG["vocab"], dtype=jnp.int32)
    segment_ids = jax.random.randint(k_seg, (B, S), 0, CFG["type_vocab"], dtype=jnp.int32)
    # mask the last two positions of the second sequence
    attention_mask = jnp.array(
        [[1] * S, [1] * (S - 2) + [0, 0]], dtype=jnp.int32
    )

    fwd = jax.jit(mybert_forward)
    logits = fwd(params, input_ids, segment_ids, attention_mask)
    jax.block_until_ready(logits)
    assert logits.shape == (B, CFG["num_classes"])
    assert logits.dtype == jnp.float32
    assert bool(jnp.all(jnp.isfinite(logits)))
    print("KERNEL_OK")
</pallas_src>

<mosaic_0001>
module attributes {stable_mosaic.version = 11 : i64} {
  func.func @_dense_kernel(%arg0: i32, %arg1: i32, %arg2: i32, %arg3: memref<16x128xbf16, #tpu.memory_space<vmem>>, %arg4: memref<128x256xbf16, #tpu.memory_space<vmem>>, %arg5: memref<1x256xbf16, #tpu.memory_space<vmem>>, %arg6: memref<16x256xbf16, #tpu.memory_space<vmem>>, %arg7: memref<16x256xf32, #tpu.memory_space<vmem>>) attributes {dimension_semantics = [#tpu.dimension_semantics<parallel>, #tpu.dimension_semantics<parallel>, #tpu.dimension_semantics<arbitrary>], iteration_bounds = array<i64: 1, 1, 1>, scalar_prefetch = 0 : i64, scratch_operands = 1 : i64, tpu.core_type = #tpu.core_type<tc>, window_params = [{transform_indices = @transform_0, window_bounds = array<i64: 16, 128>}, {transform_indices = @transform_1, window_bounds = array<i64: 128, 256>}, {transform_indices = @transform_2, window_bounds = array<i64: 1, 256>}, {transform_indices = @transform_3, window_bounds = array<i64: 16, 256>}]} {
    %c0_i32 = arith.constant 0 : i32
    %0 = arith.cmpi eq, %arg2, %c0_i32 : i32
    %1 = arith.extui %0 : i1 to i32
    %c0_i32_0 = arith.constant 0 : i32
    %2 = arith.cmpi ne, %1, %c0_i32_0 : i32
    scf.if %2 {
      %cst_10 = arith.constant 0.000000e+00 : f32
      %12 = vector.broadcast %cst_10 : f32 to vector<16x256xf32>
      %c0_11 = arith.constant 0 : index
      %c0_12 = arith.constant 0 : index
      %13 = vector.load %arg7[%c0_11, %c0_12] : memref<16x256xf32, #tpu.memory_space<vmem>>, vector<16x256xf32>
      tpu.vector_store %arg7[%c0_11, %c0_12], %12 {strides = array<i32>} : memref<16x256xf32, #tpu.memory_space<vmem>>, vector<16x256xf32>,
    } else {
    }
    %c0 = arith.constant 0 : index
    %c0_1 = arith.constant 0 : index
    %3 = vector.load %arg7[%c0, %c0_1] : memref<16x256xf32, #tpu.memory_space<vmem>>, vector<16x256xf32>
    %c0_2 = arith.constant 0 : index
    %c0_3 = arith.constant 0 : index
    %4 = vector.load %arg3[%c0_2, %c0_3] : memref<16x128xbf16, #tpu.memory_space<vmem>>, vector<16x128xbf16>
    %c0_4 = arith.constant 0 : index
    %c0_5 = arith.constant 0 : index
    %5 = vector.load %arg4[%c0_4, %c0_5] : memref<128x256xbf16, #tpu.memory_space<vmem>>, vector<128x256xbf16>
    %cst = arith.constant dense<0.000000e+00> : vector<16x256xf32>
    %6 = tpu.matmul %4, %5, %cst {dimension_numbers = #tpu.dot_dimension_numbers<[1], [0], [0], [1], [0, 0, 1, 1], [], []>} : vector<16x128xbf16>, vector<128x256xbf16>, vector<16x256xf32> -> vector<16x256xf32>
    %7 = arith.addf %3, %6 : vector<16x256xf32>
    %c0_6 = arith.constant 0 : index
    %c0_7 = arith.constant 0 : index
    %8 = vector.load %arg7[%c0_6, %c0_7] : memref<16x256xf32, #tpu.memory_space<vmem>>, vector<16x256xf32>
    tpu.vector_store %arg7[%c0_6, %c0_7], %7 {strides = array<i32>} : memref<16x256xf32, #tpu.memory_space<vmem>>, vector<16x256xf32>,
    %c0_i32_8 = arith.constant 0 : i32
    %9 = arith.cmpi eq, %arg2, %c0_i32_8 : i32
    %10 = arith.extui %9 : i1 to i32
    %c0_i32_9 = arith.constant 0 : i32
    %11 = arith.cmpi ne, %10, %c0_i32_9 : i32
    scf.if %11 {
      %c0_10 = arith.constant 0 : index
      %c0_11 = arith.constant 0 : index
      %12 = vector.load %arg7[%c0_10, %c0_11] : memref<16x256xf32, #tpu.memory_space<vmem>>, vector<16x256xf32>
      %c0_12 = arith.constant 0 : index
      %c0_13 = arith.constant 0 : index
      %13 = vector.load %arg5[%c0_12, %c0_13] : memref<1x256xbf16, #tpu.memory_space<vmem>>, vector<1x256xbf16>
      %14 = arith.extf %13 : vector<1x256xbf16> to vector<1x256xf32>
      %15 = vector.broadcast %14 : vector<1x256xf32> to vector<16x256xf32>
      %16 = arith.addf %12, %15 : vector<16x256xf32>
      %17 = arith.truncf %16 : vector<16x256xf32> to vector<16x256xbf16>
      %c0_14 = arith.constant 0 : index
      %c0_15 = arith.constant 0 : index
      %18 = vector.load %arg6[%c0_14, %c0_15] : memref<16x256xbf16, #tpu.memory_space<vmem>>, vector<16x256xbf16>
      tpu.vector_store %arg6[%c0_14, %c0_15], %17 {strides = array<i32>} : memref<16x256xbf16, #tpu.memory_space<vmem>>, vector<16x256xbf16>,
    } else {
    }
    return
  }
  func.func @transform_0(%arg0: i32, %arg1: i32, %arg2: i32) -> (i32, i32) {
    %c0_i32 = arith.constant 0 : i32
    return %arg0, %arg2 : i32, i32
  }
  func.func @transform_1(%arg0: i32, %arg1: i32, %arg2: i32) -> (i32, i32) {
    %c0_i32 = arith.constant 0 : i32
    return %arg2, %arg1 : i32, i32
  }
  func.func @transform_2(%arg0: i32, %arg1: i32, %arg2: i32) -> (i32, i32) {
    %c0_i32 = arith.constant 0 : i32
    %c0_i32_0 = arith.constant 0 : i32
    return %c0_i32, %arg1 : i32, i32
  }
  func.func @transform_3(%arg0: i32, %arg1: i32, %arg2: i32) -> (i32, i32) {
    %c0_i32 = arith.constant 0 : i32
    return %arg0, %arg1 : i32, i32
  }
}

module attributes {stable_mosaic.version = 11 : i64} {
  func.func @_ln_kernel(%arg0: i32, %arg1: memref<16x128xbf16, #tpu.memory_space<vmem>>, %arg2: memref<1x128xbf16, #tpu.memory_space<vmem>>, %arg3: memref<1x128xbf16, #tpu.memory_space<vmem>>, %arg4: memref<16x128xbf16, #tpu.memory_space<vmem>>) attributes {dimension_semantics = [#tpu.dimension_semantics<parallel>], iteration_bounds = array<i64: 1>, scalar_prefetch = 0 : i64, scratch_operands = 0 : i64, tpu.core_type = #tpu.core_type<tc>, window_params = [{transform_indices = @transform_0, window_bounds = array<i64: 16, 128>}, {pipeline_mode = #tpu.pipeline_mode<synchronous>, transform_indices = @transform_1, window_bounds = array<i64: 1, 128>}, {pipeline_mode = #tpu.pipeline_mode<synchronous>, transform_indices = @transform_2, window_bounds = array<i64: 1, 128>}, {transform_indices = @transform_3, window_bounds = array<i64: 16, 128>}]} {
    %c0 = arith.constant 0 : index
    %c0_0 = arith.constant 0 : index
    %0 = vector.load %arg1[%c0, %c0_0] : memref<16x128xbf16, #tpu.memory_space<vmem>>, vector<16x128xbf16>
    %1 = arith.extf %0 : vector<16x128xbf16> to vector<16x128xf32>
    %cst = arith.constant dense<0.000000e+00> : vector<16xf32>
    %2 = vector.multi_reduction <add>, %1, %cst [1] : vector<16x128xf32> to vector<16xf32>
    %3 = vector.shape_cast %2 : vector<16xf32> to vector<16x1xf32>
    %cst_1 = arith.constant 1.280000e+02 : f32
    %4 = vector.broadcast %cst_1 : f32 to vector<16x1xf32>
    %5 = arith.divf %3, %4 : vector<16x1xf32>
    %6 = vector.broadcast %5 : vector<16x1xf32> to vector<16x128xf32>
    %7 = arith.subf %1, %6 : vector<16x128xf32>
    %8 = arith.mulf %7, %7 : vector<16x128xf32>
    %cst_2 = arith.constant dense<0.000000e+00> : vector<16xf32>
    %9 = vector.multi_reduction <add>, %8, %cst_2 [1] : vector<16x128xf32> to vector<16xf32>
    %10 = vector.shape_cast %9 : vector<16xf32> to vector<16x1xf32>
    %cst_3 = arith.constant 1.280000e+02 : f32
    %11 = vector.broadcast %cst_3 : f32 to vector<16x1xf32>
    %12 = arith.divf %10, %11 : vector<16x1xf32>
    %cst_4 = arith.constant 9.99999996E-13 : f32
    %13 = vector.broadcast %cst_4 : f32 to vector<16x1xf32>
    %14 = arith.addf %12, %13 : vector<16x1xf32>
    %15 = math.rsqrt %14 : vector<16x1xf32>
    %16 = vector.broadcast %15 : vector<16x1xf32> to vector<16x128xf32>
    %17 = arith.mulf %7, %16 : vector<16x128xf32>
    %c0_5 = arith.constant 0 : index
    %c0_6 = arith.constant 0 : index
    %18 = vector.load %arg2[%c0_5, %c0_6] : memref<1x128xbf16, #tpu.memory_space<vmem>>, vector<1x128xbf16>
    %19 = arith.extf %18 : vector<1x128xbf16> to vector<1x128xf32>
    %20 = vector.broadcast %19 : vector<1x128xf32> to vector<16x128xf32>
    %21 = arith.mulf %17, %20 : vector<16x128xf32>
    %c0_7 = arith.constant 0 : index
    %c0_8 = arith.constant 0 : index
    %22 = vector.load %arg3[%c0_7, %c0_8] : memref<1x128xbf16, #tpu.memory_space<vmem>>, vector<1x128xbf16>
    %23 = arith.extf %22 : vector<1x128xbf16> to vector<1x128xf32>
    %24 = vector.broadcast %23 : vector<1x128xf32> to vector<16x128xf32>
    %25 = arith.addf %21, %24 : vector<16x128xf32>
    %26 = arith.truncf %25 : vector<16x128xf32> to vector<16x128xbf16>
    %c0_9 = arith.constant 0 : index
    %c0_10 = arith.constant 0 : index
    %27 = vector.load %arg4[%c0_9, %c0_10] : memref<16x128xbf16, #tpu.memory_space<vmem>>, vector<16x128xbf16>
    tpu.vector_store %arg4[%c0_9, %c0_10], %26 {strides = array<i32>} : memref<16x128xbf16, #tpu.memory_space<vmem>>, vector<16x128xbf16>,
    return
  }
  func.func @transform_0(%arg0: i32) -> (i32, i32) {
    %c0_i32 = arith.constant 0 : i32
    %c0_i32_0 = arith.constant 0 : i32
    return %arg0, %c0_i32 : i32, i32
  }
  func.func @transform_1(%arg0: i32) -> (i32, i32) {
    %c0_i32 = arith.constant 0 : i32
    %c0_i32_0 = arith.constant 0 : i32
    %c0_i32_1 = arith.constant 0 : i32
    return %c0_i32, %c0_i32_0 : i32, i32
  }
  func.func @transform_2(%arg0: i32) -> (i32, i32) {
    %c0_i32 = arith.constant 0 : i32
    %c0_i32_0 = arith.constant 0 : i32
    %c0_i32_1 = arith.constant 0 : i32
    return %c0_i32, %c0_i32_0 : i32, i32
  }
  func.func @transform_3(%arg0: i32) -> (i32, i32) {
    %c0_i32 = arith.constant 0 : i32
    %c0_i32_0 = arith.constant 0 : i32
    return %arg0, %c0_i32 : i32, i32
  }
}

module attributes {stable_mosaic.version = 11 : i64} {
  func.func @_attn_kernel(%arg0: i32, %arg1: i32, %arg2: i32, %arg3: memref<1x8x128xbf16, #tpu.memory_space<vmem>>, %arg4: memref<1x8x128xbf16, #tpu.memory_space<vmem>>, %arg5: memref<1x8x128xbf16, #tpu.memory_space<vmem>>, %arg6: memref<1x1x8xf32, #tpu.memory_space<vmem>>, %arg7: memref<1x8x128xbf16, #tpu.memory_space<vmem>>, %arg8: memref<1x8x1xf32, #tpu.memory_space<vmem>>, %arg9: memref<1x8x1xf32, #tpu.memory_space<vmem>>, %arg10: memref<1x8x128xf32, #tpu.memory_space<vmem>>) attributes {dimension_semantics = [#tpu.dimension_semantics<parallel>, #tpu.dimension_semantics<parallel>, #tpu.dimension_semantics<arbitrary>], iteration_bounds = array<i64: 2, 2, 1>, scalar_prefetch = 0 : i64, scratch_operands = 3 : i64, tpu.core_type = #tpu.core_type<tc>, window_params = [{transform_indices = @transform_0, window_bounds = array<i64: 1, 8, 128>}, {transform_indices = @transform_1, window_bounds = array<i64: 1, 8, 128>}, {transform_indices = @transform_2, window_bounds = array<i64: 1, 8, 128>}, {transform_indices = @transform_3, window_bounds = array<i64: 1, 1, 8>}, {transform_indices = @transform_4, window_bounds = array<i64: 1, 8, 128>}]} {
    %c0_i32 = arith.constant 0 : i32
    %0 = arith.cmpi eq, %arg2, %c0_i32 : i32
    %1 = arith.extui %0 : i1 to i32
    %c0_i32_0 = arith.constant 0 : i32
    %2 = arith.cmpi ne, %1, %c0_i32_0 : i32
    scf.if %2 {
      %cst_36 = arith.constant 0xFF800000 : f32
      %51 = vector.broadcast %cst_36 : f32 to vector<1x8x1xf32>
      %c0_37 = arith.constant 0 : index
      %c0_38 = arith.constant 0 : index
      %c0_39 = arith.constant 0 : index
      %52 = vector.load %arg8[%c0_37, %c0_38, %c0_39] : memref<1x8x1xf32, #tpu.memory_space<vmem>>, vector<1x8x1xf32>
      tpu.vector_store %arg8[%c0_37, %c0_38, %c0_39], %51 {strides = array<i32>} : memref<1x8x1xf32, #tpu.memory_space<vmem>>, vector<1x8x1xf32>,
      %cst_40 = arith.constant 0.000000e+00 : f32
      %53 = vector.broadcast %cst_40 : f32 to vector<1x8x1xf32>
      %c0_41 = arith.constant 0 : index
      %c0_42 = arith.constant 0 : index
      %c0_43 = arith.constant 0 : index
      %54 = vector.load %arg9[%c0_41, %c0_42, %c0_43] : memref<1x8x1xf32, #tpu.memory_space<vmem>>, vector<1x8x1xf32>
      tpu.vector_store %arg9[%c0_41, %c0_42, %c0_43], %53 {strides = array<i32>} : memref<1x8x1xf32, #tpu.memory_space<vmem>>, vector<1x8x1xf32>,
      %cst_44 = arith.constant 0.000000e+00 : f32
      %55 = vector.broadcast %cst_44 : f32 to vector<1x8x128xf32>
      %c0_45 = arith.constant 0 : index
      %c0_46 = arith.constant 0 : index
      %c0_47 = arith.constant 0 : index
      %56 = vector.load %arg10[%c0_45, %c0_46, %c0_47] : memref<1x8x128xf32, #tpu.memory_space<vmem>>, vector<1x8x128xf32>
      tpu.vector_store %arg10[%c0_45, %c0_46, %c0_47], %55 {strides = array<i32>} : memref<1x8x128xf32, #tpu.memory_space<vmem>>, vector<1x8x128xf32>,
    } else {
    }
    %c0 = arith.constant 0 : index
    %c0_1 = arith.constant 0 : index
    %c0_2 = arith.constant 0 : index
    %3 = vector.load %arg6[%c0, %c0_1, %c0_2] : memref<1x1x8xf32, #tpu.memory_space<vmem>>, vector<1x1x8xf32>
    %4 = vector.shape_cast %3 : vector<1x1x8xf32> to vector<1x8xf32>
    %c0_3 = arith.constant 0 : index
    %c0_4 = arith.constant 0 : index
    %c0_5 = arith.constant 0 : index
    %5 = vector.load %arg3[%c0_3, %c0_4, %c0_5] : memref<1x8x128xbf16, #tpu.memory_space<vmem>>, vector<1x8x128xbf16>
    %6 = vector.shape_cast %5 : vector<1x8x128xbf16> to vector<8x128xbf16>
    %cst = arith.constant 8.837890e-02 : bf16
    %7 = vector.broadcast %cst : bf16 to vector<8x128xbf16>
    %8 = arith.mulf %6, %7 : vector<8x128xbf16>
    %c0_6 = arith.constant 0 : index
    %c0_7 = arith.constant 0 : index
    %c0_8 = arith.constant 0 : index
    %9 = vector.load %arg4[%c0_6, %c0_7, %c0_8] : memref<1x8x128xbf16, #tpu.memory_space<vmem>>, vector<1x8x128xbf16>
    %10 = vector.shape_cast %9 : vector<1x8x128xbf16> to vector<8x128xbf16>
    %c0_9 = arith.constant 0 : index
    %c0_10 = arith.constant 0 : index
    %c0_11 = arith.constant 0 : index
    %11 = vector.load %arg5[%c0_9, %c0_10, %c0_11] : memref<1x8x128xbf16, #tpu.memory_space<vmem>>, vector<1x8x128xbf16>
    %12 = vector.shape_cast %11 : vector<1x8x128xbf16> to vector<8x128xbf16>
    %cst_12 = arith.constant dense<0.000000e+00> : vector<8x8xf32>
    %13 = tpu.matmul %8, %10, %cst_12 {dimension_numbers = #tpu.dot_dimension_numbers<[1], [1], [0], [0], [0, 0, 1, 0], [], []>} : vector<8x128xbf16>, vector<8x128xbf16>, vector<8x8xf32> -> vector<8x8xf32>
    %14 = vector.broadcast %4 : vector<1x8xf32> to vector<8x8xf32>
    %15 = arith.addf %13, %14 : vector<8x8xf32>
    %c0_13 = arith.constant 0 : index
    %c0_14 = arith.constant 0 : index
    %c0_15 = arith.constant 0 : index
    %16 = vector.load %arg8[%c0_13, %c0_14, %c0_15] : memref<1x8x1xf32, #tpu.memory_space<vmem>>, vector<1x8x1xf32>
    %17 = vector.shape_cast %16 : vector<1x8x1xf32> to vector<8x1xf32>
    %cst_16 = arith.constant dense<0xFF800000> : vector<8xf32>
    %18 = vector.multi_reduction <maximumf>, %15, %cst_16 [1] : vector<8x8xf32> to vector<8xf32>
    %19 = vector.shape_cast %18 : vector<8xf32> to vector<8x1xf32>
    %20 = arith.maximumf %17, %19 : vector<8x1xf32>
    %21 = arith.subf %17, %20 : vector<8x1xf32>
    %22 = math.exp %21 : vector<8x1xf32>
    %23 = vector.broadcast %20 : vector<8x1xf32> to vector<8x8xf32>
    %24 = arith.subf %15, %23 : vector<8x8xf32>
    %25 = math.exp %24 : vector<8x8xf32>
    %c0_17 = arith.constant 0 : index
    %c0_18 = arith.constant 0 : index
    %c0_19 = arith.constant 0 : index
    %26 = vector.load %arg9[%c0_17, %c0_18, %c0_19] : memref<1x8x1xf32, #tpu.memory_space<vmem>>, vector<1x8x1xf32>
    %27 = vector.shape_cast %26 : vector<1x8x1xf32> to vector<8x1xf32>
    %28 = arith.mulf %22, %27 : vector<8x1xf32>
    %cst_20 = arith.constant dense<0.000000e+00> : vector<8xf32>
    %29 = vector.multi_reduction <add>, %25, %cst_20 [1] : vector<8x8xf32> to vector<8xf32>
    %30 = vector.shape_cast %29 : vector<8xf32> to vector<8x1xf32>
    %31 = arith.addf %28, %30 : vector<8x1xf32>
    %c0_21 = arith.constant 0 : index
    %c0_22 = arith.constant 0 : index
    %c0_23 = arith.constant 0 : index
    %32 = vector.load %arg9[%c0_21, %c0_22, %c0_23] : memref<1x8x1xf32, #tpu.memory_space<vmem>>, vector<1x8x1xf32>
    %33 = vector.shape_cast %32 : vector<1x8x1xf32> to vector<8x1xf32>
    %34 = vector.shape_cast %31 : vector<8x1xf32> to vector<1x8x1xf32>
    tpu.vector_store %arg9[%c0_21, %c0_22, %c0_23], %34 {strides = array<i32>} : memref<1x8x1xf32, #tpu.memory_space<vmem>>, vector<1x8x1xf32>,
    %c0_24 = arith.constant 0 : index
    %c0_25 = arith.constant 0 : index
    %c0_26 = arith.constant 0 : index
    %35 = vector.load %arg10[%c0_24, %c0_25, %c0_26] : memref<1x8x128xf32, #tpu.memory_space<vmem>>, vector<1x8x128xf32>
    %36 = vector.shape_cast %35 : vector<1x8x128xf32> to vector<8x128xf32>
    %37 = vector.broadcast %22 : vector<8x1xf32> to vector<8x128xf32>
    %38 = arith.mulf %37, %36 : vector<8x128xf32>
    %39 = arith.truncf %25 : vector<8x8xf32> to vector<8x8xbf16>
    %cst_27 = arith.constant dense<0.000000e+00> : vector<8x128xf32>
    %40 = tpu.matmul %39, %12, %cst_27 {dimension_numbers = #tpu.dot_dimension_numbers<[1], [0], [0], [1], [0, 0, 1, 1], [], []>} : vector<8x8xbf16>, vector<8x128xbf16>, vector<8x128xf32> -> vector<8x128xf32>
    %41 = arith.addf %38, %40 : vector<8x128xf32>
    %c0_28 = arith.constant 0 : index
    %c0_29 = arith.constant 0 : index
    %c0_30 = arith.constant 0 : index
    %42 = vector.load %arg10[%c0_28, %c0_29, %c0_30] : memref<1x8x128xf32, #tpu.memory_space<vmem>>, vector<1x8x128xf32>
    %43 = vector.shape_cast %42 : vector<1x8x128xf32> to vector<8x128xf32>
    %44 = vector.shape_cast %41 : vector<8x128xf32> to vector<1x8x128xf32>
    tpu.vector_store %arg10[%c0_28, %c0_29, %c0_30], %44 {strides = array<i32>} : memref<1x8x128xf32, #tpu.memory_space<vmem>>, vector<1x8x128xf32>,
    %c0_31 = arith.constant 0 : index
    %c0_32 = arith.constant 0 : index
    %c0_33 = arith.constant 0 : index
    %45 = vector.load %arg8[%c0_31, %c0_32, %c0_33] : memref<1x8x1xf32, #tpu.memory_space<vmem>>, vector<1x8x1xf32>
    %46 = vector.shape_cast %45 : vector<1x8x1xf32> to vector<8x1xf32>
    %47 = vector.shape_cast %20 : vector<8x1xf32> to vector<1x8x1xf32>
    tpu.vector_store %arg8[%c0_31, %c0_32, %c0_33], %47 {strides = array<i32>} : memref<1x8x1xf32, #tpu.memory_space<vmem>>, vector<1x8x1xf32>,
    %c0_i32_34 = arith.constant 0 : i32
    %48 = arith.cmpi eq, %arg2, %c0_i32_34 : i32
    %49 = arith.extui %48 : i1 to i32
    %c0_i32_35 = arith.constant 0 : i32
    %50 = arith.cmpi ne, %49, %c0_i32_35 : i32
    scf.if %50 {
      %c0_36 = arith.constant 0 : index
      %c0_37 = arith.constant 0 : index
      %c0_38 = arith.constant 0 : index
      %51 = vector.load %arg10[%c0_36, %c0_37, %c0_38] : memref<1x8x128xf32, #tpu.memory_space<vmem>>, vector<1x8x128xf32>
      %52 = vector.shape_cast %51 : vector<1x8x128xf32> to vector<8x128xf32>
      %c0_39 = arith.constant 0 : index
      %c0_40 = arith.constant 0 : index
      %c0_41 = arith.constant 0 : index
      %53 = vector.load %arg9[%c0_39, %c0_40, %c0_41] : memref<1x8x1xf32, #tpu.memory_space<vmem>>, vector<1x8x1xf32>
      %54 = vector.shape_cast %53 : vector<1x8x1xf32> to vector<8x1xf32>
      %55 = tpu.reciprocal %54 {approx = true} : vector<8x1xf32> -> vector<8x1xf32>
      %56 = vector.broadcast %55 : vector<8x1xf32> to vector<8x128xf32>
      %57 = arith.mulf %52, %56 : vector<8x128xf32>
      %58 = arith.truncf %57 : vector<8x128xf32> to vector<8x128xbf16>
      %c0_42 = arith.constant 0 : index
      %c0_43 = arith.constant 0 : index
      %c0_44 = arith.constant 0 : index
      %59 = vector.load %arg7[%c0_42, %c0_43, %c0_44] : memref<1x8x128xbf16, #tpu.memory_space<vmem>>, vector<1x8x128xbf16>
      %60 = vector.shape_cast %59 : vector<1x8x128xbf16> to vector<8x128xbf16>
      %61 = vector.shape_cast %58 : vector<8x128xbf16> to vector<1x8x128xbf16>
      tpu.vector_store %arg7[%c0_42, %c0_43, %c0_44], %61 {strides = array<i32>} : memref<1x8x128xbf16, #tpu.memory_space<vmem>>, vector<1x8x128xbf16>,
    } else {
    }
    return
  }
  func.func @transform_0(%arg0: i32, %arg1: i32, %arg2: i32) -> (i32, i32, i32) {
    %c0_i32 = arith.constant 0 : i32
    %c0_i32_0 = arith.constant 0 : i32
    return %arg0, %c0_i32, %arg1 : i32, i32, i32
  }
  func.func @transform_1(%arg0: i32, %arg1: i32, %arg2: i32) -> (i32, i32, i32) {
    %c2_i32 = arith.constant 2 : i32
    %0 = arith.addi %c2_i32, %arg1 : i32
    %c0_i32 = arith.constant 0 : i32
    return %arg0, %arg2, %0 : i32, i32, i32
  }
  func.func @transform_2(%arg0: i32, %arg1: i32, %arg2: i32) -> (i32, i32, i32) {
    %c4_i32 = arith.constant 4 : i32
    %0 = arith.addi %c4_i32, %arg1 : i32
    %c0_i32 = arith.constant 0 : i32
    return %arg0, %arg2, %0 : i32, i32, i32
  }
  func.func @transform_3(%arg0: i32, %arg1: i32, %arg2: i32) -> (i32, i32, i32) {
    %c0_i32 = arith.constant 0 : i32
    %c0_i32_0 = arith.constant 0 : i32
    return %arg0, %c0_i32, %arg2 : i32, i32, i32
  }
  func.func @transform_4(%arg0: i32, %arg1: i32, %arg2: i32) -> (i32, i32, i32) {
    %c0_i32 = arith.constant 0 : i32
    %c0_i32_0 = arith.constant 0 : i32
    return %arg0, %c0_i32, %arg1 : i32, i32, i32
  }
}

module attributes {stable_mosaic.version = 11 : i64} {
  func.func @_dense_kernel(%arg0: i32, %arg1: i32, %arg2: i32, %arg3: memref<16x256xbf16, #tpu.memory_space<vmem>>, %arg4: memref<256x384xbf16, #tpu.memory_space<vmem>>, %arg5: memref<1x384xbf16, #tpu.memory_space<vmem>>, %arg6: memref<16x384xbf16, #tpu.memory_space<vmem>>, %arg7: memref<16x384xf32, #tpu.memory_space<vmem>>) attributes {dimension_semantics = [#tpu.dimension_semantics<parallel>, #tpu.dimension_semantics<parallel>, #tpu.dimension_semantics<arbitrary>], iteration_bounds = array<i64: 1, 2, 1>, scalar_prefetch = 0 : i64, scratch_operands = 1 : i64, tpu.core_type = #tpu.core_type<tc>, window_params = [{transform_indices = @transform_0, window_bounds = array<i64: 16, 256>}, {transform_indices = @transform_1, window_bounds = array<i64: 256, 384>}, {transform_indices = @transform_2, window_bounds = array<i64: 1, 384>}, {transform_indices = @transform_3, window_bounds = array<i64: 16, 384>}]} {
    %c0_i32 = arith.constant 0 : i32
    %0 = arith.cmpi eq, %arg2, %c0_i32 : i32
    %1 = arith.extui %0 : i1 to i32
    %c0_i32_0 = arith.constant 0 : i32
    %2 = arith.cmpi ne, %1, %c0_i32_0 : i32
    scf.if %2 {
      %cst_10 = arith.constant 0.000000e+00 : f32
      %12 = vector.broadcast %cst_10 : f32 to vector<16x384xf32>
      %c0_11 = arith.constant 0 : index
      %c0_12 = arith.constant 0 : index
      %13 = vector.load %arg7[%c0_11, %c0_12] : memref<16x384xf32, #tpu.memory_space<vmem>>, vector<16x384xf32>
      tpu.vector_store %arg7[%c0_11, %c0_12], %12 {strides = array<i32>} : memref<16x384xf32, #tpu.memory_space<vmem>>, vector<16x384xf32>,
    } else {
    }
    %c0 = arith.constant 0 : index
    %c0_1 = arith.constant 0 : index
    %3 = vector.load %arg7[%c0, %c0_1] : memref<16x384xf32, #tpu.memory_space<vmem>>, vector<16x384xf32>
    %c0_2 = arith.constant 0 : index
    %c0_3 = arith.constant 0 : index
    %4 = vector.load %arg3[%c0_2, %c0_3] : memref<16x256xbf16, #tpu.memory_space<vmem>>, vector<16x256xbf16>
    %c0_4 = arith.constant 0 : index
    %c0_5 = arith.constant 0 : index
    %5 = vector.load %arg4[%c0_4, %c0_5] : memref<256x384xbf16, #tpu.memory_space<vmem>>, vector<256x384xbf16>
    %cst = arith.constant dense<0.000000e+00> : vector<16x384xf32>
    %6 = tpu.matmul %4, %5, %cst {dimension_numbers = #tpu.dot_dimension_numbers<[1], [0], [0], [1], [0, 0, 1, 1], [], []>} : vector<16x256xbf16>, vector<256x384xbf16>, vector<16x384xf32> -> vector<16x384xf32>
    %7 = arith.addf %3, %6 : vector<16x384xf32>
    %c0_6 = arith.constant 0 : index
    %c0_7 = arith.constant 0 : index
    %8 = vector.load %arg7[%c0_6, %c0_7] : memref<16x384xf32, #tpu.memory_space<vmem>>, vector<16x384xf32>
    tpu.vector_store %arg7[%c0_6, %c0_7], %7 {strides = array<i32>} : memref<16x384xf32, #tpu.memory_space<vmem>>, vector<16x384xf32>,
    %c0_i32_8 = arith.constant 0 : i32
    %9 = arith.cmpi eq, %arg2, %c0_i32_8 : i32
    %10 = arith.extui %9 : i1 to i32
    %c0_i32_9 = arith.constant 0 : i32
    %11 = arith.cmpi ne, %10, %c0_i32_9 : i32
    scf.if %11 {
      %c0_10 = arith.constant 0 : index
      %c0_11 = arith.constant 0 : index
      %12 = vector.load %arg7[%c0_10, %c0_11] : memref<16x384xf32, #tpu.memory_space<vmem>>, vector<16x384xf32>
      %c0_12 = arith.constant 0 : index
      %c0_13 = arith.constant 0 : index
      %13 = vector.load %arg5[%c0_12, %c0_13] : memref<1x384xbf16, #tpu.memory_space<vmem>>, vector<1x384xbf16>
      %14 = arith.extf %13 : vector<1x384xbf16> to vector<1x384xf32>
      %15 = vector.broadcast %14 : vector<1x384xf32> to vector<16x384xf32>
      %16 = arith.addf %12, %15 : vector<16x384xf32>
      %17 = arith.truncf %16 : vector<16x384xf32> to vector<16x384xbf16>
      %c0_14 = arith.constant 0 : index
      %c0_15 = arith.constant 0 : index
      %18 = vector.load %arg6[%c0_14, %c0_15] : memref<16x384xbf16, #tpu.memory_space<vmem>>, vector<16x384xbf16>
      tpu.vector_store %arg6[%c0_14, %c0_15], %17 {strides = array<i32>} : memref<16x384xbf16, #tpu.memory_space<vmem>>, vector<16x384xbf16>,
    } else {
    }
    return
  }
  func.func @transform_0(%arg0: i32, %arg1: i32, %arg2: i32) -> (i32, i32) {
    %c0_i32 = arith.constant 0 : i32
    return %arg0, %arg2 : i32, i32
  }
  func.func @transform_1(%arg0: i32, %arg1: i32, %arg2: i32) -> (i32, i32) {
    %c0_i32 = arith.constant 0 : i32
    return %arg2, %arg1 : i32, i32
  }
  func.func @transform_2(%arg0: i32, %arg1: i32, %arg2: i32) -> (i32, i32) {
    %c0_i32 = arith.constant 0 : i32
    %c0_i32_0 = arith.constant 0 : i32
    return %c0_i32, %arg1 : i32, i32
  }
  func.func @transform_3(%arg0: i32, %arg1: i32, %arg2: i32) -> (i32, i32) {
    %c0_i32 = arith.constant 0 : i32
    return %arg0, %arg1 : i32, i32
  }
}

module attributes {stable_mosaic.version = 11 : i64} {
  func.func @_dense_res_ln_kernel(%arg0: i32, %arg1: i32, %arg2: memref<16x256xbf16, #tpu.memory_space<vmem>>, %arg3: memref<256x256xbf16, #tpu.memory_space<vmem>>, %arg4: memref<1x256xbf16, #tpu.memory_space<vmem>>, %arg5: memref<16x256xbf16, #tpu.memory_space<vmem>>, %arg6: memref<1x256xbf16, #tpu.memory_space<vmem>>, %arg7: memref<1x256xbf16, #tpu.memory_space<vmem>>, %arg8: memref<16x256xbf16, #tpu.memory_space<vmem>>, %arg9: memref<16x256xf32, #tpu.memory_space<vmem>>) attributes {dimension_semantics = [#tpu.dimension_semantics<parallel>, #tpu.dimension_semantics<arbitrary>], iteration_bounds = array<i64: 1, 1>, scalar_prefetch = 0 : i64, scratch_operands = 1 : i64, tpu.core_type = #tpu.core_type<tc>, window_params = [{transform_indices = @transform_0, window_bounds = array<i64: 16, 256>}, {transform_indices = @transform_1, window_bounds = array<i64: 256, 256>}, {pipeline_mode = #tpu.pipeline_mode<synchronous>, transform_indices = @transform_2, window_bounds = array<i64: 1, 256>}, {transform_indices = @transform_3, window_bounds = array<i64: 16, 256>}, {pipeline_mode = #tpu.pipeline_mode<synchronous>, transform_indices = @transform_4, window_bounds = array<i64: 1, 256>}, {pipeline_mode = #tpu.pipeline_mode<synchronous>, transform_indices = @transform_5, window_bounds = array<i64: 1, 256>}, {transform_indices = @transform_6, window_bounds = array<i64: 16, 256>}]} {
    %c0_i32 = arith.constant 0 : i32
    %0 = arith.cmpi eq, %arg1, %c0_i32 : i32
    %1 = arith.extui %0 : i1 to i32
    %c0_i32_0 = arith.constant 0 : i32
    %2 = arith.cmpi ne, %1, %c0_i32_0 : i32
    scf.if %2 {
      %cst_10 = arith.constant 0.000000e+00 : f32
      %12 = vector.broadcast %cst_10 : f32 to vector<16x256xf32>
      %c0_11 = arith.constant 0 : index
      %c0_12 = arith.constant 0 : index
      %13 = vector.load %arg9[%c0_11, %c0_12] : memref<16x256xf32, #tpu.memory_space<vmem>>, vector<16x256xf32>
      tpu.vector_store %arg9[%c0_11, %c0_12], %12 {strides = array<i32>} : memref<16x256xf32, #tpu.memory_space<vmem>>, vector<16x256xf32>,
    } else {
    }
    %c0 = arith.constant 0 : index
    %c0_1 = arith.constant 0 : index
    %3 = vector.load %arg9[%c0, %c0_1] : memref<16x256xf32, #tpu.memory_space<vmem>>, vector<16x256xf32>
    %c0_2 = arith.constant 0 : index
    %c0_3 = arith.constant 0 : index
    %4 = vector.load %arg2[%c0_2, %c0_3] : memref<16x256xbf16, #tpu.memory_space<vmem>>, vector<16x256xbf16>
    %c0_4 = arith.constant 0 : index
    %c0_5 = arith.constant 0 : index
    %5 = vector.load %arg3[%c0_4, %c0_5] : memref<256x256xbf16, #tpu.memory_space<vmem>>, vector<256x256xbf16>
    %cst = arith.constant dense<0.000000e+00> : vector<16x256xf32>
    %6 = tpu.matmul %4, %5, %cst {dimension_numbers = #tpu.dot_dimension_numbers<[1], [0], [0], [1], [0, 0, 1, 1], [], []>} : vector<16x256xbf16>, vector<256x256xbf16>, vector<16x256xf32> -> vector<16x256xf32>
    %7 = arith.addf %3, %6 : vector<16x256xf32>
    %c0_6 = arith.constant 0 : index
    %c0_7 = arith.constant 0 : index
    %8 = vector.load %arg9[%c0_6, %c0_7] : memref<16x256xf32, #tpu.memory_space<vmem>>, vector<16x256xf32>
    tpu.vector_store %arg9[%c0_6, %c0_7], %7 {strides = array<i32>} : memref<16x256xf32, #tpu.memory_space<vmem>>, vector<16x256xf32>,
    %c0_i32_8 = arith.constant 0 : i32
    %9 = arith.cmpi eq, %arg1, %c0_i32_8 : i32
    %10 = arith.extui %9 : i1 to i32
    %c0_i32_9 = arith.constant 0 : i32
    %11 = arith.cmpi ne, %10, %c0_i32_9 : i32
    scf.if %11 {
      %c0_10 = arith.constant 0 : index
      %c0_11 = arith.constant 0 : index
      %12 = vector.load %arg9[%c0_10, %c0_11] : memref<16x256xf32, #tpu.memory_space<vmem>>, vector<16x256xf32>
      %c0_12 = arith.constant 0 : index
      %c0_13 = arith.constant 0 : index
      %13 = vector.load %arg4[%c0_12, %c0_13] : memref<1x256xbf16, #tpu.memory_space<vmem>>, vector<1x256xbf16>
      %14 = arith.extf %13 : vector<1x256xbf16> to vector<1x256xf32>
      %15 = vector.broadcast %14 : vector<1x256xf32> to vector<16x256xf32>
      %16 = arith.addf %12, %15 : vector<16x256xf32>
      %c0_14 = arith.constant 0 : index
      %c0_15 = arith.constant 0 : index
      %17 = vector.load %arg5[%c0_14, %c0_15] : memref<16x256xbf16, #tpu.memory_space<vmem>>, vector<16x256xbf16>
      %18 = arith.extf %17 : vector<16x256xbf16> to vector<16x256xf32>
      %19 = arith.addf %16, %18 : vector<16x256xf32>
      %cst_16 = arith.constant dense<0.000000e+00> : vector<16xf32>
      %20 = vector.multi_reduction <add>, %19, %cst_16 [1] : vector<16x256xf32> to vector<16xf32>
      %21 = vector.shape_cast %20 : vector<16xf32> to vector<16x1xf32>
      %cst_17 = arith.constant 2.560000e+02 : f32
      %22 = vector.broadcast %cst_17 : f32 to vector<16x1xf32>
      %23 = arith.divf %21, %22 : vector<16x1xf32>
      %24 = vector.broadcast %23 : vector<16x1xf32> to vector<16x256xf32>
      %25 = arith.subf %19, %24 : vector<16x256xf32>
      %26 = arith.mulf %25, %25 : vector<16x256xf32>
      %cst_18 = arith.constant dense<0.000000e+00> : vector<16xf32>
      %27 = vector.multi_reduction <add>, %26, %cst_18 [1] : vector<16x256xf32> to vector<16xf32>
      %28 = vector.shape_cast %27 : vector<16xf32> to vector<16x1xf32>
      %cst_19 = arith.constant 2.560000e+02 : f32
      %29 = vector.broadcast %cst_19 : f32 to vector<16x1xf32>
      %30 = arith.divf %28, %29 : vector<16x1xf32>
      %cst_20 = arith.constant 9.99999996E-13 : f32
      %31 = vector.broadcast %cst_20 : f32 to vector<16x1xf32>
      %32 = arith.addf %30, %31 : vector<16x1xf32>
      %33 = math.rsqrt %32 : vector<16x1xf32>
      %34 = vector.broadcast %33 : vector<16x1xf32> to vector<16x256xf32>
      %35 = arith.mulf %25, %34 : vector<16x256xf32>
      %c0_21 = arith.constant 0 : index
      %c0_22 = arith.constant 0 : index
      %36 = vector.load %arg6[%c0_21, %c0_22] : memref<1x256xbf16, #tpu.memory_space<vmem>>, vector<1x256xbf16>
      %37 = arith.extf %36 : vector<1x256xbf16> to vector<1x256xf32>
      %38 = vector.broadcast %37 : vector<1x256xf32> to vector<16x256xf32>
      %39 = arith.mulf %35, %38 : vector<16x256xf32>
      %c0_23 = arith.constant 0 : index
      %c0_24 = arith.constant 0 : index
      %40 = vector.load %arg7[%c0_23, %c0_24] : memref<1x256xbf16, #tpu.memory_space<vmem>>, vector<1x256xbf16>
      %41 = arith.extf %40 : vector<1x256xbf16> to vector<1x256xf32>
      %42 = vector.broadcast %41 : vector<1x256xf32> to vector<16x256xf32>
      %43 = arith.addf %39, %42 : vector<16x256xf32>
      %44 = arith.truncf %43 : vector<16x256xf32> to vector<16x256xbf16>
      %c0_25 = arith.constant 0 : index
      %c0_26 = arith.constant 0 : index
      %45 = vector.load %arg8[%c0_25, %c0_26] : memref<16x256xbf16, #tpu.memory_space<vmem>>, vector<16x256xbf16>
      tpu.vector_store %arg8[%c0_25, %c0_26], %44 {strides = array<i32>} : memref<16x256xbf16, #tpu.memory_space<vmem>>, vector<16x256xbf16>,
    } else {
    }
    return
  }
  func.func @transform_0(%arg0: i32, %arg1: i32) -> (i32, i32) {
    %c0_i32 = arith.constant 0 : i32
    return %arg0, %arg1 : i32, i32
  }
  func.func @transform_1(%arg0: i32, %arg1: i32) -> (i32, i32) {
    %c0_i32 = arith.constant 0 : i32
    %c0_i32_0 = arith.constant 0 : i32
    return %arg1, %c0_i32 : i32, i32
  }
  func.func @transform_2(%arg0: i32, %arg1: i32) -> (i32, i32) {
    %c0_i32 = arith.constant 0 : i32
    %c0_i32_0 = arith.constant 0 : i32
    %c0_i32_1 = arith.constant 0 : i32
    return %c0_i32, %c0_i32_0 : i32, i32
  }
  func.func @transform_3(%arg0: i32, %arg1: i32) -> (i32, i32) {
    %c0_i32 = arith.constant 0 : i32
    %c0_i32_0 = arith.constant 0 : i32
    return %arg0, %c0_i32 : i32, i32
  }
  func.func @transform_4(%arg0: i32, %arg1: i32) -> (i32, i32) {
    %c0_i32 = arith.constant 0 : i32
    %c0_i32_0 = arith.constant 0 : i32
    %c0_i32_1 = arith.constant 0 : i32
    return %c0_i32, %c0_i32_0 : i32, i32
  }
  func.func @transform_5(%arg0: i32, %arg1: i32) -> (i32, i32) {
    %c0_i32 = arith.constant 0 : i32
    %c0_i32_0 = arith.constant 0 : i32
    %c0_i32_1 = arith.constant 0 : i32
    return %c0_i32, %c0_i32_0 : i32, i32
  }
  func.func @transform_6(%arg0: i32, %arg1: i32) -> (i32, i32) {
    %c0_i32 = arith.constant 0 : i32
    %c0_i32_0 = arith.constant 0 : i32
    return %arg0, %c0_i32 : i32, i32
  }
}

module attributes {stable_mosaic.version = 11 : i64} {
  func.func @_dense_res_ln_kernel(%arg0: i32, %arg1: i32, %arg2: memref<16x512xbf16, #tpu.memory_space<vmem>>, %arg3: memref<512x256xbf16, #tpu.memory_space<vmem>>, %arg4: memref<1x256xbf16, #tpu.memory_space<vmem>>, %arg5: memref<16x256xbf16, #tpu.memory_space<vmem>>, %arg6: memref<1x256xbf16, #tpu.memory_space<vmem>>, %arg7: memref<1x256xbf16, #tpu.memory_space<vmem>>, %arg8: memref<16x256xbf16, #tpu.memory_space<vmem>>, %arg9: memref<16x256xf32, #tpu.memory_space<vmem>>) attributes {dimension_semantics = [#tpu.dimension_semantics<parallel>, #tpu.dimension_semantics<arbitrary>], iteration_bounds = array<i64: 1, 1>, scalar_prefetch = 0 : i64, scratch_operands = 1 : i64, tpu.core_type = #tpu.core_type<tc>, window_params = [{transform_indices = @transform_0, window_bounds = array<i64: 16, 512>}, {transform_indices = @transform_1, window_bounds = array<i64: 512, 256>}, {pipeline_mode = #tpu.pipeline_mode<synchronous>, transform_indices = @transform_2, window_bounds = array<i64: 1, 256>}, {transform_indices = @transform_3, window_bounds = array<i64: 16, 256>}, {pipeline_mode = #tpu.pipeline_mode<synchronous>, transform_indices = @transform_4, window_bounds = array<i64: 1, 256>}, {pipeline_mode = #tpu.pipeline_mode<synchronous>, transform_indices = @transform_5, window_bounds = array<i64: 1, 256>}, {transform_indices = @transform_6, window_bounds = array<i64: 16, 256>}]} {
    %c0_i32 = arith.constant 0 : i32
    %0 = arith.cmpi eq, %arg1, %c0_i32 : i32
    %1 = arith.extui %0 : i1 to i32
    %c0_i32_0 = arith.constant 0 : i32
    %2 = arith.cmpi ne, %1, %c0_i32_0 : i32
    scf.if %2 {
      %cst_10 = arith.constant 0.000000e+00 : f32
      %12 = vector.broadcast %cst_10 : f32 to vector<16x256xf32>
      %c0_11 = arith.constant 0 : index
      %c0_12 = arith.constant 0 : index
      %13 = vector.load %arg9[%c0_11, %c0_12] : memref<16x256xf32, #tpu.memory_space<vmem>>, vector<16x256xf32>
      tpu.vector_store %arg9[%c0_11, %c0_12], %12 {strides = array<i32>} : memref<16x256xf32, #tpu.memory_space<vmem>>, vector<16x256xf32>,
    } else {
    }
    %c0 = arith.constant 0 : index
    %c0_1 = arith.constant 0 : index
    %3 = vector.load %arg9[%c0, %c0_1] : memref<16x256xf32, #tpu.memory_space<vmem>>, vector<16x256xf32>
    %c0_2 = arith.constant 0 : index
    %c0_3 = arith.constant 0 : index
    %4 = vector.load %arg2[%c0_2, %c0_3] : memref<16x512xbf16, #tpu.memory_space<vmem>>, vector<16x512xbf16>
    %c0_4 = arith.constant 0 : index
    %c0_5 = arith.constant 0 : index
    %5 = vector.load %arg3[%c0_4, %c0_5] : memref<512x256xbf16, #tpu.memory_space<vmem>>, vector<512x256xbf16>
    %cst = arith.constant dense<0.000000e+00> : vector<16x256xf32>
    %6 = tpu.matmul %4, %5, %cst {dimension_numbers = #tpu.dot_dimension_numbers<[1], [0], [0], [1], [0, 0, 1, 1], [], []>} : vector<16x512xbf16>, vector<512x256xbf16>, vector<16x256xf32> -> vector<16x256xf32>
    %7 = arith.addf %3, %6 : vector<16x256xf32>
    %c0_6 = arith.constant 0 : index
    %c0_7 = arith.constant 0 : index
    %8 = vector.load %arg9[%c0_6, %c0_7] : memref<16x256xf32, #tpu.memory_space<vmem>>, vector<16x256xf32>
    tpu.vector_store %arg9[%c0_6, %c0_7], %7 {strides = array<i32>} : memref<16x256xf32, #tpu.memory_space<vmem>>, vector<16x256xf32>,
    %c0_i32_8 = arith.constant 0 : i32
    %9 = arith.cmpi eq, %arg1, %c0_i32_8 : i32
    %10 = arith.extui %9 : i1 to i32
    %c0_i32_9 = arith.constant 0 : i32
    %11 = arith.cmpi ne, %10, %c0_i32_9 : i32
    scf.if %11 {
      %c0_10 = arith.constant 0 : index
      %c0_11 = arith.constant 0 : index
      %12 = vector.load %arg9[%c0_10, %c0_11] : memref<16x256xf32, #tpu.memory_space<vmem>>, vector<16x256xf32>
      %c0_12 = arith.constant 0 : index
      %c0_13 = arith.constant 0 : index
      %13 = vector.load %arg4[%c0_12, %c0_13] : memref<1x256xbf16, #tpu.memory_space<vmem>>, vector<1x256xbf16>
      %14 = arith.extf %13 : vector<1x256xbf16> to vector<1x256xf32>
      %15 = vector.broadcast %14 : vector<1x256xf32> to vector<16x256xf32>
      %16 = arith.addf %12, %15 : vector<16x256xf32>
      %c0_14 = arith.constant 0 : index
      %c0_15 = arith.constant 0 : index
      %17 = vector.load %arg5[%c0_14, %c0_15] : memref<16x256xbf16, #tpu.memory_space<vmem>>, vector<16x256xbf16>
      %18 = arith.extf %17 : vector<16x256xbf16> to vector<16x256xf32>
      %19 = arith.addf %16, %18 : vector<16x256xf32>
      %cst_16 = arith.constant dense<0.000000e+00> : vector<16xf32>
      %20 = vector.multi_reduction <add>, %19, %cst_16 [1] : vector<16x256xf32> to vector<16xf32>
      %21 = vector.shape_cast %20 : vector<16xf32> to vector<16x1xf32>
      %cst_17 = arith.constant 2.560000e+02 : f32
      %22 = vector.broadcast %cst_17 : f32 to vector<16x1xf32>
      %23 = arith.divf %21, %22 : vector<16x1xf32>
      %24 = vector.broadcast %23 : vector<16x1xf32> to vector<16x256xf32>
      %25 = arith.subf %19, %24 : vector<16x256xf32>
      %26 = arith.mulf %25, %25 : vector<16x256xf32>
      %cst_18 = arith.constant dense<0.000000e+00> : vector<16xf32>
      %27 = vector.multi_reduction <add>, %26, %cst_18 [1] : vector<16x256xf32> to vector<16xf32>
      %28 = vector.shape_cast %27 : vector<16xf32> to vector<16x1xf32>
      %cst_19 = arith.constant 2.560000e+02 : f32
      %29 = vector.broadcast %cst_19 : f32 to vector<16x1xf32>
      %30 = arith.divf %28, %29 : vector<16x1xf32>
      %cst_20 = arith.constant 9.99999996E-13 : f32
      %31 = vector.broadcast %cst_20 : f32 to vector<16x1xf32>
      %32 = arith.addf %30, %31 : vector<16x1xf32>
      %33 = math.rsqrt %32 : vector<16x1xf32>
      %34 = vector.broadcast %33 : vector<16x1xf32> to vector<16x256xf32>
      %35 = arith.mulf %25, %34 : vector<16x256xf32>
      %c0_21 = arith.constant 0 : index
      %c0_22 = arith.constant 0 : index
      %36 = vector.load %arg6[%c0_21, %c0_22] : memref<1x256xbf16, #tpu.memory_space<vmem>>, vector<1x256xbf16>
      %37 = arith.extf %36 : vector<1x256xbf16> to vector<1x256xf32>
      %38 = vector.broadcast %37 : vector<1x256xf32> to vector<16x256xf32>
      %39 = arith.mulf %35, %38 : vector<16x256xf32>
      %c0_23 = arith.constant 0 : index
      %c0_24 = arith.constant 0 : index
      %40 = vector.load %arg7[%c0_23, %c0_24] : memref<1x256xbf16, #tpu.memory_space<vmem>>, vector<1x256xbf16>
      %41 = arith.extf %40 : vector<1x256xbf16> to vector<1x256xf32>
      %42 = vector.broadcast %41 : vector<1x256xf32> to vector<16x256xf32>
      %43 = arith.addf %39, %42 : vector<16x256xf32>
      %44 = arith.truncf %43 : vector<16x256xf32> to vector<16x256xbf16>
      %c0_25 = arith.constant 0 : index
      %c0_26 = arith.constant 0 : index
      %45 = vector.load %arg8[%c0_25, %c0_26] : memref<16x256xbf16, #tpu.memory_space<vmem>>, vector<16x256xbf16>
      tpu.vector_store %arg8[%c0_25, %c0_26], %44 {strides = array<i32>} : memref<16x256xbf16, #tpu.memory_space<vmem>>, vector<16x256xbf16>,
    } else {
    }
    return
  }
  func.func @transform_0(%arg0: i32, %arg1: i32) -> (i32, i32) {
    %c0_i32 = arith.constant 0 : i32
    return %arg0, %arg1 : i32, i32
  }
  func.func @transform_1(%arg0: i32, %arg1: i32) -> (i32, i32) {
    %c0_i32 = arith.constant 0 : i32
    %c0_i32_0 = arith.constant 0 : i32
    return %arg1, %c0_i32 : i32, i32
  }
  func.func @transform_2(%arg0: i32, %arg1: i32) -> (i32, i32) {
    %c0_i32 = arith.constant 0 : i32
    %c0_i32_0 = arith.constant 0 : i32
    %c0_i32_1 = arith.constant 0 : i32
    return %c0_i32, %c0_i32_0 : i32, i32
  }
  func.func @transform_3(%arg0: i32, %arg1: i32) -> (i32, i32) {
    %c0_i32 = arith.constant 0 : i32
    %c0_i32_0 = arith.constant 0 : i32
    return %arg0, %c0_i32 : i32, i32
  }
  func.func @transform_4(%arg0: i32, %arg1: i32) -> (i32, i32) {
    %c0_i32 = arith.constant 0 : i32
    %c0_i32_0 = arith.constant 0 : i32
    %c0_i32_1 = arith.constant 0 : i32
    return %c0_i32, %c0_i32_0 : i32, i32
  }
  func.func @transform_5(%arg0: i32, %arg1: i32) -> (i32, i32) {
    %c0_i32 = arith.constant 0 : i32
    %c0_i32_0 = arith.constant 0 : i32
    %c0_i32_1 = arith.constant 0 : i32
    return %c0_i32, %c0_i32_0 : i32, i32
  }
  func.func @transform_6(%arg0: i32, %arg1: i32) -> (i32, i32) {
    %c0_i32 = arith.constant 0 : i32
    %c0_i32_0 = arith.constant 0 : i32
    return %arg0, %c0_i32 : i32, i32
  }
}

module attributes {stable_mosaic.version = 11 : i64} {
  func.func @_dense_kernel(%arg0: i32, %arg1: i32, %arg2: i32, %arg3: memref<16x256xbf16, #tpu.memory_space<vmem>>, %arg4: memref<256x512xbf16, #tpu.memory_space<vmem>>, %arg5: memref<1x512xbf16, #tpu.memory_space<vmem>>, %arg6: memref<16x512xbf16, #tpu.memory_space<vmem>>, %arg7: memref<16x512xf32, #tpu.memory_space<vmem>>) attributes {dimension_semantics = [#tpu.dimension_semantics<parallel>, #tpu.dimension_semantics<parallel>, #tpu.dimension_semantics<arbitrary>], iteration_bounds = array<i64: 1, 1, 1>, scalar_prefetch = 0 : i64, scratch_operands = 1 : i64, tpu.core_type = #tpu.core_type<tc>, window_params = [{transform_indices = @transform_0, window_bounds = array<i64: 16, 256>}, {transform_indices = @transform_1, window_bounds = array<i64: 256, 512>}, {transform_indices = @transform_2, window_bounds = array<i64: 1, 512>}, {transform_indices = @transform_3, window_bounds = array<i64: 16, 512>}]} {
    %c0_i32 = arith.constant 0 : i32
    %0 = arith.cmpi eq, %arg2, %c0_i32 : i32
    %1 = arith.extui %0 : i1 to i32
    %c0_i32_0 = arith.constant 0 : i32
    %2 = arith.cmpi ne, %1, %c0_i32_0 : i32
    scf.if %2 {
      %cst_10 = arith.constant 0.000000e+00 : f32
      %12 = vector.broadcast %cst_10 : f32 to vector<16x512xf32>
      %c0_11 = arith.constant 0 : index
      %c0_12 = arith.constant 0 : index
      %13 = vector.load %arg7[%c0_11, %c0_12] : memref<16x512xf32, #tpu.memory_space<vmem>>, vector<16x512xf32>
      tpu.vector_store %arg7[%c0_11, %c0_12], %12 {strides = array<i32>} : memref<16x512xf32, #tpu.memory_space<vmem>>, vector<16x512xf32>,
    } else {
    }
    %c0 = arith.constant 0 : index
    %c0_1 = arith.constant 0 : index
    %3 = vector.load %arg7[%c0, %c0_1] : memref<16x512xf32, #tpu.memory_space<vmem>>, vector<16x512xf32>
    %c0_2 = arith.constant 0 : index
    %c0_3 = arith.constant 0 : index
    %4 = vector.load %arg3[%c0_2, %c0_3] : memref<16x256xbf16, #tpu.memory_space<vmem>>, vector<16x256xbf16>
    %c0_4 = arith.constant 0 : index
    %c0_5 = arith.constant 0 : index
    %5 = vector.load %arg4[%c0_4, %c0_5] : memref<256x512xbf16, #tpu.memory_space<vmem>>, vector<256x512xbf16>
    %cst = arith.constant dense<0.000000e+00> : vector<16x512xf32>
    %6 = tpu.matmul %4, %5, %cst {dimension_numbers = #tpu.dot_dimension_numbers<[1], [0], [0], [1], [0, 0, 1, 1], [], []>} : vector<16x256xbf16>, vector<256x512xbf16>, vector<16x512xf32> -> vector<16x512xf32>
    %7 = arith.addf %3, %6 : vector<16x512xf32>
    %c0_6 = arith.constant 0 : index
    %c0_7 = arith.constant 0 : index
    %8 = vector.load %arg7[%c0_6, %c0_7] : memref<16x512xf32, #tpu.memory_space<vmem>>, vector<16x512xf32>
    tpu.vector_store %arg7[%c0_6, %c0_7], %7 {strides = array<i32>} : memref<16x512xf32, #tpu.memory_space<vmem>>, vector<16x512xf32>,
    %c0_i32_8 = arith.constant 0 : i32
    %9 = arith.cmpi eq, %arg2, %c0_i32_8 : i32
    %10 = arith.extui %9 : i1 to i32
    %c0_i32_9 = arith.constant 0 : i32
    %11 = arith.cmpi ne, %10, %c0_i32_9 : i32
    scf.if %11 {
      %c0_10 = arith.constant 0 : index
      %c0_11 = arith.constant 0 : index
      %12 = vector.load %arg7[%c0_10, %c0_11] : memref<16x512xf32, #tpu.memory_space<vmem>>, vector<16x512xf32>
      %c0_12 = arith.constant 0 : index
      %c0_13 = arith.constant 0 : index
      %13 = vector.load %arg5[%c0_12, %c0_13] : memref<1x512xbf16, #tpu.memory_space<vmem>>, vector<1x512xbf16>
      %14 = arith.extf %13 : vector<1x512xbf16> to vector<1x512xf32>
      %15 = vector.broadcast %14 : vector<1x512xf32> to vector<16x512xf32>
      %16 = arith.addf %12, %15 : vector<16x512xf32>
      %17 = arith.mulf %16, %16 : vector<16x512xf32>
      %18 = arith.mulf %16, %17 : vector<16x512xf32>
      %cst_14 = arith.constant 4.471500e-02 : f32
      %19 = vector.broadcast %cst_14 : f32 to vector<16x512xf32>
      %20 = arith.mulf %19, %18 : vector<16x512xf32>
      %21 = arith.addf %16, %20 : vector<16x512xf32>
      %cst_15 = arith.constant 0.797884583 : f32
      %22 = vector.broadcast %cst_15 : f32 to vector<16x512xf32>
      %23 = arith.mulf %22, %21 : vector<16x512xf32>
      %24 = math.tanh %23 : vector<16x512xf32>
      %cst_16 = arith.constant 1.000000e+00 : f32
      %25 = vector.broadcast %cst_16 : f32 to vector<16x512xf32>
      %26 = arith.addf %25, %24 : vector<16x512xf32>
      %cst_17 = arith.constant 5.000000e-01 : f32
      %27 = vector.broadcast %cst_17 : f32 to vector<16x512xf32>
      %28 = arith.mulf %27, %26 : vector<16x512xf32>
      %29 = arith.mulf %16, %28 : vector<16x512xf32>
      %30 = arith.truncf %29 : vector<16x512xf32> to vector<16x512xbf16>
      %c0_18 = arith.constant 0 : index
      %c0_19 = arith.constant 0 : index
      %31 = vector.load %arg6[%c0_18, %c0_19] : memref<16x512xbf16, #tpu.memory_space<vmem>>, vector<16x512xbf16>
      tpu.vector_store %arg6[%c0_18, %c0_19], %30 {strides = array<i32>} : memref<16x512xbf16, #tpu.memory_space<vmem>>, vector<16x512xbf16>,
    } else {
    }
    return
  }
  func.func @transform_0(%arg0: i32, %arg1: i32, %arg2: i32) -> (i32, i32) {
    %c0_i32 = arith.constant 0 : i32
    return %arg0, %arg2 : i32, i32
  }
  func.func @transform_1(%arg0: i32, %arg1: i32, %arg2: i32) -> (i32, i32) {
    %c0_i32 = arith.constant 0 : i32
    return %arg2, %arg1 : i32, i32
  }
  func.func @transform_2(%arg0: i32, %arg1: i32, %arg2: i32) -> (i32, i32) {
    %c0_i32 = arith.constant 0 : i32
    %c0_i32_0 = arith.constant 0 : i32
    return %c0_i32, %arg1 : i32, i32
  }
  func.func @transform_3(%arg0: i32, %arg1: i32, %arg2: i32) -> (i32, i32) {
    %c0_i32 = arith.constant 0 : i32
    return %arg0, %arg1 : i32, i32
  }
}

module attributes {stable_mosaic.version = 11 : i64} {
  func.func @_dense_kernel(%arg0: i32, %arg1: i32, %arg2: i32, %arg3: memref<16x256xbf16, #tpu.memory_space<vmem>>, %arg4: memref<256x384xbf16, #tpu.memory_space<vmem>>, %arg5: memref<1x384xbf16, #tpu.memory_space<vmem>>, %arg6: memref<16x384xbf16, #tpu.memory_space<vmem>>, %arg7: memref<16x384xf32, #tpu.memory_space<vmem>>) attributes {dimension_semantics = [#tpu.dimension_semantics<parallel>, #tpu.dimension_semantics<parallel>, #tpu.dimension_semantics<arbitrary>], iteration_bounds = array<i64: 1, 2, 1>, scalar_prefetch = 0 : i64, scratch_operands = 1 : i64, tpu.core_type = #tpu.core_type<tc>, window_params = [{transform_indices = @transform_0, window_bounds = array<i64: 16, 256>}, {transform_indices = @transform_1, window_bounds = array<i64: 256, 384>}, {transform_indices = @transform_2, window_bounds = array<i64: 1, 384>}, {transform_indices = @transform_3, window_bounds = array<i64: 16, 384>}]} {
    %c0_i32 = arith.constant 0 : i32
    %0 = arith.cmpi eq, %arg2, %c0_i32 : i32
    %1 = arith.extui %0 : i1 to i32
    %c0_i32_0 = arith.constant 0 : i32
    %2 = arith.cmpi ne, %1, %c0_i32_0 : i32
    scf.if %2 {
      %cst_10 = arith.constant 0.000000e+00 : f32
      %12 = vector.broadcast %cst_10 : f32 to vector<16x384xf32>
      %c0_11 = arith.constant 0 : index
      %c0_12 = arith.constant 0 : index
      %13 = vector.load %arg7[%c0_11, %c0_12] : memref<16x384xf32, #tpu.memory_space<vmem>>, vector<16x384xf32>
      tpu.vector_store %arg7[%c0_11, %c0_12], %12 {strides = array<i32>} : memref<16x384xf32, #tpu.memory_space<vmem>>, vector<16x384xf32>,
    } else {
    }
    %c0 = arith.constant 0 : index
    %c0_1 = arith.constant 0 : index
    %3 = vector.load %arg7[%c0, %c0_1] : memref<16x384xf32, #tpu.memory_space<vmem>>, vector<16x384xf32>
    %c0_2 = arith.constant 0 : index
    %c0_3 = arith.constant 0 : index
    %4 = vector.load %arg3[%c0_2, %c0_3] : memref<16x256xbf16, #tpu.memory_space<vmem>>, vector<16x256xbf16>
    %c0_4 = arith.constant 0 : index
    %c0_5 = arith.constant 0 : index
    %5 = vector.load %arg4[%c0_4, %c0_5] : memref<256x384xbf16, #tpu.memory_space<vmem>>, vector<256x384xbf16>
    %cst = arith.constant dense<0.000000e+00> : vector<16x384xf32>
    %6 = tpu.matmul %4, %5, %cst {dimension_numbers = #tpu.dot_dimension_numbers<[1], [0], [0], [1], [0, 0, 1, 1], [], []>} : vector<16x256xbf16>, vector<256x384xbf16>, vector<16x384xf32> -> vector<16x384xf32>
    %7 = arith.addf %3, %6 : vector<16x384xf32>
    %c0_6 = arith.constant 0 : index
    %c0_7 = arith.constant 0 : index
    %8 = vector.load %arg7[%c0_6, %c0_7] : memref<16x384xf32, #tpu.memory_space<vmem>>, vector<16x384xf32>
    tpu.vector_store %arg7[%c0_6, %c0_7], %7 {strides = array<i32>} : memref<16x384xf32, #tpu.memory_space<vmem>>, vector<16x384xf32>,
    %c0_i32_8 = arith.constant 0 : i32
    %9 = arith.cmpi eq, %arg2, %c0_i32_8 : i32
    %10 = arith.extui %9 : i1 to i32
    %c0_i32_9 = arith.constant 0 : i32
    %11 = arith.cmpi ne, %10, %c0_i32_9 : i32
    scf.if %11 {
      %c0_10 = arith.constant 0 : index
      %c0_11 = arith.constant 0 : index
      %12 = vector.load %arg7[%c0_10, %c0_11] : memref<16x384xf32, #tpu.memory_space<vmem>>, vector<16x384xf32>
      %c0_12 = arith.constant 0 : index
      %c0_13 = arith.constant 0 : index
      %13 = vector.load %arg5[%c0_12, %c0_13] : memref<1x384xbf16, #tpu.memory_space<vmem>>, vector<1x384xbf16>
      %14 = arith.extf %13 : vector<1x384xbf16> to vector<1x384xf32>
      %15 = vector.broadcast %14 : vector<1x384xf32> to vector<16x384xf32>
      %16 = arith.addf %12, %15 : vector<16x384xf32>
      %17 = arith.truncf %16 : vector<16x384xf32> to vector<16x384xbf16>
      %c0_14 = arith.constant 0 : index
      %c0_15 = arith.constant 0 : index
      %18 = vector.load %arg6[%c0_14, %c0_15] : memref<16x384xbf16, #tpu.memory_space<vmem>>, vector<16x384xbf16>
      tpu.vector_store %arg6[%c0_14, %c0_15], %17 {strides = array<i32>} : memref<16x384xbf16, #tpu.memory_space<vmem>>, vector<16x384xbf16>,
    } else {
    }
    return
  }
  func.func @transform_0(%arg0: i32, %arg1: i32, %arg2: i32) -> (i32, i32) {
    %c0_i32 = arith.constant 0 : i32
    return %arg0, %arg2 : i32, i32
  }
  func.func @transform_1(%arg0: i32, %arg1: i32, %arg2: i32) -> (i32, i32) {
    %c0_i32 = arith.constant 0 : i32
    return %arg2, %arg1 : i32, i32
  }
  func.func @transform_2(%arg0: i32, %arg1: i32, %arg2: i32) -> (i32, i32) {
    %c0_i32 = arith.constant 0 : i32
    %c0_i32_0 = arith.constant 0 : i32
    return %c0_i32, %arg1 : i32, i32
  }
  func.func @transform_3(%arg0: i32, %arg1: i32, %arg2: i32) -> (i32, i32) {
    %c0_i32 = arith.constant 0 : i32
    return %arg0, %arg1 : i32, i32
  }
}

</mosaic_0001>

<llo_original>
// kernel: mybert_forward.12
$region0: #{mybert_forward.12}
  #allocation0 [shape = 'u32[]', space=smem, size = 0x4, offset = 0x4, fixed_abs, tag = 'smem constant byte address 0x4 - core index']
  #allocation1 [shape = 'u32[144,128]{1,0:T(1,128)}', space=vmem, size = 0x12000, scoped, tag = 'internal scratch']
  %s0 = inlined_call_operand.vmem [shape: bf16[16,128], index: 0, kind: input, shape index: {}]
  %s1 = inlined_call_operand.vmem [shape: bf16[1,128], index: 1, kind: input, shape index: {}]
  %s2 = inlined_call_operand.vmem [shape: bf16[1,128], index: 2, kind: input, shape index: {}]
  %s3 = inlined_call_operand.vmem [shape: bf16[16,128], index: 3, kind: output, shape index: {}]
  %s4 = sld [smem:[#allocation0]]
  $region22: #{mybert_forward.12} parent=0
    _
  %s6 = ssub.s32 1, %s4
  %s7 = scalar_select 0, %s6, %s4
  // Predicated region
  $region2: #{mybert_forward.12} parent=0 // pred_check
    _
  $region3: #{mybert_forward.12} parent=0 // pred_check_branch
    %9 = sbr.rel (0) target = $region5
  $region4: #{mybert_forward.12} parent=0 // pred_region
    _
  $region5: #{mybert_forward.12} parent=0 // pred_fallthru
    _
  // Predicated region
  $region6: #{mybert_forward.12} parent=0 // pred_check
    _
  $region7: #{mybert_forward.12} parent=0 // pred_check_branch
    %11 = sbr.rel (0) target = $region9
  $region8: #{mybert_forward.12} parent=0 // pred_region
    _
  $region9: #{mybert_forward.12} parent=0 // pred_fallthru
    _
  // Predicated region
  $region10: #{mybert_forward.12} parent=0 // pred_check
    _
  $region11: #{mybert_forward.12} parent=0 // pred_check_branch
    %13 = sbr.rel (0) target = $region13
  $region12: #{mybert_forward.12} parent=0 // pred_region
    _
  $region13: #{mybert_forward.12} parent=0 // pred_fallthru
    _
  %v14 = vld [vmem:[%s0] sm:$0xf]
  %v15 = vld [vmem:[%s0 + $0x4] sm:$0xf]
  %v16 = vunpack.c.l.bf16 %v14
  %v17 = vunpack.c.l.bf16 %v15
  %18 = vadd.xlane.f32.xlu0 %v16
  %v19 = vpop.xlane.xlu0 %18
  %20 = vadd.xlane.f32.xlu0 %v17
  %v21 = vpop.xlane.xlu0 %20
  %v22 = vrcp.pop 128.0
  %v23 = vmul.f32 %v19, %v22
  %v24 = vmul.f32 %v21, %v22
  %v25 = vsub.f32 %v16, %v23
  %v26 = vsub.f32 %v17, %v24
  %v27 = vmul.f32 %v25, %v25
  %v28 = vmul.f32 %v26, %v26
  %29 = vadd.xlane.f32.xlu0 %v27
  %v30 = vpop.xlane.xlu0 %29
  %31 = vadd.xlane.f32.xlu0 %v28
  %v32 = vpop.xlane.xlu0 %31
  %v33 = vmul.f32 %v30, %v22
  %v34 = vmul.f32 %v32, %v22
  %v35 = vadd.f32 %v33, 1e-12
  %v36 = vadd.f32 %v34, 1e-12
  %v37 = vrsqrt.pop %v35
  %v38 = vrsqrt.pop %v36
  %v39 = vmul.f32 %v25, %v37
  %v40 = vmul.f32 %v26, %v38
  %v41 = vld [vmem:[%s1] sm:$0x1]
  %v42 = vunpack.c.l.bf16 %v41
  %v43 = vlaneseq
  %v44 = vshrl.u32 %v43, 7
  %v45 = vsub.s32 0, %v44
  %v46 = vrot.slane %v42, %v45
  %v47 = vmul.f32 %v39, %v46
  %v48 = vmul.f32 %v40, %v46
  %v49 = vld [vmem:[%s2] sm:$0x1]
  %v50 = vunpack.c.l.bf16 %v49
  %v51 = vlaneseq
  %v52 = vshrl.u32 %v51, 7
  %v53 = vsub.s32 0, %v52
  %v54 = vrot.slane %v50, %v53
  %v55 = vadd.f32 %v47, %v54
  %v56 = vadd.f32 %v48, %v54
  %v57 = vpack.c.bf16 %v56, %v55
  %v59 = vunpack.c.l.b16 %v57
  %v60 = vunpack.c.h.b16 %v57
  %v61 = vpack.c.b16 %v59, %v59
  %v62 = vpack.c.b16 %v60, %v60
  %65 = vst [vmem:[%s3] sm:$0xf] %v61
  %66 = vst [vmem:[%s3 + $0x4] sm:$0xf] %v62
  // Predicated region
  $region14: #{mybert_forward.12} parent=0 // pred_check
    _
  $region15: #{mybert_forward.12} parent=0 // pred_check_branch
    %68 = sbr.rel (0) target = $region17
  $region16: #{mybert_forward.12} parent=0 // pred_region
    _
  $region17: #{mybert_forward.12} parent=0 // pred_fallthru
    _
  // Predicated region
  $region18: #{mybert_forward.12} parent=0 // pred_check
    _
  $region19: #{mybert_forward.12} parent=0 // pred_check_branch
    %70 = sbr.rel (0) target = $region21
  $region20: #{mybert_forward.12} parent=0 // pred_region
    _
  $region21: #{mybert_forward.12} parent=0 // pred_fallthru
    _

// kernel: mybert_forward.15
$region0: #{mybert_forward.15}
  #allocation0 [shape = 'u32[]', space=smem, size = 0x4, offset = 0x4, fixed_abs, tag = 'smem constant byte address 0x4 - core index']
  #allocation1 [shape = 'u32[144,128]{1,0:T(1,128)}', space=vmem, size = 0x12000, scoped, tag = 'internal scratch']
  #allocation2 [shape = 'f32[1,8,1]{2,1,0:T(8,128)}', space=vmem, size = 0x1000, scoped, tag = 'scratch operand']
  #allocation3 [shape = 'f32[1,8,1]{2,1,0:T(8,128)}', space=vmem, size = 0x1000, scoped, tag = 'scratch operand']
  #allocation4 [shape = 'f32[1,8,128]{2,1,0:T(8,128)}', space=vmem, size = 0x1000, scoped, tag = 'scratch operand']
  %s0 = inlined_call_operand.vmem [shape: bf16[2,8,768], index: 0, kind: input, shape index: {}, may-alias: {0,1,2}]
  %s1 = inlined_call_operand.vmem [shape: bf16[2,8,768], index: 1, kind: input, shape index: {}, may-alias: {0,1,2}]
  %s2 = inlined_call_operand.vmem [shape: bf16[2,8,768], index: 2, kind: input, shape index: {}, may-alias: {0,1,2}]
  %s3 = inlined_call_operand.vmem [shape: f32[2,1,8], index: 3, kind: input, shape index: {}]
  %s4 = inlined_call_operand.vmem [shape: bf16[2,8,256], index: 4, kind: output, shape index: {}]
  %s5 = sld [smem:[#allocation0]]
  $region57: #{mybert_forward.15} parent=0
    _
  %s7 = ssub.s32 1, %s5
  %s8 = scalar_select 0, %s7, %s5
  loop: start=0, step=1, limit=6
  $region2: #{mybert_forward.15} parent=0 // loop_pre_header
    _
  $region3: #{mybert_forward.15} parent=0 // loop_header
    %s10 = sphi 0, %s14
    %p11 = scmp.ge.s32.totalorder %s10, 6
    %s17 = sphi 0, %s36
    %s18 = sphi 0, %s32
    %s19 = sphi 0, %s28
    %s20 = sphi 0, %s17
    %s21 = sphi 0, %s18
    %s22 = sphi 0, %s19
    %s23 = sphi 0, %s20
    %s24 = sphi 0, %s21
    %s25 = sphi 0, %s22
    %s41 = sphi 0, %s43
    %s44 = sphi 0, %s41
    %s45 = sphi 0, %s44
    %s61 = sphi 0, %s45
    %s73 = sphi 0, %s75
    %s76 = sphi 0, %s73
    %s77 = sphi 0, %s76
    %s93 = sphi 0, %s77
    %s105 = sphi 0, %s107
    %s108 = sphi 0, %s105
    %s109 = sphi 0, %s108
    %s125 = sphi 0, %s109
    %s133 = sphi 0, %s135
    %s136 = sphi 0, %s133
    %s137 = sphi 0, %s136
    %s153 = sphi 0, %s137
    %s161 = sphi 0, %s163
    %s164 = sphi 0, %s161
    %s165 = sphi 0, %s164
    %s181 = sphi 0, %s165
  $region4: #{mybert_forward.15} parent=0 // loop_header_branch
    %13 = sbr.rel (%p11) target = $region8
  $region5: #{mybert_forward.15} parent=0 // loop_body
    %s15 = ssub.s32 %s10, 1
    %s16 = ssub.s32 %s10, 2
    %s26 = sadd.s32 1, %s19
    %p27 = scmp.ge.s32.totalorder %s26, 1
    %s28 = scalar_select %p27, 0, %s26
    %s29 = sadd.s32 1, %s18
    %s30 = scalar_select %p27, %s29, %s18
    %p31 = scmp.ge.s32.totalorder %s30, 2
    %s32 = scalar_select %p31, 0, %s30
    %s33 = sadd.s32 1, %s17
    %s34 = scalar_select %p31, %s33, %s17
    %p35 = scmp.ge.s32.totalorder %s34, 2
    %s36 = scalar_select %p35, 0, %s34
    %s37 = ssub.s32 %s17, %s36
    %s38 = ssub.s32 %s18, %s32
    %s39 = sor.u32 %s37, %s38
    %p40 = scmp.eq.s32.totalorder %s39, 0
    %s42 = sadd.s32 %s41, 1
    %s43 = scalar_select %p40, %s41, %s42
    %p46 = pneg %p40
    %p47 = scmp.eq.s32.totalorder %s10, 3
    %p48 = por %p46, %p47
    %p49 = scmp.ne.s32.totalorder %s41, %s44
    %p50 = scmp.eq.s32.totalorder %s10, 0
    %p51 = por %p49, %p50
    %p52 = scmp.ne.s32.totalorder %s41, %s44
    %p53 = scmp.eq.s32.totalorder %s15, 3
    %p54 = por %p52, %p53
    %p55 = scmp.ne.s32.totalorder %s44, %s45
    %p56 = scmp.eq.s32.totalorder %s15, 0
    %p57 = por %p55, %p56
    %p58 = scmp.ne.s32.totalorder %s44, %s45
    %p59 = scmp.eq.s32.totalorder %s16, 3
    %p60 = por %p58, %p59
    %p62 = scmp.ne.s32.totalorder %s45, %s61
    %p63 = scmp.eq.s32.totalorder %s16, 0
    %p64 = por %p62, %p63
    %s65 = sadd.s32 %s18, 2
    %s66 = sadd.s32 %s32, 2
    %s67 = ssub.s32 %s17, %s36
    %s68 = ssub.s32 %s19, %s28
    %s69 = sor.u32 %s67, %s68
    %s70 = ssub.s32 %s65, %s66
    %s71 = sor.u32 %s69, %s70
    %p72 = scmp.eq.s32.totalorder %s71, 0
    %s74 = sadd.s32 %s73, 1
    %s75 = scalar_select %p72, %s73, %s74
    %p78 = pneg %p72
    %p79 = scmp.eq.s32.totalorder %s10, 3
    %p80 = por %p78, %p79
    %p81 = scmp.ne.s32.totalorder %s73, %s76
    %p82 = scmp.eq.s32.totalorder %s10, 0
    %p83 = por %p81, %p82
    %p84 = scmp.ne.s32.totalorder %s73, %s76
    %p85 = scmp.eq.s32.totalorder %s15, 3
    %p86 = por %p84, %p85
    %p87 = scmp.ne.s32.totalorder %s76, %s77
    %p88 = scmp.eq.s32.totalorder %s15, 0
    %p89 = por %p87, %p88
    %p90 = scmp.ne.s32.totalorder %s76, %s77
    %p91 = scmp.eq.s32.totalorder %s16, 3
    %p92 = por %p90, %p91
    %p94 = scmp.ne.s32.totalorder %s77, %s93
    %p95 = scmp.eq.s32.totalorder %s16, 0
    %p96 = por %p94, %p95
    %s97 = sadd.s32 %s18, 4
    %s98 = sadd.s32 %s32, 4
    %s99 = ssub.s32 %s17, %s36
    %s100 = ssub.s32 %s19, %s28
    %s101 = sor.u32 %s99, %s100
    %s102 = ssub.s32 %s97, %s98
    %s103 = sor.u32 %s101, %s102
    %p104 = scmp.eq.s32.totalorder %s103, 0
    %s106 = sadd.s32 %s105, 1
    %s107 = scalar_select %p104, %s105, %s106
    %p110 = pneg %p104
    %p111 = scmp.eq.s32.totalorder %s10, 3
    %p112 = por %p110, %p111
    %p113 = scmp.ne.s32.totalorder %s105, %s108
    %p114 = scmp.eq.s32.totalorder %s10, 0
    %p115 = por %p113, %p114
    %p116 = scmp.ne.s32.totalorder %s105, %s108
    %p117 = scmp.eq.s32.totalorder %s15, 3
    %p118 = por %p116, %p117
    %p119 = scmp.ne.s32.totalorder %s108, %s109
    %p120 = scmp.eq.s32.totalorder %s15, 0
    %p121 = por %p119, %p120
    %p122 = scmp.ne.s32.totalorder %s108, %s109
    %p123 = scmp.eq.s32.totalorder %s16, 3
    %p124 = por %p122, %p123
    %p126 = scmp.ne.s32.totalorder %s109, %s125
    %p127 = scmp.eq.s32.totalorder %s16, 0
    %p128 = por %p126, %p127
    %s129 = ssub.s32 %s17, %s36
    %s130 = ssub.s32 %s19, %s28
    %s131 = sor.u32 %s129, %s130
    %p132 = scmp.eq.s32.totalorder %s131, 0
    %s134 = sadd.s32 %s133, 1
    %s135 = scalar_select %p132, %s133, %s134
    %p138 = pneg %p132
    %p139 = scmp.eq.s32.totalorder %s10, 3
    %p140 = por %p138, %p139
    %p141 = scmp.ne.s32.totalorder %s133, %s136
    %p142 = scmp.eq.s32.totalorder %s10, 0
    %p143 = por %p141, %p142
    %p144 = scmp.ne.s32.totalorder %s133, %s136
    %p145 = scmp.eq.s32.totalorder %s15, 3
    %p146 = por %p144, %p145
    %p147 = scmp.ne.s32.totalorder %s136, %s137
    %p148 = scmp.eq.s32.totalorder %s15, 0
    %p149 = por %p147, %p148
    %p150 = scmp.ne.s32.totalorder %s136, %s137
    %p151 = scmp.eq.s32.totalorder %s16, 3
    %p152 = por %p150, %p151
    %p154 = scmp.ne.s32.totalorder %s137, %s153
    %p155 = scmp.eq.s32.totalorder %s16, 0
    %p156 = por %p154, %p155
    %s157 = ssub.s32 %s17, %s36
    %s158 = ssub.s32 %s18, %s32
    %s159 = sor.u32 %s157, %s158
    %p160 = scmp.eq.s32.totalorder %s159, 0
    %s162 = sadd.s32 %s161, 1
    %s163 = scalar_select %p160, %s161, %s162
    %p166 = pneg %p160
    %p167 = scmp.eq.s32.totalorder %s10, 3
    %p168 = por %p166, %p167
    %p169 = scmp.ne.s32.totalorder %s161, %s164
    %p170 = scmp.eq.s32.totalorder %s10, 0
    %p171 = por %p169, %p170
    %p172 = scmp.ne.s32.totalorder %s161, %s164
    %p173 = scmp.eq.s32.totalorder %s15, 3
    %p174 = por %p172, %p173
    %p175 = scmp.ne.s32.totalorder %s164, %s165
    %p176 = scmp.eq.s32.totalorder %s15, 0
    %p177 = por %p175, %p176
    %p178 = scmp.ne.s32.totalorder %s164, %s165
    %p179 = scmp.eq.s32.totalorder %s16, 3
    %p180 = por %p178, %p179
    %p182 = scmp.ne.s32.totalorder %s165, %s181
    %p183 = scmp.eq.s32.totalorder %s16, 0
    %p184 = por %p182, %p183
    %p185 = scmp.le.s32.totalorder 1, %s10
    %p186 = scmp.lt.s32.totalorder %s10, 5
    %p187 = pnand %p185, %p186
    %p188 = pneg %p187
    // Predicated region
    $region9: #{mybert_forward.15} parent=5 // pred_check
      _
    $region10: #{mybert_forward.15} parent=5 // pred_check_branch
      %190 = sbr.rel (%p187) target = $region12
    $region11: #{mybert_forward.15} parent=5 // pred_region
      %s191 = ssub.s32 %s10, 1
    $region12: #{mybert_forward.15} parent=5 // pred_fallthru
      _
    %p192 = scmp.lt.s32.totalorder %s10, 4
    // Predicated region
    $region13: #{mybert_forward.15} parent=5 // pred_check
      %p193 = pneg %p192
    $region14: #{mybert_forward.15} parent=5 // pred_check_branch
      %195 = sbr.rel (%p193) target = $region16
    $region15: #{mybert_forward.15} parent=5 // pred_region
      // Predicated region
      $region17: #{mybert_forward.15} parent=15 // pred_check
        %p196 = pneg %p51
      $region18: #{mybert_forward.15} parent=15 // pred_check_branch
        %198 = sbr.rel (%p196) target = $region20
      $region19: #{mybert_forward.15} parent=15 // pred_region
        %p199 = scmp.lt.s32.totalorder %s17, 1
        %s200 = scalar_select %p199, %s17, 1
        %p201 = scmp.lt.s32.totalorder %s18, 5
        %s202 = scalar_select %p201, %s18, 5
        %s203 = smul.addr %s200, 6
        %s204 = sadd.s32 %s202, %s203
        %s205 = smul.addr %s204, 4
        %s206 = scalar_lea.vmem %s0, %s205
      $region20: #{mybert_forward.15} parent=15 // pred_fallthru
        _
      // Predicated region
      $region21: #{mybert_forward.15} parent=15 // pred_check
        %p207 = pneg %p83
      $region22: #{mybert_forward.15} parent=15 // pred_check_branch
        %209 = sbr.rel (%p207) target = $region24
      $region23: #{mybert_forward.15} parent=15 // pred_region
        %s210 = sadd.s32 %s18, 2
        %p211 = scmp.lt.s32.totalorder %s17, 1
        %s212 = scalar_select %p211, %s17, 1
        %p213 = scmp.lt.s32.totalorder %s19, 0
        %s214 = scalar_select %p213, %s19, 0
        %p215 = scmp.lt.s32.totalorder %s210, 5
        %s216 = scalar_select %p215, %s210, 5
        %s217 = smul.addr %s214, 6
        %s218 = sadd.s32 %s216, %s217
        %s219 = smul.addr %s212, 6
        %s220 = sadd.s32 %s218, %s219
        %s221 = smul.addr %s220, 4
        %s222 = scalar_lea.vmem %s1, %s221
        %s223 = sadd.s32 %s18, 2
      $region24: #{mybert_forward.15} parent=15 // pred_fallthru
        _
      // Predicated region
      $region25: #{mybert_forward.15} parent=15 // pred_check
        %p224 = pneg %p115
      $region26: #{mybert_forward.15} parent=15 // pred_check_branch
        %226 = sbr.rel (%p224) target = $region28
      $region27: #{mybert_forward.15} parent=15 // pred_region
        %s227 = sadd.s32 %s18, 4
        %p228 = scmp.lt.s32.totalorder %s17, 1
        %s229 = scalar_select %p228, %s17, 1
        %p230 = scmp.lt.s32.totalorder %s19, 0
        %s231 = scalar_select %p230, %s19, 0
        %p232 = scmp.lt.s32.totalorder %s227, 5
        %s233 = scalar_select %p232, %s227, 5
        %s234 = smul.addr %s231, 6
        %s235 = sadd.s32 %s233, %s234
        %s236 = smul.addr %s229, 6
        %s237 = sadd.s32 %s235, %s236
        %s238 = smul.addr %s237, 4
        %s239 = scalar_lea.vmem %s2, %s238
        %s240 = sadd.s32 %s18, 4
      $region28: #{mybert_forward.15} parent=15 // pred_fallthru
        _
      // Predicated region
      $region29: #{mybert_forward.15} parent=15 // pred_check
        %p241 = pneg %p143
      $region30: #{mybert_forward.15} parent=15 // pred_check_branch
        %243 = sbr.rel (%p241) target = $region32
      $region31: #{mybert_forward.15} parent=15 // pred_region
        %p244 = scmp.lt.s32.totalorder %s17, 1
        %s245 = scalar_select %p244, %s17, 1
        %p246 = scmp.lt.s32.totalorder %s19, 0
        %s247 = scalar_select %p246, %s19, 0
        %s248 = sadd.s32 %s247, %s245
        %s249 = scalar_lea.vmem %s3, %s248
      $region32: #{mybert_forward.15} parent=15 // pred_fallthru
        _
    $region16: #{mybert_forward.15} parent=5 // pred_fallthru
      _
    %p250 = scmp.le.s32.totalorder 1, %s10
    %p251 = scmp.lt.s32.totalorder %s10, 5
    %p252 = pnand %p250, %p251
    %p253 = pneg %p252
    // Predicated region
    $region33: #{mybert_forward.15} parent=5 // pred_check
      _
    $region34: #{mybert_forward.15} parent=5 // pred_check_branch
      %255 = sbr.rel (%p252) target = $region36
    $region35: #{mybert_forward.15} parent=5 // pred_region
      %s256 = ssub.s32 %s10, 1
      %p257 = scmp.lt.s32.totalorder %s20, 1
      %s258 = scalar_select %p257, %s20, 1
      %p259 = scmp.lt.s32.totalorder %s21, 5
      %s260 = scalar_select %p259, %s21, 5
      %s261 = smul.addr %s258, 6
      %s262 = sadd.s32 %s260, %s261
      %s263 = smul.addr %s262, 4
      %s264 = scalar_lea.vmem %s0, %s263
      %p265 = pneg %p57
      %p266 = pneg %p54
      %s267 = sadd.s32 %s21, 2
      %p268 = scmp.lt.s32.totalorder %s20, 1
      %s269 = scalar_select %p268, %s20, 1
      %p270 = scmp.lt.s32.totalorder %s22, 0
      %s271 = scalar_select %p270, %s22, 0
      %p272 = scmp.lt.s32.totalorder %s267, 5
      %s273 = scalar_select %p272, %s267, 5
      %s274 = smul.addr %s271, 6
      %s275 = sadd.s32 %s273, %s274
      %s276 = smul.addr %s269, 6
      %s277 = sadd.s32 %s275, %s276
      %s278 = smul.addr %s277, 4
      %s279 = scalar_lea.vmem %s1, %s278
      %p280 = pneg %p89
      %p281 = pneg %p86
      %s282 = sadd.s32 %s21, 4
      %p283 = scmp.lt.s32.totalorder %s20, 1
      %s284 = scalar_select %p283, %s20, 1
      %p285 = scmp.lt.s32.totalorder %s22, 0
      %s286 = scalar_select %p285, %s22, 0
      %p287 = scmp.lt.s32.totalorder %s282, 5
      %s288 = scalar_select %p287, %s282, 5
      %s289 = smul.addr %s286, 6
      %s290 = sadd.s32 %s288, %s289
      %s291 = smul.addr %s284, 6
      %s292 = sadd.s32 %s290, %s291
      %s293 = smul.addr %s292, 4
      %s294 = scalar_lea.vmem %s2, %s293
      %p295 = pneg %p121
      %p296 = pneg %p118
      %p297 = scmp.lt.s32.totalorder %s20, 1
      %s298 = scalar_select %p297, %s20, 1
      %p299 = scmp.lt.s32.totalorder %s22, 0
      %s300 = scalar_select %p299, %s22, 0
      %s301 = sadd.s32 %s300, %s298
      %s302 = scalar_lea.vmem %s3, %s301
      %p303 = pneg %p149
      %p304 = pneg %p146
      %p305 = pneg %p177
      %p306 = pneg %p174
      %p307 = scmp.lt.s32.totalorder %s20, 1
      %s308 = scalar_select %p307, %s20, 1
      %p309 = scmp.lt.s32.totalorder %s21, 1
      %s310 = scalar_select %p309, %s21, 1
      %s311 = smul.addr %s308, 2
      %s312 = sadd.s32 %s310, %s311
      %s313 = smul.addr %s312, 4
      %s314 = scalar_lea.vmem %s4, %s313
      %p315 = scmp.lt.s32.totalorder %s20, 1
      %s316 = scalar_select %p315, %s20, 1
      %p317 = scmp.lt.s32.totalorder %s21, 5
      %s318 = scalar_select %p317, %s21, 5
      %s319 = smul.addr %s316, 6
      %s320 = sadd.s32 %s318, %s319
      %s321 = smul.addr %s320, 4
      %s322 = scalar_lea.vmem %s0, %s321
      %s323 = sadd.s32 %s21, 2
      %p324 = scmp.lt.s32.totalorder %s20, 1
      %s325 = scalar_select %p324, %s20, 1
      %p326 = scmp.lt.s32.totalorder %s22, 0
      %s327 = scalar_select %p326, %s22, 0
      %p328 = scmp.lt.s32.totalorder %s323, 5
      %s329 = scalar_select %p328, %s323, 5
      %s330 = smul.addr %s327, 6
      %s331 = sadd.s32 %s329, %s330
      %s332 = smul.addr %s325, 6
      %s333 = sadd.s32 %s331, %s332
      %s334 = smul.addr %s333, 4
      %s335 = scalar_lea.vmem %s1, %s334
      %s336 = sadd.s32 %s21, 2
      %s337 = sadd.s32 %s21, 4
      %p338 = scmp.lt.s32.totalorder %s20, 1
      %s339 = scalar_select %p338, %s20, 1
      %p340 = scmp.lt.s32.totalorder %s22, 0
      %s341 = scalar_select %p340, %s22, 0
      %p342 = scmp.lt.s32.totalorder %s337, 5
      %s343 = scalar_select %p342, %s337, 5
      %s344 = smul.addr %s341, 6
      %s345 = sadd.s32 %s343, %s344
      %s346 = smul.addr %s339, 6
      %s347 = sadd.s32 %s345, %s346
      %s348 = smul.addr %s347, 4
      %s349 = scalar_lea.vmem %s2, %s348
      %s350 = sadd.s32 %s21, 4
      %p351 = scmp.lt.s32.totalorder %s20, 1
      %s352 = scalar_select %p351, %s20, 1
      %p353 = scmp.lt.s32.totalorder %s22, 0
      %s354 = scalar_select %p353, %s22, 0
      %s355 = sadd.s32 %s354, %s352
      %s356 = scalar_lea.vmem %s3, %s355
      %p357 = scmp.lt.s32.totalorder %s20, 1
      %s358 = scalar_select %p357, %s20, 1
      %p359 = scmp.lt.s32.totalorder %s21, 1
      %s360 = scalar_select %p359, %s21, 1
      %s361 = smul.addr %s358, 2
      %s362 = sadd.s32 %s360, %s361
      %s363 = smul.addr %s362, 4
      %s364 = scalar_lea.vmem %s4, %s363
      %p367 = scmp.eq.s32.totalorder %s22, 0
      // Predicated region
      $region37: #{mybert_forward.15} parent=35 // pred_check
        %p368 = pneg %p367
      $region38: #{mybert_forward.15} parent=35 // pred_check_branch
        %370 = sbr.rel (%p368) target = $region40
      $region39: #{mybert_forward.15} parent=35 // pred_region
        %vm371 = vcmask 7168
        %372 = vst.msk [vmem:[#allocation2] sm:$0xff] %vm371, -inf
        %373 = vst.msk [vmem:[#allocation3] sm:$0xff] %vm371, 0.0
        %374 = vst [vmem:[#allocation4] sm:$0xff] 0.0
      $region40: #{mybert_forward.15} parent=35 // pred_fallthru
        _
      %v375 = vld [vmem:[%s356] sm:$0x1]
      %v376 = vld [vmem:[%s322] sm:$0xf]
      %v377 = vmul.bf16 %v376, 1035287989
      %v378 = vld [vmem:[%s335] sm:$0xf]
      %v379 = vld [vmem:[%s349] sm:$0xf]
      %v381 = vlaneseq
      %v382 = vshrl.u32 %v381, 7
      %v383 = vsub.s32 0, %v382
      %v384 = vrot.slane %v375, %v383
      %386 = vmatprep.subr.bf16.mxu0 0
      %387 = vmatpush1.bf16.xpose.msra.mxu0 0
      %388 = vmatprep.subr.bf16.mxu0 0
      %389 = vmatpush1.bf16.xpose.msra.mxu0 0
      %390 = vmatprep.subr.bf16.mxu0 0
      %391 = vmatpush1.bf16.xpose.msra.mxu0 0
      %392 = vmatprep.subr.bf16.mxu0 0
      %393 = vmatpush1.bf16.xpose.msra.mxu0 0
      %394 = vmatprep.subr.bf16.mxu0 0
      %395 = vmatpush1.bf16.xpose.msra.mxu0 0
      %396 = vmatprep.subr.bf16.mxu0 0
      %397 = vmatpush1.bf16.xpose.msra.mxu0 0
      %398 = vmatprep.subr.bf16.mxu0 0
      %399 = vmatpush1.bf16.xpose.msra.mxu0 0
      %400 = vmatprep.subr.bf16.mxu0 0
      %401 = vmatpush1.bf16.xpose.msra.mxu0 %v378
      %402 = vmatprep.subr.bf16.mxu0 0
      %403 = vmatpush2.bf16.xpose.msra.mxu0 0
      %404 = vmatprep.subr.bf16.mxu0 0
      %405 = vmatpush2.bf16.xpose.msra.mxu0 0
      %406 = vmatprep.subr.bf16.mxu0 0
      %407 = vmatpush2.bf16.xpose.msra.mxu0 0
      %408 = vmatprep.subr.bf16.mxu0 0
      %409 = vmatpush2.bf16.xpose.msra.mxu0 0
      %410 = vmatprep.subr.bf16.mxu0 0
      %411 = vmatpush2.bf16.xpose.msra.mxu0 0
      %412 = vmatprep.subr.bf16.mxu0 0
      %413 = vmatpush2.bf16.xpose.msra.mxu0 0
      %414 = vmatprep.subr.bf16.mxu0 0
      %415 = vmatpush2.bf16.xpose.msra.mxu0 0
      %416 = vmatprep.subr.bf16.mxu0 0
      %417 = vmatpush2.bf16.xpose.msra.mxu0 0
      %418 = vmatprep.mubr.bf16.mxu0 0
      %419 = vmatmul.mubr.bf16.gmra.mxu0 %v377
      %v420 = vpop.f32.mrf.mxu0
      %v421 = vadd.f32 %v384, %v420
      %v422 = vpop.f32.mrf.mxu0
      %v423 = vpop.f32.mrf.mxu0
      %v424 = vpop.f32.mrf.mxu0
      %425 = vdwg.mxu0
      %v426 = vld [vmem:[#allocation2] sm:$0xff]
      %vm427 = vcmask 64512
      %v428 = vsel %vm427, %v421, -inf
      %429 = vmax.xlane.f32.xlu0 %v428
      %v430 = vpop.xlane.xlu0 %429
      %v431 = vmax.f32 %v426, %v430
      %v432 = vsub.f32 %v426, %v431
      %v433 = vmul.f32 %v432, 1.442695
      %v434 = vpow.pop %v433
      %436 = vset.pattern.permute.xlu0 0
      %437 = vperm.xlu0 %436, %v431
      %v438 = vpop.permute.xlu0 %437
      %v440 = vsub.f32 %v421, %v438
      %v441 = vmul.f32 %v440, 1.442695
      %v442 = vpow.pop %v441
      %v443 = vld [vmem:[#allocation3] sm:$0xff]
      %v444 = vmul.f32 %v434, %v443
      %v445 = vsel %vm427, %v442, 0.0
      %446 = vadd.xlane.f32.xlu0 %v445
      %v447 = vpop.xlane.xlu0 %446
      %v448 = vadd.f32 %v444, %v447
      %vm449 = vcmask 7168
      %450 = vst.msk [vmem:[#allocation3] sm:$0xff] %vm449, %v448
      %v451 = vld [vmem:[#allocation4] sm:$0xff]
      %453 = vset.pattern.permute.xlu0 0
      %454 = vperm.xlu0 %453, %v434
      %v455 = vpop.permute.xlu0 %454
      %v457 = vmul.f32 %v455, %v451
      %v458 = vpack.c.bf16 %v442, %v442
      %v460 = vsel %vm427, %v458, 0
      %vm462 = vcmask 1043456
      %v464 = vsel %vm462, %v379, 0
      %466 = vmatprep.subr.bf16.mxu0 0
      %467 = vmatpush1.bf16.msra.mxu0 0
      %468 = vmatprep.subr.bf16.mxu0 0
      %469 = vmatpush1.bf16.msra.mxu0 0
      %470 = vmatprep.subr.bf16.mxu0 0
      %471 = vmatpush1.bf16.msra.mxu0 0
      %472 = vmatprep.subr.bf16.mxu0 0
      %473 = vmatpush1.bf16.msra.mxu0 0
      %474 = vmatprep.subr.bf16.mxu0 0
      %475 = vmatpush1.bf16.msra.mxu0 0
      %476 = vmatprep.subr.bf16.mxu0 0
      %477 = vmatpush1.bf16.msra.mxu0 0
      %478 = vmatprep.subr.bf16.mxu0 0
      %479 = vmatpush1.bf16.msra.mxu0 0
      %480 = vmatprep.subr.bf16.mxu0 0
      %481 = vmatpush1.bf16.msra.mxu0 %v464
      %482 = vmatprep.subr.bf16.mxu0 0
      %483 = vmatpush2.bf16.msra.mxu0 0
      %484 = vmatprep.subr.bf16.mxu0 0
      %485 = vmatpush2.bf16.msra.mxu0 0
      %486 = vmatprep.subr.bf16.mxu0 0
      %487 = vmatpush2.bf16.msra.mxu0 0
      %488 = vmatprep.subr.bf16.mxu0 0
      %489 = vmatpush2.bf16.msra.mxu0 0
      %490 = vmatprep.subr.bf16.mxu0 0
      %491 = vmatpush2.bf16.msra.mxu0 0
      %492 = vmatprep.subr.bf16.mxu0 0
      %493 = vmatpush2.bf16.msra.mxu0 0
      %494 = vmatprep.subr.bf16.mxu0 0
      %495 = vmatpush2.bf16.msra.mxu0 0
      %496 = vmatprep.subr.bf16.mxu0 0
      %497 = vmatpush2.bf16.msra.mxu0 0
      %498 = vmatprep.mubr.bf16.mxu0 0
      %499 = vmatmul.mubr.bf16.gmra.mxu0 %v460
      %v500 = vpop.f32.mrf.mxu0
      %v501 = vadd.f32 0.0, %v500
      %v502 = vpop.f32.mrf.mxu0
      %v503 = vpop.f32.mrf.mxu0
      %v504 = vpop.f32.mrf.mxu0
      %505 = vdwg.mxu0
      %v506 = vadd.f32 %v457, %v501
      %507 = vst [vmem:[#allocation4] sm:$0xff] %v506
      %508 = vst.msk [vmem:[#allocation2] sm:$0xff] %vm449, %v431
      // Predicated region
      $region41: #{mybert_forward.15} parent=35 // pred_check
        %p509 = pneg %p367
      $region42: #{mybert_forward.15} parent=35 // pred_check_branch
        %511 = sbr.rel (%p509) target = $region44
      $region43: #{mybert_forward.15} parent=35 // pred_region
        %v512 = vld [vmem:[#allocation4] sm:$0xff]
        %v513 = vld [vmem:[#allocation3] sm:$0xff]
        %v514 = vrcp.pop %v513
        %516 = vset.pattern.permute.xlu0 0
        %517 = vperm.xlu0 %516, %v514
        %v518 = vpop.permute.xlu0 %517
        %v520 = vmul.f32 %v512, %v518
        %v521 = vpack.c.bf16 %v520, %v520
        %522 = vst [vmem:[%s364] sm:$0xf] %v521
      $region44: #{mybert_forward.15} parent=35 // pred_fallthru
        _
      %p523 = scmp.lt.s32.totalorder %s20, 1
      %s524 = scalar_select %p523, %s20, 1
      %p525 = scmp.lt.s32.totalorder %s21, 1
      %s526 = scalar_select %p525, %s21, 1
      %s527 = smul.addr %s524, 2
      %s528 = sadd.s32 %s526, %s527
      %s529 = smul.addr %s528, 4
      %s530 = scalar_lea.vmem %s4, %s529
      // Predicated region
      $region45: #{mybert_forward.15} parent=35 // pred_check
        %p531 = pneg %p174
      $region46: #{mybert_forward.15} parent=35 // pred_check_branch
        %533 = sbr.rel (%p531) target = $region48
      $region47: #{mybert_forward.15} parent=35 // pred_region
        _
      $region48: #{mybert_forward.15} parent=35 // pred_fallthru
        _
    $region36: #{mybert_forward.15} parent=5 // pred_fallthru
      _
    %p534 = scmp.le.s32.totalorder 2, %s10
    // Predicated region
    $region49: #{mybert_forward.15} parent=5 // pred_check
      %p535 = pneg %p534
    $region50: #{mybert_forward.15} parent=5 // pred_check_branch
      %537 = sbr.rel (%p535) target = $region52
    $region51: #{mybert_forward.15} parent=5 // pred_region
      %s538 = ssub.s32 %s10, 2
      // Predicated region
      $region53: #{mybert_forward.15} parent=51 // pred_check
        %p539 = pneg %p180
      $region54: #{mybert_forward.15} parent=51 // pred_check_branch
        %541 = sbr.rel (%p539) target = $region56
      $region55: #{mybert_forward.15} parent=51 // pred_region
        %p542 = scmp.lt.s32.totalorder %s23, 1
        %s543 = scalar_select %p542, %s23, 1
        %p544 = scmp.lt.s32.totalorder %s24, 1
        %s545 = scalar_select %p544, %s24, 1
        %s546 = smul.addr %s543, 2
        %s547 = sadd.s32 %s545, %s546
        %s548 = smul.addr %s547, 4
        %s549 = scalar_lea.vmem %s4, %s548
      $region56: #{mybert_forward.15} parent=51 // pred_fallthru
        _
    $region52: #{mybert_forward.15} parent=5 // pred_fallthru
      _
  $region6: #{mybert_forward.15} parent=0 // loop_footer
    %s14 = sadd.s32 1, %s10
  $region7: #{mybert_forward.15} parent=0 // loop_footer_branch
    %9 = sbr.rel target = $region3
  $region8: #{mybert_forward.15} parent=0 // loop_exit
    _

// kernel: mybert_forward.13
$region0: #{mybert_forward.13}
  #allocation0 [shape = 'u32[]', space=smem, size = 0x4, offset = 0x4, fixed_abs, tag = 'smem constant byte address 0x4 - core index']
  #allocation1 [shape = 'u32[144,128]{1,0:T(1,128)}', space=vmem, size = 0x12000, scoped, tag = 'internal scratch']
  #allocation2 [shape = 'f32[16,256]{1,0:T(8,128)}', space=vmem, size = 0x4000, scoped, tag = 'scratch operand']
  %s0 = inlined_call_operand.vmem [shape: bf16[16,128], index: 0, kind: input, shape index: {}]
  %s1 = inlined_call_operand.vmem [shape: bf16[128,256], index: 1, kind: input, shape index: {}]
  %s2 = inlined_call_operand.vmem [shape: bf16[1,256], index: 2, kind: input, shape index: {}]
  %s3 = inlined_call_operand.vmem [shape: bf16[16,256], index: 3, kind: output, shape index: {}]
  %s4 = sld [smem:[#allocation0]]
  $region30: #{mybert_forward.13} parent=0
    _
  %s6 = ssub.s32 1, %s4
  %s7 = scalar_select 0, %s6, %s4
  // Predicated region
  $region2: #{mybert_forward.13} parent=0 // pred_check
    _
  $region3: #{mybert_forward.13} parent=0 // pred_check_branch
    %9 = sbr.rel (0) target = $region5
  $region4: #{mybert_forward.13} parent=0 // pred_region
    _
  $region5: #{mybert_forward.13} parent=0 // pred_fallthru
    _
  // Predicated region
  $region6: #{mybert_forward.13} parent=0 // pred_check
    _
  $region7: #{mybert_forward.13} parent=0 // pred_check_branch
    %11 = sbr.rel (0) target = $region9
  $region8: #{mybert_forward.13} parent=0 // pred_region
    _
  $region9: #{mybert_forward.13} parent=0 // pred_fallthru
    _
  // Predicated region
  $region10: #{mybert_forward.13} parent=0 // pred_check
    _
  $region11: #{mybert_forward.13} parent=0 // pred_check_branch
    %13 = sbr.rel (0) target = $region13
  $region12: #{mybert_forward.13} parent=0 // pred_region
    _
  $region13: #{mybert_forward.13} parent=0 // pred_fallthru
    _
  %p15 = scmp.eq.s32.totalorder 0, 0
  // Predicated region
  $region14: #{mybert_forward.13} parent=0 // pred_check
    %p16 = pneg %p15
  $region15: #{mybert_forward.13} parent=0 // pred_check_branch
    %18 = sbr.rel (%p16) target = $region17
  $region16: #{mybert_forward.13} parent=0 // pred_region
    %19 = vst [vmem:[#allocation2] sm:$0xff] 0.0
    %20 = vst [vmem:[#allocation2 + $0x8] sm:$0xff] 0.0
    %21 = vst [vmem:[#allocation2 + $0x10] sm:$0xff] 0.0
    %22 = vst [vmem:[#allocation2 + $0x18] sm:$0xff] 0.0
  $region17: #{mybert_forward.13} parent=0 // pred_fallthru
    _
  %v23 = vld [vmem:[#allocation2] sm:$0xff]
  %v24 = vld [vmem:[#allocation2 + $0x8] sm:$0xff]
  %v25 = vld [vmem:[#allocation2 + $0x10] sm:$0xff]
  %v26 = vld [vmem:[#allocation2 + $0x18] sm:$0xff]
  %v27 = vld [vmem:[%s0] sm:$0xf]
  %v28 = vld [vmem:[%s0 + $0x4] sm:$0xf]
  %v29 = vld [vmem:[%s1] sm:$0xff]
  %v30 = vld [vmem:[%s1 + $0x8] sm:$0xff]
  %v31 = vld [vmem:[%s1 + $0x10] sm:$0xff]
  %v32 = vld [vmem:[%s1 + $0x18] sm:$0xff]
  %v33 = vld [vmem:[%s1 + $0x20] sm:$0xff]
  %v34 = vld [vmem:[%s1 + $0x28] sm:$0xff]
  %v35 = vld [vmem:[%s1 + $0x30] sm:$0xff]
  %v36 = vld [vmem:[%s1 + $0x38] sm:$0xff]
  %v37 = vld [vmem:[%s1 + $0x40] sm:$0xff]
  %v38 = vld [vmem:[%s1 + $0x48] sm:$0xff]
  %v39 = vld [vmem:[%s1 + $0x50] sm:$0xff]
  %v40 = vld [vmem:[%s1 + $0x58] sm:$0xff]
  %v41 = vld [vmem:[%s1 + $0x60] sm:$0xff]
  %v42 = vld [vmem:[%s1 + $0x68] sm:$0xff]
  %v43 = vld [vmem:[%s1 + $0x70] sm:$0xff]
  %v44 = vld [vmem:[%s1 + $0x78] sm:$0xff]
  %v47 = vunpack.c.l.b16 %v27
  %v48 = vunpack.c.l.b16 %v28
  %v49 = vpack.c.b16 %v48, %v47
  %v67 = vunpack.c.l.b16 %v29
  %v68 = vunpack.c.h.b16 %v29
  %v69 = vunpack.c.l.b16 %v30
  %v70 = vunpack.c.h.b16 %v30
  %v71 = vunpack.c.l.b16 %v31
  %v72 = vunpack.c.h.b16 %v31
  %v73 = vunpack.c.l.b16 %v32
  %v74 = vunpack.c.h.b16 %v32
  %v75 = vunpack.c.l.b16 %v33
  %v76 = vunpack.c.h.b16 %v33
  %v77 = vunpack.c.l.b16 %v34
  %v78 = vunpack.c.h.b16 %v34
  %v79 = vunpack.c.l.b16 %v35
  %v80 = vunpack.c.h.b16 %v35
  %v81 = vunpack.c.l.b16 %v36
  %v82 = vunpack.c.h.b16 %v36
  %v83 = vunpack.c.l.b16 %v37
  %v84 = vunpack.c.h.b16 %v37
  %v85 = vunpack.c.l.b16 %v38
  %v86 = vunpack.c.h.b16 %v38
  %v87 = vunpack.c.l.b16 %v39
  %v88 = vunpack.c.h.b16 %v39
  %v89 = vunpack.c.l.b16 %v40
  %v90 = vunpack.c.h.b16 %v40
  %v91 = vunpack.c.l.b16 %v41
  %v92 = vunpack.c.h.b16 %v41
  %v93 = vunpack.c.l.b16 %v42
  %v94 = vunpack.c.h.b16 %v42
  %v95 = vunpack.c.l.b16 %v43
  %v96 = vunpack.c.h.b16 %v43
  %v97 = vunpack.c.l.b16 %v44
  %v98 = vunpack.c.h.b16 %v44
  %v99 = vpack.c.b16 %v69, %v67
  %v100 = vpack.c.b16 %v70, %v68
  %v101 = vpack.c.b16 %v73, %v71
  %v102 = vpack.c.b16 %v74, %v72
  %v103 = vpack.c.b16 %v77, %v75
  %v104 = vpack.c.b16 %v78, %v76
  %v105 = vpack.c.b16 %v81, %v79
  %v106 = vpack.c.b16 %v82, %v80
  %v107 = vpack.c.b16 %v85, %v83
  %v108 = vpack.c.b16 %v86, %v84
  %v109 = vpack.c.b16 %v89, %v87
  %v110 = vpack.c.b16 %v90, %v88
  %v111 = vpack.c.b16 %v93, %v91
  %v112 = vpack.c.b16 %v94, %v92
  %v113 = vpack.c.b16 %v97, %v95
  %v114 = vpack.c.b16 %v98, %v96
  %131 = vmatprep.subr.bf16.mxu0 %v114
  %132 = vmatpush1.bf16.msra.mxu0 %v113
  %133 = vmatprep.subr.bf16.mxu0 %v112
  %134 = vmatpush1.bf16.msra.mxu0 %v111
  %135 = vmatprep.subr.bf16.mxu0 %v110
  %136 = vmatpush1.bf16.msra.mxu0 %v109
  %137 = vmatprep.subr.bf16.mxu0 %v108
  %138 = vmatpush1.bf16.msra.mxu0 %v107
  %139 = vmatprep.subr.bf16.mxu0 %v106
  %140 = vmatpush1.bf16.msra.mxu0 %v105
  %141 = vmatprep.subr.bf16.mxu0 %v104
  %142 = vmatpush1.bf16.msra.mxu0 %v103
  %143 = vmatprep.subr.bf16.mxu0 %v102
  %144 = vmatpush1.bf16.msra.mxu0 %v101
  %145 = vmatprep.subr.bf16.mxu0 %v100
  %146 = vmatpush1.bf16.msra.mxu0 %v99
  %147 = vmatprep.subr.bf16.mxu0 0
  %148 = vmatpush2.bf16.msra.mxu0 0
  %149 = vmatprep.subr.bf16.mxu0 0
  %150 = vmatpush2.bf16.msra.mxu0 0
  %151 = vmatprep.subr.bf16.mxu0 0
  %152 = vmatpush2.bf16.msra.mxu0 0
  %153 = vmatprep.subr.bf16.mxu0 0
  %154 = vmatpush2.bf16.msra.mxu0 0
  %155 = vmatprep.subr.bf16.mxu0 0
  %156 = vmatpush2.bf16.msra.mxu0 0
  %157 = vmatprep.subr.bf16.mxu0 0
  %158 = vmatpush2.bf16.msra.mxu0 0
  %159 = vmatprep.subr.bf16.mxu0 0
  %160 = vmatpush2.bf16.msra.mxu0 0
  %161 = vmatprep.subr.bf16.mxu0 0
  %162 = vmatpush2.bf16.msra.mxu0 0
  %163 = vmatprep.mubr.bf16.mxu0 0
  %164 = vmatmul.mubr.bf16.gmra.mxu0 %v49
  %v165 = vpop.f32.mrf.mxu0
  %v166 = vadd.f32 0.0, %v165
  %v167 = vpop.f32.mrf.mxu0
  %v168 = vadd.f32 0.0, %v167
  %v169 = vpop.f32.mrf.mxu0
  %v170 = vadd.f32 0.0, %v169
  %v171 = vpop.f32.mrf.mxu0
  %v172 = vadd.f32 0.0, %v171
  %173 = vdwg.mxu0
  %v174 = vadd.f32 %v23, %v166
  %v175 = vadd.f32 %v24, %v168
  %v176 = vadd.f32 %v25, %v170
  %v177 = vadd.f32 %v26, %v172
  %178 = vst [vmem:[#allocation2] sm:$0xff] %v174
  %179 = vst [vmem:[#allocation2 + $0x8] sm:$0xff] %v175
  %180 = vst [vmem:[#allocation2 + $0x10] sm:$0xff] %v176
  %181 = vst [vmem:[#allocation2 + $0x18] sm:$0xff] %v177
  // Predicated region
  $region18: #{mybert_forward.13} parent=0 // pred_check
    %p182 = pneg %p15
  $region19: #{mybert_forward.13} parent=0 // pred_check_branch
    %184 = sbr.rel (%p182) target = $region21
  $region20: #{mybert_forward.13} parent=0 // pred_region
    %v185 = vld [vmem:[#allocation2] sm:$0xff]
    %v186 = vld [vmem:[#allocation2 + $0x8] sm:$0xff]
    %v187 = vld [vmem:[#allocation2 + $0x10] sm:$0xff]
    %v188 = vld [vmem:[#allocation2 + $0x18] sm:$0xff]
    %v189 = vld [vmem:[%s2] sm:$0x3]
    %v190 = vunpack.c.l.bf16 %v189
    %v192 = vlaneseq
    %v193 = vshrl.u32 %v192, 7
    %v194 = vsub.s32 0, %v193
    %v195 = vrot.slane %v190, %v194
    %v196 = vlaneseq
    %v197 = vshrl.u32 %v196, 7
    %v198 = vsub.s32 2, %v197
    %v199 = vrot.slane %v190, %v198
    %v202 = vlaneseq
    %v203 = vshrl.u32 %v202, 7
    %v204 = vsub.s32 0, %v203
    %v205 = vrot.slane %v195, %v204
    %v206 = vlaneseq
    %v207 = vshrl.u32 %v206, 7
    %v208 = vsub.s32 0, %v207
    %v209 = vrot.slane %v199, %v208
    %v210 = vadd.f32 %v185, %v205
    %v211 = vadd.f32 %v186, %v209
    %v212 = vadd.f32 %v187, %v205
    %v213 = vadd.f32 %v188, %v209
    %v214 = vpack.c.bf16 %v212, %v210
    %v215 = vpack.c.bf16 %v213, %v211
    %v218 = vunpack.c.l.b16 %v214
    %v219 = vunpack.c.l.b16 %v215
    %v220 = vunpack.c.h.b16 %v214
    %v221 = vunpack.c.h.b16 %v215
    %v222 = vpack.c.b16 %v219, %v218
    %v223 = vpack.c.b16 %v221, %v220
    %226 = vst [vmem:[%s3] sm:$0xff] %v222
    %227 = vst [vmem:[%s3 + $0x8] sm:$0xff] %v223
  $region21: #{mybert_forward.13} parent=0 // pred_fallthru
    _
  // Predicated region
  $region22: #{mybert_forward.13} parent=0 // pred_check
    _
  $region23: #{mybert_forward.13} parent=0 // pred_check_branch
    %229 = sbr.rel (0) target = $region25
  $region24: #{mybert_forward.13} parent=0 // pred_region
    _
  $region25: #{mybert_forward.13} parent=0 // pred_fallthru
    _
  // Predicated region
  $region26: #{mybert_forward.13} parent=0 // pred_check
    _
  $region27: #{mybert_forward.13} parent=0 // pred_check_branch
    %231 = sbr.rel (0) target = $region29
  $region28: #{mybert_forward.13} parent=0 // pred_region
    _
  $region29: #{mybert_forward.13} parent=0 // pred_fallthru
    _

// kernel: mybert_forward.14
$region0: #{mybert_forward.14}
  #allocation0 [shape = 'u32[]', space=smem, size = 0x4, offset = 0x4, fixed_abs, tag = 'smem constant byte address 0x4 - core index']
  #allocation1 [shape = 'u32[144,128]{1,0:T(1,128)}', space=vmem, size = 0x12000, scoped, tag = 'internal scratch']
  #allocation2 [shape = 'f32[16,384]{1,0:T(8,128)}', space=vmem, size = 0x6000, scoped, tag = 'scratch operand']
  %s0 = inlined_call_operand.vmem [shape: bf16[16,256], index: 0, kind: input, shape index: {}]
  %s1 = inlined_call_operand.hbm [shape: bf16[256,768], index: 1, kind: input, shape index: {}]
  %s2 = inlined_call_operand.vmem [shape: bf16[1,768], index: 2, kind: input, shape index: {}]
  %s3 = inlined_call_operand.vmem [shape: bf16[16,768], index: 3, kind: output, shape index: {}]
  %s4 = sld [smem:[#allocation0]]
  $region79: #{mybert_forward.14} parent=0
    _
  %s6 = ssub.s32 1, %s4
  %s7 = scalar_select 0, %s6, %s4
  $region1: #{mybert_forward.14} parent=0
    #allocation3 [shape = 'u8[393216]{0}', space=vmem, size = 0x60000, scoped, tag = 'input window, operand 1']
    #allocation4 [shape = 's32[2]{0}', space=sflag, size = 0x8, scoped, tag = 'scoped memory for mybert_forward.14']
    #allocation5 [shape = 'u8[24576]{0}', space=vmem, size = 0x6000, scoped, tag = 'output window, operand 0']
    %8 = vsyncpa [#allocation4], 0
    %s9 = scalar_lea.sflag [#allocation4], 1
    %10 = vsyncpa %s9, 0
    loop: start=0, step=1, limit=4
    $region2: #{mybert_forward.14} parent=1 // loop_pre_header
      _
    $region3: #{mybert_forward.14} parent=1 // loop_header
      %s12 = sphi 0, %s16
      %p13 = scmp.ge.s32.totalorder %s12, 4
      %s19 = sphi 0, %s38
      %s20 = sphi 0, %s34
      %s21 = sphi 0, %s30
      %s22 = sphi 0, %s19
      %s23 = sphi 0, %s20
      %s24 = sphi 0, %s21
      %s25 = sphi 0, %s22
      %s26 = sphi 0, %s23
      %s27 = sphi 0, %s24
      %s43 = sphi 0, %s45
      %s46 = sphi 0, %s43
      %s47 = sphi 0, %s46
      %s63 = sphi 0, %s47
      %s71 = sphi 0, %s73
      %s74 = sphi 0, %s71
      %s75 = sphi 0, %s74
      %s91 = sphi 0, %s75
      %s97 = sphi 0, %s99
      %s100 = sphi 0, %s97
      %s101 = sphi 0, %s100
      %s117 = sphi 0, %s101
      %s125 = sphi 0, %s127
      %s128 = sphi 0, %s125
      %s129 = sphi 0, %s128
      %s145 = sphi 0, %s129
    $region4: #{mybert_forward.14} parent=1 // loop_header_branch
      %15 = sbr.rel (%p13) target = $region8
    $region5: #{mybert_forward.14} parent=1 // loop_body
      %s17 = ssub.s32 %s12, 1
      %s18 = ssub.s32 %s12, 2
      %s28 = sadd.s32 1, %s21
      %p29 = scmp.ge.s32.totalorder %s28, 1
      %s30 = scalar_select %p29, 0, %s28
      %s31 = sadd.s32 1, %s20
      %s32 = scalar_select %p29, %s31, %s20
      %p33 = scmp.ge.s32.totalorder %s32, 2
      %s34 = scalar_select %p33, 0, %s32
      %s35 = sadd.s32 1, %s19
      %s36 = scalar_select %p33, %s35, %s19
      %p37 = scmp.ge.s32.totalorder %s36, 1
      %s38 = scalar_select %p37, 0, %s36
      %s39 = ssub.s32 %s19, %s38
      %s40 = ssub.s32 %s21, %s30
      %s41 = sor.u32 %s39, %s40
      %p42 = scmp.eq.s32.totalorder %s41, 0
      %s44 = sadd.s32 %s43, 1
      %s45 = scalar_select %p42, %s43, %s44
      %p48 = pneg %p42
      %p49 = scmp.eq.s32.totalorder %s12, 1
      %p50 = por %p48, %p49
      %p51 = scmp.ne.s32.totalorder %s43, %s46
      %p52 = scmp.eq.s32.totalorder %s12, 0
      %p53 = por %p51, %p52
      %p54 = scmp.ne.s32.totalorder %s43, %s46
      %p55 = scmp.eq.s32.totalorder %s17, 1
      %p56 = por %p54, %p55
      %p57 = scmp.ne.s32.totalorder %s46, %s47
      %p58 = scmp.eq.s32.totalorder %s17, 0
      %p59 = por %p57, %p58
      %p60 = scmp.ne.s32.totalorder %s46, %s47
      %p61 = scmp.eq.s32.totalorder %s18, 1
      %p62 = por %p60, %p61
      %p64 = scmp.ne.s32.totalorder %s47, %s63
      %p65 = scmp.eq.s32.totalorder %s18, 0
      %p66 = por %p64, %p65
      %s67 = ssub.s32 %s21, %s30
      %s68 = ssub.s32 %s20, %s34
      %s69 = sor.u32 %s67, %s68
      %p70 = scmp.eq.s32.totalorder %s69, 0
      %s72 = sadd.s32 %s71, 1
      %s73 = scalar_select %p70, %s71, %s72
      %p76 = pneg %p70
      %p77 = scmp.eq.s32.totalorder %s12, 1
      %p78 = por %p76, %p77
      %p79 = scmp.ne.s32.totalorder %s71, %s74
      %p80 = scmp.eq.s32.totalorder %s12, 0
      %p81 = por %p79, %p80
      %p82 = scmp.ne.s32.totalorder %s71, %s74
      %p83 = scmp.eq.s32.totalorder %s17, 1
      %p84 = por %p82, %p83
      %p85 = scmp.ne.s32.totalorder %s74, %s75
      %p86 = scmp.eq.s32.totalorder %s17, 0
      %p87 = por %p85, %p86
      %p88 = scmp.ne.s32.totalorder %s74, %s75
      %p89 = scmp.eq.s32.totalorder %s18, 1
      %p90 = por %p88, %p89
      %p92 = scmp.ne.s32.totalorder %s75, %s91
      %p93 = scmp.eq.s32.totalorder %s18, 0
      %p94 = por %p92, %p93
      %s95 = ssub.s32 %s20, %s34
      %p96 = scmp.eq.s32.totalorder %s95, 0
      %s98 = sadd.s32 %s97, 1
      %s99 = scalar_select %p96, %s97, %s98
      %p102 = pneg %p96
      %p103 = scmp.eq.s32.totalorder %s12, 1
      %p104 = por %p102, %p103
      %p105 = scmp.ne.s32.totalorder %s97, %s100
      %p106 = scmp.eq.s32.totalorder %s12, 0
      %p107 = por %p105, %p106
      %p108 = scmp.ne.s32.totalorder %s97, %s100
      %p109 = scmp.eq.s32.totalorder %s17, 1
      %p110 = por %p108, %p109
      %p111 = scmp.ne.s32.totalorder %s100, %s101
      %p112 = scmp.eq.s32.totalorder %s17, 0
      %p113 = por %p111, %p112
      %p114 = scmp.ne.s32.totalorder %s100, %s101
      %p115 = scmp.eq.s32.totalorder %s18, 1
      %p116 = por %p114, %p115
      %p118 = scmp.ne.s32.totalorder %s101, %s117
      %p119 = scmp.eq.s32.totalorder %s18, 0
      %p120 = por %p118, %p119
      %s121 = ssub.s32 %s19, %s38
      %s122 = ssub.s32 %s20, %s34
      %s123 = sor.u32 %s121, %s122
      %p124 = scmp.eq.s32.totalorder %s123, 0
      %s126 = sadd.s32 %s125, 1
      %s127 = scalar_select %p124, %s125, %s126
      %p130 = pneg %p124
      %p131 = scmp.eq.s32.totalorder %s12, 1
      %p132 = por %p130, %p131
      %p133 = scmp.ne.s32.totalorder %s125, %s128
      %p134 = scmp.eq.s32.totalorder %s12, 0
      %p135 = por %p133, %p134
      %p136 = scmp.ne.s32.totalorder %s125, %s128
      %p137 = scmp.eq.s32.totalorder %s17, 1
      %p138 = por %p136, %p137
      %p139 = scmp.ne.s32.totalorder %s128, %s129
      %p140 = scmp.eq.s32.totalorder %s17, 0
      %p141 = por %p139, %p140
      %p142 = scmp.ne.s32.totalorder %s128, %s129
      %p143 = scmp.eq.s32.totalorder %s18, 1
      %p144 = por %p142, %p143
      %p146 = scmp.ne.s32.totalorder %s129, %s145
      %p147 = scmp.eq.s32.totalorder %s18, 0
      %p148 = por %p146, %p147
      %p149 = scmp.le.s32.totalorder 1, %s12
      %p150 = scmp.lt.s32.totalorder %s12, 3
      %p151 = pnand %p149, %p150
      %p152 = pneg %p151
      // Predicated region
      $region9: #{mybert_forward.14} parent=5 // pred_check
        _
      $region10: #{mybert_forward.14} parent=5 // pred_check_branch
        %154 = sbr.rel (%p151) target = $region12
      $region11: #{mybert_forward.14} parent=5 // pred_region
        %s155 = ssub.s32 %s12, 1
        // Predicated region
        $region13: #{mybert_forward.14} parent=11 // pred_check
          %p156 = pneg %p59
        $region14: #{mybert_forward.14} parent=11 // pred_check_branch
          %158 = sbr.rel (%p156) target = $region16
        $region15: #{mybert_forward.14} parent=11 // pred_region
          %s159 = smul.u32 2, %s22
          %s160 = smul.u32 2, %s24
          %p161 = scmp.lt.s32.totalorder %s159, 1
          %s162 = scalar_select %p161, %s159, 1
          %p163 = scmp.lt.s32.totalorder %s160, 1
          %s164 = scalar_select %p163, %s160, 1
          %s165 = smul.addr %s162, 2
          %s166 = sadd.s32 %s164, %s165
          %s167 = smul.addr %s166, 4
          %s168 = scalar_lea.vmem %s0, %s167
          %s169 = smul.u32 2, %s22
          %s170 = smul.u32 2, %s24
        $region16: #{mybert_forward.14} parent=11 // pred_fallthru
          _
      $region12: #{mybert_forward.14} parent=5 // pred_fallthru
        _
      %p171 = scmp.lt.s32.totalorder %s12, 2
      // Predicated region
      $region17: #{mybert_forward.14} parent=5 // pred_check
        %p172 = pneg %p171
      $region18: #{mybert_forward.14} parent=5 // pred_check_branch
        %174 = sbr.rel (%p172) target = $region20
      $region19: #{mybert_forward.14} parent=5 // pred_region
        // Predicated region
        $region21: #{mybert_forward.14} parent=19 // pred_check
          %p175 = pneg %p81
        $region22: #{mybert_forward.14} parent=19 // pred_check_branch
          %177 = sbr.rel (%p175) target = $region24
        $region23: #{mybert_forward.14} parent=19 // pred_region
          %s178 = sand.u32 %s71, 1
          %s179 = scalar_lea.sflag [#allocation4], %s178
          %s180 = sand.u32 %s71, 1
          %s181 = smul.addr %s180, 384
          %s182 = scalar_lea.vmem [#allocation3], %s181
          %s183 = smul.u32 32, %s21
          %s184 = smul.u32 3, %s20
          %s186 = ssub.s32 6144, 6144
          %187 = vsyncadd %s179, %s186
          %s188 = smul.addr %s183, 6
          %s189 = sadd.s32 %s184, %s188
          %s190 = smul.addr %s189, 64
          %s191 = scalar_lea.hbm %s1, %s190
          %s192 = sshll.u32 %s182, 4
          %s193 = int_to_ptr.vmem [resolvable:$true] %s192
          %198 = dma.hbm_to_vmem [thread:$0]  %s191, 6144, %s193, %s179, 384, 192, 12
        $region24: #{mybert_forward.14} parent=19 // pred_fallthru
          _
        // Predicated region
        $region25: #{mybert_forward.14} parent=19 // pred_check
          %p199 = pneg %p107
        $region26: #{mybert_forward.14} parent=19 // pred_check_branch
          %201 = sbr.rel (%p199) target = $region28
        $region27: #{mybert_forward.14} parent=19 // pred_region
          %s202 = smul.u32 3, %s20
          %p203 = scmp.lt.s32.totalorder %s202, 5
          %s204 = scalar_select %p203, %s202, 5
          %s205 = scalar_lea.vmem %s2, %s204
          %s206 = smul.u32 3, %s20
        $region28: #{mybert_forward.14} parent=19 // pred_fallthru
          _
      $region20: #{mybert_forward.14} parent=5 // pred_fallthru
        _
      %p207 = scmp.le.s32.totalorder 1, %s12
      %p208 = scmp.lt.s32.totalorder %s12, 3
      %p209 = pnand %p207, %p208
      %p210 = pneg %p209
      // Predicated region
      $region29: #{mybert_forward.14} parent=5 // pred_check
        _
      $region30: #{mybert_forward.14} parent=5 // pred_check_branch
        %212 = sbr.rel (%p209) target = $region32
      $region31: #{mybert_forward.14} parent=5 // pred_region
        %s213 = ssub.s32 %s12, 1
        %s214 = sand.u32 %s74, 1
        %s215 = scalar_lea.sflag [#allocation4], %s214
        %s216 = sand.u32 %s74, 1
        %s217 = smul.addr %s216, 384
        %s218 = scalar_lea.vmem [#allocation3], %s217
        // Predicated region
        $region33: #{mybert_forward.14} parent=31 // pred_check
          %p219 = pneg %p87
        $region34: #{mybert_forward.14} parent=31 // pred_check_branch
          %221 = sbr.rel (%p219) target = $region36
        $region35: #{mybert_forward.14} parent=31 // pred_region
          %222 = dma.done %s215, 6144
        $region36: #{mybert_forward.14} parent=31 // pred_fallthru
          _
        %s223 = smul.u32 2, %s22
        %s224 = smul.u32 2, %s24
        %p225 = scmp.lt.s32.totalorder %s223, 1
        %s226 = scalar_select %p225, %s223, 1
        %p227 = scmp.lt.s32.totalorder %s224, 1
        %s228 = scalar_select %p227, %s224, 1
        %s229 = smul.addr %s226, 2
        %s230 = sadd.s32 %s228, %s229
        %s231 = smul.addr %s230, 4
        %s232 = scalar_lea.vmem %s0, %s231
        %p233 = pneg %p59
        %p234 = pneg %p56
        %s235 = sand.u32 %s74, 1
        %s236 = scalar_lea.sflag [#allocation4], %s235
        %s237 = sand.u32 %s74, 1
        %s238 = smul.addr %s237, 384
        %s239 = scalar_lea.vmem [#allocation3], %s238
        %p240 = pneg %p87
        %p241 = pneg %p84
        %s242 = smul.u32 3, %s23
        %p243 = scmp.lt.s32.totalorder %s242, 5
        %s244 = scalar_select %p243, %s242, 5
        %s245 = scalar_lea.vmem %s2, %s244
        %p246 = pneg %p113
        %p247 = pneg %p110
        %p248 = pneg %p141
        %p249 = pneg %p138
        %s250 = sand.u32 %s128, 1
        %s251 = sand.u32 %s128, 1
        %s252 = smul.addr %s251, 24
        %s253 = scalar_lea.vmem [#allocation5], %s252
        %s254 = smul.u32 2, %s22
        %s255 = smul.u32 2, %s24
        %p256 = scmp.lt.s32.totalorder %s254, 1
        %s257 = scalar_select %p256, %s254, 1
        %p258 = scmp.lt.s32.totalorder %s255, 1
        %s259 = scalar_select %p258, %s255, 1
        %s260 = smul.addr %s257, 2
        %s261 = sadd.s32 %s259, %s260
        %s262 = smul.addr %s261, 4
        %s263 = scalar_lea.vmem %s0, %s262
        %s264 = smul.u32 2, %s22
        %s265 = smul.u32 2, %s24
        %s266 = smul.u32 32, %s24
        %s267 = smul.u32 3, %s23
        %s268 = smul.u32 3, %s23
        %p269 = scmp.lt.s32.totalorder %s268, 5
        %s270 = scalar_select %p269, %s268, 5
        %s271 = scalar_lea.vmem %s2, %s270
        %s272 = smul.u32 3, %s23
        %s273 = smul.u32 2, %s22
        %s274 = smul.u32 3, %s23
        %p276 = scmp.eq.s32.totalorder %s24, 0
        // Predicated region
        $region37: #{mybert_forward.14} parent=31 // pred_check
          %p277 = pneg %p276
        $region38: #{mybert_forward.14} parent=31 // pred_check_branch
          %279 = sbr.rel (%p277) target = $region40
        $region39: #{mybert_forward.14} parent=31 // pred_region
          %280 = vst [vmem:[#allocation2] sm:$0xff] 0.0
          %281 = vst [vmem:[#allocation2 + $0x8] sm:$0xff] 0.0
          %282 = vst [vmem:[#allocation2 + $0x10] sm:$0xff] 0.0
          %283 = vst [vmem:[#allocation2 + $0x18] sm:$0xff] 0.0
          %284 = vst [vmem:[#allocation2 + $0x20] sm:$0xff] 0.0
          %285 = vst [vmem:[#allocation2 + $0x28] sm:$0xff] 0.0
        $region40: #{mybert_forward.14} parent=31 // pred_fallthru
          _
        %v286 = vld [vmem:[#allocation2] sm:$0xff]
        %v287 = vld [vmem:[#allocation2 + $0x8] sm:$0xff]
        %v288 = vld [vmem:[#allocation2 + $0x10] sm:$0xff]
        %v289 = vld [vmem:[#allocation2 + $0x18] sm:$0xff]
        %v290 = vld [vmem:[#allocation2 + $0x20] sm:$0xff]
        %v291 = vld [vmem:[#allocation2 + $0x28] sm:$0xff]
        %v292 = vld [vmem:[%s263] sm:$0xff]
        %v293 = vld [vmem:[%s263 + $0x8] sm:$0xff]
        %v294 = vld [vmem:[%s218] sm:$0xff]
        %v295 = vld [vmem:[%s218 + $0x8] sm:$0xf]
        %v296 = vld [vmem:[%s218 + $0xc] sm:$0xff]
        %v297 = vld [vmem:[%s218 + $0x14] sm:$0xf]
        %v298 = vld [vmem:[%s218 + $0x18] sm:$0xff]
        %v299 = vld [vmem:[%s218 + $0x20] sm:$0xf]
        %v300 = vld [vmem:[%s218 + $0x24] sm:$0xff]
        %v301 = vld [vmem:[%s218 + $0x2c] sm:$0xf]
        %v302 = vld [vmem:[%s218 + $0x30] sm:$0xff]
        %v303 = vld [vmem:[%s218 + $0x38] sm:$0xf]
        %v304 = vld [vmem:[%s218 + $0x3c] sm:$0xff]
        %v305 = vld [vmem:[%s218 + $0x44] sm:$0xf]
        %v306 = vld [vmem:[%s218 + $0x48] sm:$0xff]
        %v307 = vld [vmem:[%s218 + $0x50] sm:$0xf]
        %v308 = vld [vmem:[%s218 + $0x54] sm:$0xff]
        %v309 = vld [vmem:[%s218 + $0x5c] sm:$0xf]
        %v310 = vld [vmem:[%s218 + $0x60] sm:$0xff]
        %v311 = vld [vmem:[%s218 + $0x68] sm:$0xf]
        %v312 = vld [vmem:[%s218 + $0x6c] sm:$0xff]
        %v313 = vld [vmem:[%s218 + $0x74] sm:$0xf]
        %v314 = vld [vmem:[%s218 + $0x78] sm:$0xff]
        %v315 = vld [vmem:[%s218 + $0x80] sm:$0xf]
        %v316 = vld [vmem:[%s218 + $0x84] sm:$0xff]
        %v317 = vld [vmem:[%s218 + $0x8c] sm:$0xf]
        %v318 = vld [vmem:[%s218 + $0x90] sm:$0xff]
        %v319 = vld [vmem:[%s218 + $0x98] sm:$0xf]
        %v320 = vld [vmem:[%s218 + $0x9c] sm:$0xff]
        %v321 = vld [vmem:[%s218 + $0xa4] sm:$0xf]
        %v322 = vld [vmem:[%s218 + $0xa8] sm:$0xff]
        %v323 = vld [vmem:[%s218 + $0xb0] sm:$0xf]
        %v324 = vld [vmem:[%s218 + $0xb4] sm:$0xff]
        %v325 = vld [vmem:[%s218 + $0xbc] sm:$0xf]
        %v326 = vld [vmem:[%s218 + $0xc0] sm:$0xff]
        %v327 = vld [vmem:[%s218 + $0xc8] sm:$0xf]
        %v328 = vld [vmem:[%s218 + $0xcc] sm:$0xff]
        %v329 = vld [vmem:[%s218 + $0xd4] sm:$0xf]
        %v330 = vld [vmem:[%s218 + $0xd8] sm:$0xff]
        %v331 = vld [vmem:[%s218 + $0xe0] sm:$0xf]
        %v332 = vld [vmem:[%s218 + $0xe4] sm:$0xff]
        %v333 = vld [vmem:[%s218 + $0xec] sm:$0xf]
        %v334 = vld [vmem:[%s218 + $0xf0] sm:$0xff]
        %v335 = vld [vmem:[%s218 + $0xf8] sm:$0xf]
        %v336 = vld [vmem:[%s218 + $0xfc] sm:$0xff]
        %v337 = vld [vmem:[%s218 + $0x104] sm:$0xf]
        %v338 = vld [vmem:[%s218 + $0x108] sm:$0xff]
        %v339 = vld [vmem:[%s218 + $0x110] sm:$0xf]
        %v340 = vld [vmem:[%s218 + $0x114] sm:$0xff]
        %v341 = vld [vmem:[%s218 + $0x11c] sm:$0xf]
        %v342 = vld [vmem:[%s218 + $0x120] sm:$0xff]
        %v343 = vld [vmem:[%s218 + $0x128] sm:$0xf]
        %v344 = vld [vmem:[%s218 + $0x12c] sm:$0xff]
        %v345 = vld [vmem:[%s218 + $0x134] sm:$0xf]
        %v346 = vld [vmem:[%s218 + $0x138] sm:$0xff]
        %v347 = vld [vmem:[%s218 + $0x140] sm:$0xf]
        %v348 = vld [vmem:[%s218 + $0x144] sm:$0xff]
        %v349 = vld [vmem:[%s218 + $0x14c] sm:$0xf]
        %v350 = vld [vmem:[%s218 + $0x150] sm:$0xff]
        %v351 = vld [vmem:[%s218 + $0x158] sm:$0xf]
        %v352 = vld [vmem:[%s218 + $0x15c] sm:$0xff]
        %v353 = vld [vmem:[%s218 + $0x164] sm:$0xf]
        %v354 = vld [vmem:[%s218 + $0x168] sm:$0xff]
        %v355 = vld [vmem:[%s218 + $0x170] sm:$0xf]
        %v356 = vld [vmem:[%s218 + $0x174] sm:$0xff]
        %v357 = vld [vmem:[%s218 + $0x17c] sm:$0xf]
        %v360 = vunpack.c.l.b16 %v292
        %v361 = vunpack.c.h.b16 %v292
        %v362 = vunpack.c.l.b16 %v293
        %v363 = vunpack.c.h.b16 %v293
        %v364 = vpack.c.b16 %v362, %v360
        %v365 = vpack.c.b16 %v363, %v361
        %v432 = vunpack.c.l.b16 %v294
        %v433 = vunpack.c.h.b16 %v294
        %v434 = vunpack.c.l.b16 %v295
        %v435 = vunpack.c.l.b16 %v296
        %v436 = vunpack.c.h.b16 %v296
        %v437 = vunpack.c.l.b16 %v297
        %v438 = vunpack.c.l.b16 %v298
        %v439 = vunpack.c.h.b16 %v298
        %v440 = vunpack.c.l.b16 %v299
        %v441 = vunpack.c.l.b16 %v300
        %v442 = vunpack.c.h.b16 %v300
        %v443 = vunpack.c.l.b16 %v301
        %v444 = vunpack.c.l.b16 %v302
        %v445 = vunpack.c.h.b16 %v302
        %v446 = vunpack.c.l.b16 %v303
        %v447 = vunpack.c.l.b16 %v304
        %v448 = vunpack.c.h.b16 %v304
        %v449 = vunpack.c.l.b16 %v305
        %v450 = vunpack.c.l.b16 %v306
        %v451 = vunpack.c.h.b16 %v306
        %v452 = vunpack.c.l.b16 %v307
        %v453 = vunpack.c.l.b16 %v308
        %v454 = vunpack.c.h.b16 %v308
        %v455 = vunpack.c.l.b16 %v309
        %v456 = vunpack.c.l.b16 %v310
        %v457 = vunpack.c.h.b16 %v310
        %v458 = vunpack.c.l.b16 %v311
        %v459 = vunpack.c.l.b16 %v312
        %v460 = vunpack.c.h.b16 %v312
        %v461 = vunpack.c.l.b16 %v313
        %v462 = vunpack.c.l.b16 %v314
        %v463 = vunpack.c.h.b16 %v314
        %v464 = vunpack.c.l.b16 %v315
        %v465 = vunpack.c.l.b16 %v316
        %v466 = vunpack.c.h.b16 %v316
        %v467 = vunpack.c.l.b16 %v317
        %v468 = vunpack.c.l.b16 %v318
        %v469 = vunpack.c.h.b16 %v318
        %v470 = vunpack.c.l.b16 %v319
        %v471 = vunpack.c.l.b16 %v320
        %v472 = vunpack.c.h.b16 %v320
        %v473 = vunpack.c.l.b16 %v321
        %v474 = vunpack.c.l.b16 %v322
        %v475 = vunpack.c.h.b16 %v322
        %v476 = vunpack.c.l.b16 %v323
        %v477 = vunpack.c.l.b16 %v324
        %v478 = vunpack.c.h.b16 %v324
        %v479 = vunpack.c.l.b16 %v325
        %v480 = vunpack.c.l.b16 %v326
        %v481 = vunpack.c.h.b16 %v326
        %v482 = vunpack.c.l.b16 %v327
        %v483 = vunpack.c.l.b16 %v328
        %v484 = vunpack.c.h.b16 %v328
        %v485 = vunpack.c.l.b16 %v329
        %v486 = vunpack.c.l.b16 %v330
        %v487 = vunpack.c.h.b16 %v330
        %v488 = vunpack.c.l.b16 %v331
        %v489 = vunpack.c.l.b16 %v332
        %v490 = vunpack.c.h.b16 %v332
        %v491 = vunpack.c.l.b16 %v333
        %v492 = vunpack.c.l.b16 %v334
        %v493 = vunpack.c.h.b16 %v334
        %v494 = vunpack.c.l.b16 %v335
        %v495 = vunpack.c.l.b16 %v336
        %v496 = vunpack.c.h.b16 %v336
        %v497 = vunpack.c.l.b16 %v337
        %v498 = vunpack.c.l.b16 %v338
        %v499 = vunpack.c.h.b16 %v338
        %v500 = vunpack.c.l.b16 %v339
        %v501 = vunpack.c.l.b16 %v340
        %v502 = vunpack.c.h.b16 %v340
        %v503 = vunpack.c.l.b16 %v341
        %v504 = vunpack.c.l.b16 %v342
        %v505 = vunpack.c.h.b16 %v342
        %v506 = vunpack.c.l.b16 %v343
        %v507 = vunpack.c.l.b16 %v344
        %v508 = vunpack.c.h.b16 %v344
        %v509 = vunpack.c.l.b16 %v345
        %v510 = vunpack.c.l.b16 %v346
        %v511 = vunpack.c.h.b16 %v346
        %v512 = vunpack.c.l.b16 %v347
        %v513 = vunpack.c.l.b16 %v348
        %v514 = vunpack.c.h.b16 %v348
        %v515 = vunpack.c.l.b16 %v349
        %v516 = vunpack.c.l.b16 %v350
        %v517 = vunpack.c.h.b16 %v350
        %v518 = vunpack.c.l.b16 %v351
        %v519 = vunpack.c.l.b16 %v352
        %v520 = vunpack.c.h.b16 %v352
        %v521 = vunpack.c.l.b16 %v353
        %v522 = vunpack.c.l.b16 %v354
        %v523 = vunpack.c.h.b16 %v354
        %v524 = vunpack.c.l.b16 %v355
        %v525 = vunpack.c.l.b16 %v356
        %v526 = vunpack.c.h.b16 %v356
        %v527 = vunpack.c.l.b16 %v357
        %v528 = vpack.c.b16 %v435, %v432
        %v529 = vpack.c.b16 %v436, %v433
        %v530 = vpack.c.b16 %v437, %v434
        %v531 = vpack.c.b16 %v441, %v438
        %v532 = vpack.c.b16 %v442, %v439
        %v533 = vpack.c.b16 %v443, %v440
        %v534 = vpack.c.b16 %v447, %v444
        %v535 = vpack.c.b16 %v448, %v445
        %v536 = vpack.c.b16 %v449, %v446
        %v537 = vpack.c.b16 %v453, %v450
        %v538 = vpack.c.b16 %v454, %v451
        %v539 = vpack.c.b16 %v455, %v452
        %v540 = vpack.c.b16 %v459, %v456
        %v541 = vpack.c.b16 %v460, %v457
        %v542 = vpack.c.b16 %v461, %v458
        %v543 = vpack.c.b16 %v465, %v462
        %v544 = vpack.c.b16 %v466, %v463
        %v545 = vpack.c.b16 %v467, %v464
        %v546 = vpack.c.b16 %v471, %v468
        %v547 = vpack.c.b16 %v472, %v469
        %v548 = vpack.c.b16 %v473, %v470
        %v549 = vpack.c.b16 %v477, %v474
        %v550 = vpack.c.b16 %v478, %v475
        %v551 = vpack.c.b16 %v479, %v476
        %v552 = vpack.c.b16 %v483, %v480
        %v553 = vpack.c.b16 %v484, %v481
        %v554 = vpack.c.b16 %v485, %v482
        %v555 = vpack.c.b16 %v489, %v486
        %v556 = vpack.c.b16 %v490, %v487
        %v557 = vpack.c.b16 %v491, %v488
        %v558 = vpack.c.b16 %v495, %v492
        %v559 = vpack.c.b16 %v496, %v493
        %v560 = vpack.c.b16 %v497, %v494
        %v561 = vpack.c.b16 %v501, %v498
        %v562 = vpack.c.b16 %v502, %v499
        %v563 = vpack.c.b16 %v503, %v500
        %v564 = vpack.c.b16 %v507, %v504
        %v565 = vpack.c.b16 %v508, %v505
        %v566 = vpack.c.b16 %v509, %v506
        %v567 = vpack.c.b16 %v513, %v510
        %v568 = vpack.c.b16 %v514, %v511
        %v569 = vpack.c.b16 %v515, %v512
        %v570 = vpack.c.b16 %v519, %v516
        %v571 = vpack.c.b16 %v520, %v517
        %v572 = vpack.c.b16 %v521, %v518
        %v573 = vpack.c.b16 %v525, %v522
        %v574 = vpack.c.b16 %v526, %v523
        %v575 = vpack.c.b16 %v527, %v524
        %624 = vmatprep.subr.bf16.mxu0 %v550
        %625 = vmatpush1.bf16.msra.mxu0 %v549
        %626 = vmatprep.subr.bf16.mxu0 %v547
        %627 = vmatpush1.bf16.msra.mxu0 %v546
        %628 = vmatprep.subr.bf16.mxu0 %v544
        %629 = vmatpush1.bf16.msra.mxu0 %v543
        %630 = vmatprep.subr.bf16.mxu0 %v541
        %631 = vmatpush1.bf16.msra.mxu0 %v540
        %632 = vmatprep.subr.bf16.mxu0 %v538
        %633 = vmatpush1.bf16.msra.mxu0 %v537
        %634 = vmatprep.subr.bf16.mxu0 %v535
        %635 = vmatpush1.bf16.msra.mxu0 %v534
        %636 = vmatprep.subr.bf16.mxu0 %v532
        %637 = vmatpush1.bf16.msra.mxu0 %v531
        %638 = vmatprep.subr.bf16.mxu0 %v529
        %639 = vmatpush1.bf16.msra.mxu0 %v528
        %640 = vmatprep.subr.bf16.mxu0 %v574
        %641 = vmatpush2.bf16.msra.mxu0 %v573
        %642 = vmatprep.subr.bf16.mxu0 %v571
        %643 = vmatpush2.bf16.msra.mxu0 %v570
        %644 = vmatprep.subr.bf16.mxu0 %v568
        %645 = vmatpush2.bf16.msra.mxu0 %v567
        %646 = vmatprep.subr.bf16.mxu0 %v565
        %647 = vmatpush2.bf16.msra.mxu0 %v564
        %648 = vmatprep.subr.bf16.mxu0 %v562
        %649 = vmatpush2.bf16.msra.mxu0 %v561
        %650 = vmatprep.subr.bf16.mxu0 %v559
        %651 = vmatpush2.bf16.msra.mxu0 %v558
        %652 = vmatprep.subr.bf16.mxu0 %v556
        %653 = vmatpush2.bf16.msra.mxu0 %v555
        %654 = vmatprep.subr.bf16.mxu0 %v553
        %655 = vmatpush2.bf16.msra.mxu0 %v552
        %656 = vmatprep.mubr.bf16.mxu0 %v365
        %657 = vmatmul.mubr.bf16.gmra.mxu0 %v364
        %v658 = vpop.f32.mrf.mxu0
        %v659 = vadd.f32 0.0, %v658
        %v660 = vpop.f32.mrf.mxu0
        %v661 = vadd.f32 0.0, %v660
        %v662 = vpop.f32.mrf.mxu0
        %v663 = vadd.f32 0.0, %v662
        %v664 = vpop.f32.mrf.mxu0
        %v665 = vadd.f32 0.0, %v664
        %666 = vdwg.mxu0
        %667 = vmatprep.subr.bf16.mxu0 0
        %668 = vmatpush1.bf16.msra.mxu0 %v551
        %669 = vmatprep.subr.bf16.mxu0 0
        %670 = vmatpush1.bf16.msra.mxu0 %v548
        %671 = vmatprep.subr.bf16.mxu0 0
        %672 = vmatpush1.bf16.msra.mxu0 %v545
        %673 = vmatprep.subr.bf16.mxu0 0
        %674 = vmatpush1.bf16.msra.mxu0 %v542
        %675 = vmatprep.subr.bf16.mxu0 0
        %676 = vmatpush1.bf16.msra.mxu0 %v539
        %677 = vmatprep.subr.bf16.mxu0 0
        %678 = vmatpush1.bf16.msra.mxu0 %v536
        %679 = vmatprep.subr.bf16.mxu0 0
        %680 = vmatpush1.bf16.msra.mxu0 %v533
        %681 = vmatprep.subr.bf16.mxu0 0
        %682 = vmatpush1.bf16.msra.mxu0 %v530
        %683 = vmatprep.subr.bf16.mxu0 0
        %684 = vmatpush2.bf16.msra.mxu0 %v575
        %685 = vmatprep.subr.bf16.mxu0 0
        %686 = vmatpush2.bf16.msra.mxu0 %v572
        %687 = vmatprep.subr.bf16.mxu0 0
        %688 = vmatpush2.bf16.msra.mxu0 %v569
        %689 = vmatprep.subr.bf16.mxu0 0
        %690 = vmatpush2.bf16.msra.mxu0 %v566
        %691 = vmatprep.subr.bf16.mxu0 0
        %692 = vmatpush2.bf16.msra.mxu0 %v563
        %693 = vmatprep.subr.bf16.mxu0 0
        %694 = vmatpush2.bf16.msra.mxu0 %v560
        %695 = vmatprep.subr.bf16.mxu0 0
        %696 = vmatpush2.bf16.msra.mxu0 %v557
        %697 = vmatprep.subr.bf16.mxu0 0
        %698 = vmatpush2.bf16.msra.mxu0 %v554
        %699 = vmatprep.mubr.bf16.mxu0 %v365
        %700 = vmatmul.mubr.bf16.gmra.mxu0 %v364
        %v701 = vpop.f32.mrf.mxu0
        %v702 = vadd.f32 0.0, %v701
        %v703 = vpop.f32.mrf.mxu0
        %v704 = vpop.f32.mrf.mxu0
        %v705 = vadd.f32 0.0, %v704
        %v706 = vpop.f32.mrf.mxu0
        %707 = vdwg.mxu0
        %v708 = vadd.f32 %v286, %v659
        %v709 = vadd.f32 %v287, %v661
        %v710 = vadd.f32 %v288, %v702
        %v711 = vadd.f32 %v289, %v663
        %v712 = vadd.f32 %v290, %v665
        %v713 = vadd.f32 %v291, %v705
        %714 = vst [vmem:[#allocation2] sm:$0xff] %v708
        %715 = vst [vmem:[#allocation2 + $0x8] sm:$0xff] %v709
        %716 = vst [vmem:[#allocation2 + $0x10] sm:$0xff] %v710
        %717 = vst [vmem:[#allocation2 + $0x18] sm:$0xff] %v711
        %718 = vst [vmem:[#allocation2 + $0x20] sm:$0xff] %v712
        %719 = vst [vmem:[#allocation2 + $0x28] sm:$0xff] %v713
        // Predicated region
        $region41: #{mybert_forward.14} parent=31 // pred_check
          %p720 = pneg %p276
        $region42: #{mybert_forward.14} parent=31 // pred_check_branch
          %722 = sbr.rel (%p720) target = $region44
        $region43: #{mybert_forward.14} parent=31 // pred_region
          %v723 = vld [vmem:[#allocation2] sm:$0xff]
          %v724 = vld [vmem:[#allocation2 + $0x8] sm:$0xff]
          %v725 = vld [vmem:[#allocation2 + $0x10] sm:$0xff]
          %v726 = vld [vmem:[#allocation2 + $0x18] sm:$0xff]
          %v727 = vld [vmem:[#allocation2 + $0x20] sm:$0xff]
          %v728 = vld [vmem:[#allocation2 + $0x28] sm:$0xff]
          %v729 = vld [vmem:[%s271] sm:$0x7]
          %v730 = vunpack.c.l.bf16 %v729
          %v732 = vlaneseq
          %v733 = vshrl.u32 %v732, 7
          %v734 = vsub.s32 0, %v733
          %v735 = vrot.slane %v730, %v734
          %v736 = vlaneseq
          %v737 = vshrl.u32 %v736, 7
          %v738 = vsub.s32 2, %v737
          %v739 = vrot.slane %v730, %v738
          %v740 = vlaneseq
          %v741 = vshrl.u32 %v740, 7
          %v742 = vsub.s32 4, %v741
          %v743 = vrot.slane %v730, %v742
          %v747 = vlaneseq
          %v748 = vshrl.u32 %v747, 7
          %v749 = vsub.s32 0, %v748
          %v750 = vrot.slane %v735, %v749
          %v751 = vlaneseq
          %v752 = vshrl.u32 %v751, 7
          %v753 = vsub.s32 0, %v752
          %v754 = vrot.slane %v739, %v753
          %v755 = vlaneseq
          %v756 = vshrl.u32 %v755, 7
          %v757 = vsub.s32 0, %v756
          %v758 = vrot.slane %v743, %v757
          %v759 = vadd.f32 %v723, %v750
          %v760 = vadd.f32 %v724, %v754
          %v761 = vadd.f32 %v725, %v758
          %v762 = vadd.f32 %v726, %v750
          %v763 = vadd.f32 %v727, %v754
          %v764 = vadd.f32 %v728, %v758
          %v765 = vpack.c.bf16 %v762, %v759
          %v766 = vpack.c.bf16 %v763, %v760
          %v767 = vpack.c.bf16 %v764, %v761
          %v771 = vunpack.c.l.b16 %v765
          %v772 = vunpack.c.l.b16 %v766
          %v773 = vunpack.c.l.b16 %v767
          %v774 = vunpack.c.h.b16 %v765
          %v775 = vunpack.c.h.b16 %v766
          %v776 = vunpack.c.h.b16 %v767
          %v777 = vpack.c.b16 %v772, %v771
          %v778 = vpack.c.b16 %v773, %v773
          %v779 = vpack.c.b16 %v775, %v774
          %v780 = vpack.c.b16 %v776, %v776
          %785 = vst [vmem:[%s253] sm:$0xff] %v777
          %786 = vst [vmem:[%s253 + $0x8] sm:$0xf] %v778
          %787 = vst [vmem:[%s253 + $0xc] sm:$0xff] %v779
          %788 = vst [vmem:[%s253 + $0x14] sm:$0xf] %v780
        $region44: #{mybert_forward.14} parent=31 // pred_fallthru
          _
        %s789 = sand.u32 %s128, 1
        %s790 = sand.u32 %s128, 1
        %s791 = smul.addr %s790, 24
        %s792 = scalar_lea.vmem [#allocation5], %s791
        // Predicated region
        $region45: #{mybert_forward.14} parent=31 // pred_check
          %p793 = pneg %p138
        $region46: #{mybert_forward.14} parent=31 // pred_check_branch
          %795 = sbr.rel (%p793) target = $region48
        $region47: #{mybert_forward.14} parent=31 // pred_region
          %s796 = smul.u32 2, %s22
          %s797 = smul.u32 3, %s23
          %s798 = smul.addr %s796, 6
          %s799 = sadd.s32 %s797, %s798
          %s800 = smul.addr %s799, 4
          %s801 = scalar_lea.vmem %s3, %s800
          // Predicated region
          $region49: #{mybert_forward.14} parent=47 // pred_check
            _
          $region50: #{mybert_forward.14} parent=47 // pred_check_branch
            %803 = sbr.rel (0) target = $region52
          $region51: #{mybert_forward.14} parent=47 // pred_region
            // Predicated region
            $region53: #{mybert_forward.14} parent=51 // pred_check
              _
            $region54: #{mybert_forward.14} parent=51 // pred_check_branch
              %805 = sbr.rel (0) target = $region56
            $region55: #{mybert_forward.14} parent=51 // pred_region
              %s806 = scalar_lea.vmem %s792, 8 [#allocation5]
              %s807 = scalar_lea.vmem %s801, 8
              loop: start=0, step=1, limit=1
              $region57: #{mybert_forward.14} parent=55 // loop_pre_header
                _
              $region58: #{mybert_forward.14} parent=55 // loop_header
                %s809 = sphi 0, %s813
                %p810 = scmp.ge.s32.totalorder %s809, 1
                %s814 = sphi %s792, %s792
                %s815 = sphi %s801, %s801
              $region59: #{mybert_forward.14} parent=55 // loop_header_branch
                %812 = sbr.rel (%p810) target = $region63
              $region60: #{mybert_forward.14} parent=55 // loop_body
                %v816 = vld [vmem:[%s814] sm:$0xff]
                %817 = vst [vmem:[%s815] sm:$0xff] %v816
                %v818 = vld [vmem:[%s814 + $0xc] sm:$0xff]
                %819 = vst [vmem:[%s815 + $0x18] sm:$0xff] %v818
              $region61: #{mybert_forward.14} parent=55 // loop_footer
                %s813 = sadd.s32 1, %s809
              $region62: #{mybert_forward.14} parent=55 // loop_footer_branch
                %808 = sbr.rel target = $region58
              $region63: #{mybert_forward.14} parent=55 // loop_exit
                _
              %s821 = ssub.s32 16, 1
              loop: start=0, step=1, limit=1
              $region64: #{mybert_forward.14} parent=55 // loop_pre_header
                _
              $region65: #{mybert_forward.14} parent=55 // loop_header
                %s823 = sphi 0, %s827
                %p824 = scmp.ge.s32.totalorder %s823, 1
                %s828 = sphi %s806, %s806
                %s829 = sphi %s807, %s807
              $region66: #{mybert_forward.14} parent=55 // loop_header_branch
                %826 = sbr.rel (%p824) target = $region70
              $region67: #{mybert_forward.14} parent=55 // loop_body
                %v830 = vld [vmem:[%s828] sm:%s821]
                %831 = vst [vmem:[%s829] sm:%s821] %v830
                %v832 = vld [vmem:[%s828 + $0xc] sm:%s821]
                %833 = vst [vmem:[%s829 + $0x18] sm:%s821] %v832
              $region68: #{mybert_forward.14} parent=55 // loop_footer
                %s827 = sadd.s32 1, %s823
              $region69: #{mybert_forward.14} parent=55 // loop_footer_branch
                %822 = sbr.rel target = $region65
              $region70: #{mybert_forward.14} parent=55 // loop_exit
                _
            $region56: #{mybert_forward.14} parent=51 // pred_fallthru
              _
          $region52: #{mybert_forward.14} parent=47 // pred_fallthru
            _
          %834 = vnop
        $region48: #{mybert_forward.14} parent=31 // pred_fallthru
          _
      $region32: #{mybert_forward.14} parent=5 // pred_fallthru
        _
      %p835 = scmp.le.s32.totalorder 2, %s12
      // Predicated region
      $region71: #{mybert_forward.14} parent=5 // pred_check
        %p836 = pneg %p835
      $region72: #{mybert_forward.14} parent=5 // pred_check_branch
        %838 = sbr.rel (%p836) target = $region74
      $region73: #{mybert_forward.14} parent=5 // pred_region
        %s839 = ssub.s32 %s12, 2
        // Predicated region
        $region75: #{mybert_forward.14} parent=73 // pred_check
          %p840 = pneg %p144
        $region76: #{mybert_forward.14} parent=73 // pred_check_branch
          %842 = sbr.rel (%p840) target = $region78
        $region77: #{mybert_forward.14} parent=73 // pred_region
          %s843 = sand.u32 %s129, 1
          %s844 = sand.u32 %s129, 1
          %s845 = smul.addr %s844, 24
          %s846 = scalar_lea.vmem [#allocation5], %s845
        $region78: #{mybert_forward.14} parent=73 // pred_fallthru
          _
      $region74: #{mybert_forward.14} parent=5 // pred_fallthru
        _
    $region6: #{mybert_forward.14} parent=1 // loop_footer
      %s16 = sadd.s32 1, %s12
    $region7: #{mybert_forward.14} parent=1 // loop_footer_branch
      %11 = sbr.rel target = $region3
    $region8: #{mybert_forward.14} parent=1 // loop_exit
      _
    %847 = vsyncpa [#allocation4], 1
    %s848 = scalar_lea.sflag [#allocation4], 1
    %849 = vsyncpa %s848, 1

// kernel: mybert_forward.16
$region0: #{mybert_forward.16}
  #allocation0 [shape = 'u32[]', space=smem, size = 0x4, offset = 0x4, fixed_abs, tag = 'smem constant byte address 0x4 - core index']
  #allocation1 [shape = 'u32[144,128]{1,0:T(1,128)}', space=vmem, size = 0x12000, scoped, tag = 'internal scratch']
  #allocation2 [shape = 'f32[16,256]{1,0:T(8,128)}', space=vmem, size = 0x4000, scoped, tag = 'scratch operand']
  %s0 = inlined_call_operand.vmem [shape: bf16[16,256], index: 0, kind: input, shape index: {}]
  %s1 = inlined_call_operand.vmem [shape: bf16[256,256], index: 1, kind: input, shape index: {}]
  %s2 = inlined_call_operand.vmem [shape: bf16[1,256], index: 2, kind: input, shape index: {}]
  %s3 = inlined_call_operand.vmem [shape: bf16[16,256], index: 3, kind: input, shape index: {}]
  %s4 = inlined_call_operand.vmem [shape: bf16[1,256], index: 4, kind: input, shape index: {}]
  %s5 = inlined_call_operand.vmem [shape: bf16[1,256], index: 5, kind: input, shape index: {}]
  %s6 = inlined_call_operand.vmem [shape: bf16[16,256], index: 6, kind: output, shape index: {}]
  %s7 = sld [smem:[#allocation0]]
  $region42: #{mybert_forward.16} parent=0
    _
  %s9 = ssub.s32 1, %s7
  %s10 = scalar_select 0, %s9, %s7
  // Predicated region
  $region2: #{mybert_forward.16} parent=0 // pred_check
    _
  $region3: #{mybert_forward.16} parent=0 // pred_check_branch
    %12 = sbr.rel (0) target = $region5
  $region4: #{mybert_forward.16} parent=0 // pred_region
    _
  $region5: #{mybert_forward.16} parent=0 // pred_fallthru
    _
  // Predicated region
  $region6: #{mybert_forward.16} parent=0 // pred_check
    _
  $region7: #{mybert_forward.16} parent=0 // pred_check_branch
    %14 = sbr.rel (0) target = $region9
  $region8: #{mybert_forward.16} parent=0 // pred_region
    _
  $region9: #{mybert_forward.16} parent=0 // pred_fallthru
    _
  // Predicated region
  $region10: #{mybert_forward.16} parent=0 // pred_check
    _
  $region11: #{mybert_forward.16} parent=0 // pred_check_branch
    %16 = sbr.rel (0) target = $region13
  $region12: #{mybert_forward.16} parent=0 // pred_region
    _
  $region13: #{mybert_forward.16} parent=0 // pred_fallthru
    _
  // Predicated region
  $region14: #{mybert_forward.16} parent=0 // pred_check
    _
  $region15: #{mybert_forward.16} parent=0 // pred_check_branch
    %18 = sbr.rel (0) target = $region17
  $region16: #{mybert_forward.16} parent=0 // pred_region
    _
  $region17: #{mybert_forward.16} parent=0 // pred_fallthru
    _
  // Predicated region
  $region18: #{mybert_forward.16} parent=0 // pred_check
    _
  $region19: #{mybert_forward.16} parent=0 // pred_check_branch
    %20 = sbr.rel (0) target = $region21
  $region20: #{mybert_forward.16} parent=0 // pred_region
    _
  $region21: #{mybert_forward.16} parent=0 // pred_fallthru
    _
  // Predicated region
  $region22: #{mybert_forward.16} parent=0 // pred_check
    _
  $region23: #{mybert_forward.16} parent=0 // pred_check_branch
    %22 = sbr.rel (0) target = $region25
  $region24: #{mybert_forward.16} parent=0 // pred_region
    _
  $region25: #{mybert_forward.16} parent=0 // pred_fallthru
    _
  %p23 = scmp.eq.s32.totalorder 0, 0
  // Predicated region
  $region26: #{mybert_forward.16} parent=0 // pred_check
    %p24 = pneg %p23
  $region27: #{mybert_forward.16} parent=0 // pred_check_branch
    %26 = sbr.rel (%p24) target = $region29
  $region28: #{mybert_forward.16} parent=0 // pred_region
    %27 = vst [vmem:[#allocation2] sm:$0xff] 0.0
    %28 = vst [vmem:[#allocation2 + $0x8] sm:$0xff] 0.0
    %29 = vst [vmem:[#allocation2 + $0x10] sm:$0xff] 0.0
    %30 = vst [vmem:[#allocation2 + $0x18] sm:$0xff] 0.0
  $region29: #{mybert_forward.16} parent=0 // pred_fallthru
    _
  %v31 = vld [vmem:[#allocation2] sm:$0xff]
  %v32 = vld [vmem:[#allocation2 + $0x8] sm:$0xff]
  %v33 = vld [vmem:[#allocation2 + $0x10] sm:$0xff]
  %v34 = vld [vmem:[#allocation2 + $0x18] sm:$0xff]
  %v35 = vld [vmem:[%s0] sm:$0xff]
  %v36 = vld [vmem:[%s0 + $0x8] sm:$0xff]
  %v37 = vld [vmem:[%s1] sm:$0xff]
  %v38 = vld [vmem:[%s1 + $0x8] sm:$0xff]
  %v39 = vld [vmem:[%s1 + $0x10] sm:$0xff]
  %v40 = vld [vmem:[%s1 + $0x18] sm:$0xff]
  %v41 = vld [vmem:[%s1 + $0x20] sm:$0xff]
  %v42 = vld [vmem:[%s1 + $0x28] sm:$0xff]
  %v43 = vld [vmem:[%s1 + $0x30] sm:$0xff]
  %v44 = vld [vmem:[%s1 + $0x38] sm:$0xff]
  %v45 = vld [vmem:[%s1 + $0x40] sm:$0xff]
  %v46 = vld [vmem:[%s1 + $0x48] sm:$0xff]
  %v47 = vld [vmem:[%s1 + $0x50] sm:$0xff]
  %v48 = vld [vmem:[%s1 + $0x58] sm:$0xff]
  %v49 = vld [vmem:[%s1 + $0x60] sm:$0xff]
  %v50 = vld [vmem:[%s1 + $0x68] sm:$0xff]
  %v51 = vld [vmem:[%s1 + $0x70] sm:$0xff]
  %v52 = vld [vmem:[%s1 + $0x78] sm:$0xff]
  %v53 = vld [vmem:[%s1 + $0x80] sm:$0xff]
  %v54 = vld [vmem:[%s1 + $0x88] sm:$0xff]
  %v55 = vld [vmem:[%s1 + $0x90] sm:$0xff]
  %v56 = vld [vmem:[%s1 + $0x98] sm:$0xff]
  %v57 = vld [vmem:[%s1 + $0xa0] sm:$0xff]
  %v58 = vld [vmem:[%s1 + $0xa8] sm:$0xff]
  %v59 = vld [vmem:[%s1 + $0xb0] sm:$0xff]
  %v60 = vld [vmem:[%s1 + $0xb8] sm:$0xff]
  %v61 = vld [vmem:[%s1 + $0xc0] sm:$0xff]
  %v62 = vld [vmem:[%s1 + $0xc8] sm:$0xff]
  %v63 = vld [vmem:[%s1 + $0xd0] sm:$0xff]
  %v64 = vld [vmem:[%s1 + $0xd8] sm:$0xff]
  %v65 = vld [vmem:[%s1 + $0xe0] sm:$0xff]
  %v66 = vld [vmem:[%s1 + $0xe8] sm:$0xff]
  %v67 = vld [vmem:[%s1 + $0xf0] sm:$0xff]
  %v68 = vld [vmem:[%s1 + $0xf8] sm:$0xff]
  %v71 = vunpack.c.l.b16 %v35
  %v72 = vunpack.c.h.b16 %v35
  %v73 = vunpack.c.l.b16 %v36
  %v74 = vunpack.c.h.b16 %v36
  %v75 = vpack.c.b16 %v73, %v71
  %v76 = vpack.c.b16 %v74, %v72
  %v111 = vunpack.c.l.b16 %v37
  %v112 = vunpack.c.h.b16 %v37
  %v113 = vunpack.c.l.b16 %v38
  %v114 = vunpack.c.h.b16 %v38
  %v115 = vunpack.c.l.b16 %v39
  %v116 = vunpack.c.h.b16 %v39
  %v117 = vunpack.c.l.b16 %v40
  %v118 = vunpack.c.h.b16 %v40
  %v119 = vunpack.c.l.b16 %v41
  %v120 = vunpack.c.h.b16 %v41
  %v121 = vunpack.c.l.b16 %v42
  %v122 = vunpack.c.h.b16 %v42
  %v123 = vunpack.c.l.b16 %v43
  %v124 = vunpack.c.h.b16 %v43
  %v125 = vunpack.c.l.b16 %v44
  %v126 = vunpack.c.h.b16 %v44
  %v127 = vunpack.c.l.b16 %v45
  %v128 = vunpack.c.h.b16 %v45
  %v129 = vunpack.c.l.b16 %v46
  %v130 = vunpack.c.h.b16 %v46
  %v131 = vunpack.c.l.b16 %v47
  %v132 = vunpack.c.h.b16 %v47
  %v133 = vunpack.c.l.b16 %v48
  %v134 = vunpack.c.h.b16 %v48
  %v135 = vunpack.c.l.b16 %v49
  %v136 = vunpack.c.h.b16 %v49
  %v137 = vunpack.c.l.b16 %v50
  %v138 = vunpack.c.h.b16 %v50
  %v139 = vunpack.c.l.b16 %v51
  %v140 = vunpack.c.h.b16 %v51
  %v141 = vunpack.c.l.b16 %v52
  %v142 = vunpack.c.h.b16 %v52
  %v143 = vunpack.c.l.b16 %v53
  %v144 = vunpack.c.h.b16 %v53
  %v145 = vunpack.c.l.b16 %v54
  %v146 = vunpack.c.h.b16 %v54
  %v147 = vunpack.c.l.b16 %v55
  %v148 = vunpack.c.h.b16 %v55
  %v149 = vunpack.c.l.b16 %v56
  %v150 = vunpack.c.h.b16 %v56
  %v151 = vunpack.c.l.b16 %v57
  %v152 = vunpack.c.h.b16 %v57
  %v153 = vunpack.c.l.b16 %v58
  %v154 = vunpack.c.h.b16 %v58
  %v155 = vunpack.c.l.b16 %v59
  %v156 = vunpack.c.h.b16 %v59
  %v157 = vunpack.c.l.b16 %v60
  %v158 = vunpack.c.h.b16 %v60
  %v159 = vunpack.c.l.b16 %v61
  %v160 = vunpack.c.h.b16 %v61
  %v161 = vunpack.c.l.b16 %v62
  %v162 = vunpack.c.h.b16 %v62
  %v163 = vunpack.c.l.b16 %v63
  %v164 = vunpack.c.h.b16 %v63
  %v165 = vunpack.c.l.b16 %v64
  %v166 = vunpack.c.h.b16 %v64
  %v167 = vunpack.c.l.b16 %v65
  %v168 = vunpack.c.h.b16 %v65
  %v169 = vunpack.c.l.b16 %v66
  %v170 = vunpack.c.h.b16 %v66
  %v171 = vunpack.c.l.b16 %v67
  %v172 = vunpack.c.h.b16 %v67
  %v173 = vunpack.c.l.b16 %v68
  %v174 = vunpack.c.h.b16 %v68
  %v175 = vpack.c.b16 %v113, %v111
  %v176 = vpack.c.b16 %v114, %v112
  %v177 = vpack.c.b16 %v117, %v115
  %v178 = vpack.c.b16 %v118, %v116
  %v179 = vpack.c.b16 %v121, %v119
  %v180 = vpack.c.b16 %v122, %v120
  %v181 = vpack.c.b16 %v125, %v123
  %v182 = vpack.c.b16 %v126, %v124
  %v183 = vpack.c.b16 %v129, %v127
  %v184 = vpack.c.b16 %v130, %v128
  %v185 = vpack.c.b16 %v133, %v131
  %v186 = vpack.c.b16 %v134, %v132
  %v187 = vpack.c.b16 %v137, %v135
  %v188 = vpack.c.b16 %v138, %v136
  %v189 = vpack.c.b16 %v141, %v139
  %v190 = vpack.c.b16 %v142, %v140
  %v191 = vpack.c.b16 %v145, %v143
  %v192 = vpack.c.b16 %v146, %v144
  %v193 = vpack.c.b16 %v149, %v147
  %v194 = vpack.c.b16 %v150, %v148
  %v195 = vpack.c.b16 %v153, %v151
  %v196 = vpack.c.b16 %v154, %v152
  %v197 = vpack.c.b16 %v157, %v155
  %v198 = vpack.c.b16 %v158, %v156
  %v199 = vpack.c.b16 %v161, %v159
  %v200 = vpack.c.b16 %v162, %v160
  %v201 = vpack.c.b16 %v165, %v163
  %v202 = vpack.c.b16 %v166, %v164
  %v203 = vpack.c.b16 %v169, %v167
  %v204 = vpack.c.b16 %v170, %v168
  %v205 = vpack.c.b16 %v173, %v171
  %v206 = vpack.c.b16 %v174, %v172
  %239 = vmatprep.subr.bf16.mxu0 %v190
  %240 = vmatpush1.bf16.msra.mxu0 %v189
  %241 = vmatprep.subr.bf16.mxu0 %v188
  %242 = vmatpush1.bf16.msra.mxu0 %v187
  %243 = vmatprep.subr.bf16.mxu0 %v186
  %244 = vmatpush1.bf16.msra.mxu0 %v185
  %245 = vmatprep.subr.bf16.mxu0 %v184
  %246 = vmatpush1.bf16.msra.mxu0 %v183
  %247 = vmatprep.subr.bf16.mxu0 %v182
  %248 = vmatpush1.bf16.msra.mxu0 %v181
  %249 = vmatprep.subr.bf16.mxu0 %v180
  %250 = vmatpush1.bf16.msra.mxu0 %v179
  %251 = vmatprep.subr.bf16.mxu0 %v178
  %252 = vmatpush1.bf16.msra.mxu0 %v177
  %253 = vmatprep.subr.bf16.mxu0 %v176
  %254 = vmatpush1.bf16.msra.mxu0 %v175
  %255 = vmatprep.subr.bf16.mxu0 %v206
  %256 = vmatpush2.bf16.msra.mxu0 %v205
  %257 = vmatprep.subr.bf16.mxu0 %v204
  %258 = vmatpush2.bf16.msra.mxu0 %v203
  %259 = vmatprep.subr.bf16.mxu0 %v202
  %260 = vmatpush2.bf16.msra.mxu0 %v201
  %261 = vmatprep.subr.bf16.mxu0 %v200
  %262 = vmatpush2.bf16.msra.mxu0 %v199
  %263 = vmatprep.subr.bf16.mxu0 %v198
  %264 = vmatpush2.bf16.msra.mxu0 %v197
  %265 = vmatprep.subr.bf16.mxu0 %v196
  %266 = vmatpush2.bf16.msra.mxu0 %v195
  %267 = vmatprep.subr.bf16.mxu0 %v194
  %268 = vmatpush2.bf16.msra.mxu0 %v193
  %269 = vmatprep.subr.bf16.mxu0 %v192
  %270 = vmatpush2.bf16.msra.mxu0 %v191
  %271 = vmatprep.mubr.bf16.mxu0 %v76
  %272 = vmatmul.mubr.bf16.gmra.mxu0 %v75
  %v273 = vpop.f32.mrf.mxu0
  %v274 = vadd.f32 0.0, %v273
  %v275 = vpop.f32.mrf.mxu0
  %v276 = vadd.f32 0.0, %v275
  %v277 = vpop.f32.mrf.mxu0
  %v278 = vadd.f32 0.0, %v277
  %v279 = vpop.f32.mrf.mxu0
  %v280 = vadd.f32 0.0, %v279
  %281 = vdwg.mxu0
  %v282 = vadd.f32 %v31, %v274
  %v283 = vadd.f32 %v32, %v276
  %v284 = vadd.f32 %v33, %v278
  %v285 = vadd.f32 %v34, %v280
  %286 = vst [vmem:[#allocation2] sm:$0xff] %v282
  %287 = vst [vmem:[#allocation2 + $0x8] sm:$0xff] %v283
  %288 = vst [vmem:[#allocation2 + $0x10] sm:$0xff] %v284
  %289 = vst [vmem:[#allocation2 + $0x18] sm:$0xff] %v285
  // Predicated region
  $region30: #{mybert_forward.16} parent=0 // pred_check
    %p290 = pneg %p23
  $region31: #{mybert_forward.16} parent=0 // pred_check_branch
    %292 = sbr.rel (%p290) target = $region33
  $region32: #{mybert_forward.16} parent=0 // pred_region
    %v293 = vld [vmem:[#allocation2] sm:$0xff]
    %v294 = vld [vmem:[#allocation2 + $0x8] sm:$0xff]
    %v295 = vld [vmem:[#allocation2 + $0x10] sm:$0xff]
    %v296 = vld [vmem:[#allocation2 + $0x18] sm:$0xff]
    %v297 = vld [vmem:[%s2] sm:$0x3]
    %v298 = vunpack.c.l.bf16 %v297
    %v300 = vlaneseq
    %v301 = vshrl.u32 %v300, 7
    %v302 = vsub.s32 0, %v301
    %v303 = vrot.slane %v298, %v302
    %v304 = vlaneseq
    %v305 = vshrl.u32 %v304, 7
    %v306 = vsub.s32 2, %v305
    %v307 = vrot.slane %v298, %v306
    %v310 = vlaneseq
    %v311 = vshrl.u32 %v310, 7
    %v312 = vsub.s32 0, %v311
    %v313 = vrot.slane %v303, %v312
    %v314 = vlaneseq
    %v315 = vshrl.u32 %v314, 7
    %v316 = vsub.s32 0, %v315
    %v317 = vrot.slane %v307, %v316
    %v318 = vadd.f32 %v293, %v313
    %v319 = vadd.f32 %v294, %v317
    %v320 = vadd.f32 %v295, %v313
    %v321 = vadd.f32 %v296, %v317
    %v322 = vld [vmem:[%s3] sm:$0xff]
    %v323 = vld [vmem:[%s3 + $0x8] sm:$0xff]
    %v324 = vunpack.c.l.bf16 %v322
    %v325 = vunpack.c.h.bf16 %v322
    %v326 = vunpack.c.l.bf16 %v323
    %v327 = vunpack.c.h.bf16 %v323
    %v328 = vadd.f32 %v318, %v324
    %v329 = vadd.f32 %v319, %v325
    %v330 = vadd.f32 %v320, %v326
    %v331 = vadd.f32 %v321, %v327
    %v332 = vadd.f32 %v328, %v329
    %333 = vadd.xlane.f32.xlu0 %v332
    %v334 = vpop.xlane.xlu0 %333
    %v335 = vadd.f32 %v330, %v331
    %336 = vadd.xlane.f32.xlu0 %v335
    %v337 = vpop.xlane.xlu0 %336
    %v338 = vrcp.pop 256.0
    %v339 = vmul.f32 %v334, %v338
    %v340 = vmul.f32 %v337, %v338
    %v341 = vsub.f32 %v328, %v339
    %v342 = vsub.f32 %v329, %v339
    %v343 = vsub.f32 %v330, %v340
    %v344 = vsub.f32 %v331, %v340
    %v345 = vmul.f32 %v341, %v341
    %v346 = vmul.f32 %v342, %v342
    %v347 = vmul.f32 %v343, %v343
    %v348 = vmul.f32 %v344, %v344
    %v349 = vadd.f32 %v345, %v346
    %350 = vadd.xlane.f32.xlu0 %v349
    %v351 = vpop.xlane.xlu0 %350
    %v352 = vadd.f32 %v347, %v348
    %353 = vadd.xlane.f32.xlu0 %v352
    %v354 = vpop.xlane.xlu0 %353
    %v355 = vmul.f32 %v351, %v338
    %v356 = vmul.f32 %v354, %v338
    %v357 = vadd.f32 %v355, 1e-12
    %v358 = vadd.f32 %v356, 1e-12
    %v359 = vrsqrt.pop %v357
    %v360 = vrsqrt.pop %v358
    %v361 = vmul.f32 %v341, %v359
    %v362 = vmul.f32 %v342, %v359
    %v363 = vmul.f32 %v343, %v360
    %v364 = vmul.f32 %v344, %v360
    %v365 = vld [vmem:[%s4] sm:$0x3]
    %v366 = vunpack.c.l.bf16 %v365
    %v368 = vlaneseq
    %v369 = vshrl.u32 %v368, 7
    %v370 = vsub.s32 0, %v369
    %v371 = vrot.slane %v366, %v370
    %v372 = vlaneseq
    %v373 = vshrl.u32 %v372, 7
    %v374 = vsub.s32 2, %v373
    %v375 = vrot.slane %v366, %v374
    %v378 = vlaneseq
    %v379 = vshrl.u32 %v378, 7
    %v380 = vsub.s32 0, %v379
    %v381 = vrot.slane %v371, %v380
    %v382 = vlaneseq
    %v383 = vshrl.u32 %v382, 7
    %v384 = vsub.s32 0, %v383
    %v385 = vrot.slane %v375, %v384
    %v386 = vmul.f32 %v361, %v381
    %v387 = vmul.f32 %v362, %v385
    %v388 = vmul.f32 %v363, %v381
    %v389 = vmul.f32 %v364, %v385
    %v390 = vld [vmem:[%s5] sm:$0x3]
    %v391 = vunpack.c.l.bf16 %v390
    %v393 = vlaneseq
    %v394 = vshrl.u32 %v393, 7
    %v395 = vsub.s32 0, %v394
    %v396 = vrot.slane %v391, %v395
    %v397 = vlaneseq
    %v398 = vshrl.u32 %v397, 7
    %v399 = vsub.s32 2, %v398
    %v400 = vrot.slane %v391, %v399
    %v403 = vlaneseq
    %v404 = vshrl.u32 %v403, 7
    %v405 = vsub.s32 0, %v404
    %v406 = vrot.slane %v396, %v405
    %v407 = vlaneseq
    %v408 = vshrl.u32 %v407, 7
    %v409 = vsub.s32 0, %v408
    %v410 = vrot.slane %v400, %v409
    %v411 = vadd.f32 %v386, %v406
    %v412 = vadd.f32 %v387, %v410
    %v413 = vadd.f32 %v388, %v406
    %v414 = vadd.f32 %v389, %v410
    %v415 = vpack.c.bf16 %v413, %v411
    %v416 = vpack.c.bf16 %v414, %v412
    %v419 = vunpack.c.l.b16 %v415
    %v420 = vunpack.c.l.b16 %v416
    %v421 = vunpack.c.h.b16 %v415
    %v422 = vunpack.c.h.b16 %v416
    %v423 = vpack.c.b16 %v420, %v419
    %v424 = vpack.c.b16 %v422, %v421
    %427 = vst [vmem:[%s6] sm:$0xff] %v423
    %428 = vst [vmem:[%s6 + $0x8] sm:$0xff] %v424
  $region33: #{mybert_forward.16} parent=0 // pred_fallthru
    _
  // Predicated region
  $region34: #{mybert_forward.16} parent=0 // pred_check
    _
  $region35: #{mybert_forward.16} parent=0 // pred_check_branch
    %430 = sbr.rel (0) target = $region37
  $region36: #{mybert_forward.16} parent=0 // pred_region
    _
  $region37: #{mybert_forward.16} parent=0 // pred_fallthru
    _
  // Predicated region
  $region38: #{mybert_forward.16} parent=0 // pred_check
    _
  $region39: #{mybert_forward.16} parent=0 // pred_check_branch
    %432 = sbr.rel (0) target = $region41
  $region40: #{mybert_forward.16} parent=0 // pred_region
    _
  $region41: #{mybert_forward.16} parent=0 // pred_fallthru
    _

// kernel: mybert_forward.18
$region0: #{mybert_forward.18}
  #allocation0 [shape = 'u32[]', space=smem, size = 0x4, offset = 0x4, fixed_abs, tag = 'smem constant byte address 0x4 - core index']
  #allocation1 [shape = 'u32[144,128]{1,0:T(1,128)}', space=vmem, size = 0x12000, scoped, tag = 'internal scratch']
  #allocation2 [shape = 'f32[16,256]{1,0:T(8,128)}', space=vmem, size = 0x4000, scoped, tag = 'scratch operand']
  %s0 = inlined_call_operand.vmem [shape: bf16[16,512], index: 0, kind: input, shape index: {}]
  %s1 = inlined_call_operand.vmem [shape: bf16[512,256], index: 1, kind: input, shape index: {}]
  %s2 = inlined_call_operand.vmem [shape: bf16[1,256], index: 2, kind: input, shape index: {}]
  %s3 = inlined_call_operand.vmem [shape: bf16[16,256], index: 3, kind: input, shape index: {}]
  %s4 = inlined_call_operand.vmem [shape: bf16[1,256], index: 4, kind: input, shape index: {}]
  %s5 = inlined_call_operand.vmem [shape: bf16[1,256], index: 5, kind: input, shape index: {}]
  %s6 = inlined_call_operand.vmem [shape: bf16[16,256], index: 6, kind: output, shape index: {}]
  %s7 = sld [smem:[#allocation0]]
  $region42: #{mybert_forward.18} parent=0
    _
  %s9 = ssub.s32 1, %s7
  %s10 = scalar_select 0, %s9, %s7
  // Predicated region
  $region2: #{mybert_forward.18} parent=0 // pred_check
    _
  $region3: #{mybert_forward.18} parent=0 // pred_check_branch
    %12 = sbr.rel (0) target = $region5
  $region4: #{mybert_forward.18} parent=0 // pred_region
    _
  $region5: #{mybert_forward.18} parent=0 // pred_fallthru
    _
  // Predicated region
  $region6: #{mybert_forward.18} parent=0 // pred_check
    _
  $region7: #{mybert_forward.18} parent=0 // pred_check_branch
    %14 = sbr.rel (0) target = $region9
  $region8: #{mybert_forward.18} parent=0 // pred_region
    _
  $region9: #{mybert_forward.18} parent=0 // pred_fallthru
    _
  // Predicated region
  $region10: #{mybert_forward.18} parent=0 // pred_check
    _
  $region11: #{mybert_forward.18} parent=0 // pred_check_branch
    %16 = sbr.rel (0) target = $region13
  $region12: #{mybert_forward.18} parent=0 // pred_region
    _
  $region13: #{mybert_forward.18} parent=0 // pred_fallthru
    _
  // Predicated region
  $region14: #{mybert_forward.18} parent=0 // pred_check
    _
  $region15: #{mybert_forward.18} parent=0 // pred_check_branch
    %18 = sbr.rel (0) target = $region17
  $region16: #{mybert_forward.18} parent=0 // pred_region
    _
  $region17: #{mybert_forward.18} parent=0 // pred_fallthru
    _
  // Predicated region
  $region18: #{mybert_forward.18} parent=0 // pred_check
    _
  $region19: #{mybert_forward.18} parent=0 // pred_check_branch
    %20 = sbr.rel (0) target = $region21
  $region20: #{mybert_forward.18} parent=0 // pred_region
    _
  $region21: #{mybert_forward.18} parent=0 // pred_fallthru
    _
  // Predicated region
  $region22: #{mybert_forward.18} parent=0 // pred_check
    _
  $region23: #{mybert_forward.18} parent=0 // pred_check_branch
    %22 = sbr.rel (0) target = $region25
  $region24: #{mybert_forward.18} parent=0 // pred_region
    _
  $region25: #{mybert_forward.18} parent=0 // pred_fallthru
    _
  %p23 = scmp.eq.s32.totalorder 0, 0
  // Predicated region
  $region26: #{mybert_forward.18} parent=0 // pred_check
    %p24 = pneg %p23
  $region27: #{mybert_forward.18} parent=0 // pred_check_branch
    %26 = sbr.rel (%p24) target = $region29
  $region28: #{mybert_forward.18} parent=0 // pred_region
    %27 = vst [vmem:[#allocation2] sm:$0xff] 0.0
    %28 = vst [vmem:[#allocation2 + $0x8] sm:$0xff] 0.0
    %29 = vst [vmem:[#allocation2 + $0x10] sm:$0xff] 0.0
    %30 = vst [vmem:[#allocation2 + $0x18] sm:$0xff] 0.0
  $region29: #{mybert_forward.18} parent=0 // pred_fallthru
    _
  %v31 = vld [vmem:[#allocation2] sm:$0xff]
  %v32 = vld [vmem:[#allocation2 + $0x8] sm:$0xff]
  %v33 = vld [vmem:[#allocation2 + $0x10] sm:$0xff]
  %v34 = vld [vmem:[#allocation2 + $0x18] sm:$0xff]
  %v35 = vld [vmem:[%s0] sm:$0xff]
  %v36 = vld [vmem:[%s0 + $0x8] sm:$0xff]
  %v37 = vld [vmem:[%s0 + $0x10] sm:$0xff]
  %v38 = vld [vmem:[%s0 + $0x18] sm:$0xff]
  %v39 = vld [vmem:[%s1] sm:$0xff]
  %v40 = vld [vmem:[%s1 + $0x8] sm:$0xff]
  %v41 = vld [vmem:[%s1 + $0x10] sm:$0xff]
  %v42 = vld [vmem:[%s1 + $0x18] sm:$0xff]
  %v43 = vld [vmem:[%s1 + $0x20] sm:$0xff]
  %v44 = vld [vmem:[%s1 + $0x28] sm:$0xff]
  %v45 = vld [vmem:[%s1 + $0x30] sm:$0xff]
  %v46 = vld [vmem:[%s1 + $0x38] sm:$0xff]
  %v47 = vld [vmem:[%s1 + $0x40] sm:$0xff]
  %v48 = vld [vmem:[%s1 + $0x48] sm:$0xff]
  %v49 = vld [vmem:[%s1 + $0x50] sm:$0xff]
  %v50 = vld [vmem:[%s1 + $0x58] sm:$0xff]
  %v51 = vld [vmem:[%s1 + $0x60] sm:$0xff]
  %v52 = vld [vmem:[%s1 + $0x68] sm:$0xff]
  %v53 = vld [vmem:[%s1 + $0x70] sm:$0xff]
  %v54 = vld [vmem:[%s1 + $0x78] sm:$0xff]
  %v55 = vld [vmem:[%s1 + $0x80] sm:$0xff]
  %v56 = vld [vmem:[%s1 + $0x88] sm:$0xff]
  %v57 = vld [vmem:[%s1 + $0x90] sm:$0xff]
  %v58 = vld [vmem:[%s1 + $0x98] sm:$0xff]
  %v59 = vld [vmem:[%s1 + $0xa0] sm:$0xff]
  %v60 = vld [vmem:[%s1 + $0xa8] sm:$0xff]
  %v61 = vld [vmem:[%s1 + $0xb0] sm:$0xff]
  %v62 = vld [vmem:[%s1 + $0xb8] sm:$0xff]
  %v63 = vld [vmem:[%s1 + $0xc0] sm:$0xff]
  %v64 = vld [vmem:[%s1 + $0xc8] sm:$0xff]
  %v65 = vld [vmem:[%s1 + $0xd0] sm:$0xff]
  %v66 = vld [vmem:[%s1 + $0xd8] sm:$0xff]
  %v67 = vld [vmem:[%s1 + $0xe0] sm:$0xff]
  %v68 = vld [vmem:[%s1 + $0xe8] sm:$0xff]
  %v69 = vld [vmem:[%s1 + $0xf0] sm:$0xff]
  %v70 = vld [vmem:[%s1 + $0xf8] sm:$0xff]
  %v71 = vld [vmem:[%s1 + $0x100] sm:$0xff]
  %v72 = vld [vmem:[%s1 + $0x108] sm:$0xff]
  %v73 = vld [vmem:[%s1 + $0x110] sm:$0xff]
  %v74 = vld [vmem:[%s1 + $0x118] sm:$0xff]
  %v75 = vld [vmem:[%s1 + $0x120] sm:$0xff]
  %v76 = vld [vmem:[%s1 + $0x128] sm:$0xff]
  %v77 = vld [vmem:[%s1 + $0x130] sm:$0xff]
  %v78 = vld [vmem:[%s1 + $0x138] sm:$0xff]
  %v79 = vld [vmem:[%s1 + $0x140] sm:$0xff]
  %v80 = vld [vmem:[%s1 + $0x148] sm:$0xff]
  %v81 = vld [vmem:[%s1 + $0x150] sm:$0xff]
  %v82 = vld [vmem:[%s1 + $0x158] sm:$0xff]
  %v83 = vld [vmem:[%s1 + $0x160] sm:$0xff]
  %v84 = vld [vmem:[%s1 + $0x168] sm:$0xff]
  %v85 = vld [vmem:[%s1 + $0x170] sm:$0xff]
  %v86 = vld [vmem:[%s1 + $0x178] sm:$0xff]
  %v87 = vld [vmem:[%s1 + $0x180] sm:$0xff]
  %v88 = vld [vmem:[%s1 + $0x188] sm:$0xff]
  %v89 = vld [vmem:[%s1 + $0x190] sm:$0xff]
  %v90 = vld [vmem:[%s1 + $0x198] sm:$0xff]
  %v91 = vld [vmem:[%s1 + $0x1a0] sm:$0xff]
  %v92 = vld [vmem:[%s1 + $0x1a8] sm:$0xff]
  %v93 = vld [vmem:[%s1 + $0x1b0] sm:$0xff]
  %v94 = vld [vmem:[%s1 + $0x1b8] sm:$0xff]
  %v95 = vld [vmem:[%s1 + $0x1c0] sm:$0xff]
  %v96 = vld [vmem:[%s1 + $0x1c8] sm:$0xff]
  %v97 = vld [vmem:[%s1 + $0x1d0] sm:$0xff]
  %v98 = vld [vmem:[%s1 + $0x1d8] sm:$0xff]
  %v99 = vld [vmem:[%s1 + $0x1e0] sm:$0xff]
  %v100 = vld [vmem:[%s1 + $0x1e8] sm:$0xff]
  %v101 = vld [vmem:[%s1 + $0x1f0] sm:$0xff]
  %v102 = vld [vmem:[%s1 + $0x1f8] sm:$0xff]
  %v107 = vunpack.c.l.b16 %v35
  %v108 = vunpack.c.h.b16 %v35
  %v109 = vunpack.c.l.b16 %v36
  %v110 = vunpack.c.h.b16 %v36
  %v111 = vunpack.c.l.b16 %v37
  %v112 = vunpack.c.h.b16 %v37
  %v113 = vunpack.c.l.b16 %v38
  %v114 = vunpack.c.h.b16 %v38
  %v115 = vpack.c.b16 %v111, %v107
  %v116 = vpack.c.b16 %v112, %v108
  %v117 = vpack.c.b16 %v113, %v109
  %v118 = vpack.c.b16 %v114, %v110
  %v187 = vunpack.c.l.b16 %v39
  %v188 = vunpack.c.h.b16 %v39
  %v189 = vunpack.c.l.b16 %v40
  %v190 = vunpack.c.h.b16 %v40
  %v191 = vunpack.c.l.b16 %v41
  %v192 = vunpack.c.h.b16 %v41
  %v193 = vunpack.c.l.b16 %v42
  %v194 = vunpack.c.h.b16 %v42
  %v195 = vunpack.c.l.b16 %v43
  %v196 = vunpack.c.h.b16 %v43
  %v197 = vunpack.c.l.b16 %v44
  %v198 = vunpack.c.h.b16 %v44
  %v199 = vunpack.c.l.b16 %v45
  %v200 = vunpack.c.h.b16 %v45
  %v201 = vunpack.c.l.b16 %v46
  %v202 = vunpack.c.h.b16 %v46
  %v203 = vunpack.c.l.b16 %v47
  %v204 = vunpack.c.h.b16 %v47
  %v205 = vunpack.c.l.b16 %v48
  %v206 = vunpack.c.h.b16 %v48
  %v207 = vunpack.c.l.b16 %v49
  %v208 = vunpack.c.h.b16 %v49
  %v209 = vunpack.c.l.b16 %v50
  %v210 = vunpack.c.h.b16 %v50
  %v211 = vunpack.c.l.b16 %v51
  %v212 = vunpack.c.h.b16 %v51
  %v213 = vunpack.c.l.b16 %v52
  %v214 = vunpack.c.h.b16 %v52
  %v215 = vunpack.c.l.b16 %v53
  %v216 = vunpack.c.h.b16 %v53
  %v217 = vunpack.c.l.b16 %v54
  %v218 = vunpack.c.h.b16 %v54
  %v219 = vunpack.c.l.b16 %v55
  %v220 = vunpack.c.h.b16 %v55
  %v221 = vunpack.c.l.b16 %v56
  %v222 = vunpack.c.h.b16 %v56
  %v223 = vunpack.c.l.b16 %v57
  %v224 = vunpack.c.h.b16 %v57
  %v225 = vunpack.c.l.b16 %v58
  %v226 = vunpack.c.h.b16 %v58
  %v227 = vunpack.c.l.b16 %v59
  %v228 = vunpack.c.h.b16 %v59
  %v229 = vunpack.c.l.b16 %v60
  %v230 = vunpack.c.h.b16 %v60
  %v231 = vunpack.c.l.b16 %v61
  %v232 = vunpack.c.h.b16 %v61
  %v233 = vunpack.c.l.b16 %v62
  %v234 = vunpack.c.h.b16 %v62
  %v235 = vunpack.c.l.b16 %v63
  %v236 = vunpack.c.h.b16 %v63
  %v237 = vunpack.c.l.b16 %v64
  %v238 = vunpack.c.h.b16 %v64
  %v239 = vunpack.c.l.b16 %v65
  %v240 = vunpack.c.h.b16 %v65
  %v241 = vunpack.c.l.b16 %v66
  %v242 = vunpack.c.h.b16 %v66
  %v243 = vunpack.c.l.b16 %v67
  %v244 = vunpack.c.h.b16 %v67
  %v245 = vunpack.c.l.b16 %v68
  %v246 = vunpack.c.h.b16 %v68
  %v247 = vunpack.c.l.b16 %v69
  %v248 = vunpack.c.h.b16 %v69
  %v249 = vunpack.c.l.b16 %v70
  %v250 = vunpack.c.h.b16 %v70
  %v251 = vunpack.c.l.b16 %v71
  %v252 = vunpack.c.h.b16 %v71
  %v253 = vunpack.c.l.b16 %v72
  %v254 = vunpack.c.h.b16 %v72
  %v255 = vunpack.c.l.b16 %v73
  %v256 = vunpack.c.h.b16 %v73
  %v257 = vunpack.c.l.b16 %v74
  %v258 = vunpack.c.h.b16 %v74
  %v259 = vunpack.c.l.b16 %v75
  %v260 = vunpack.c.h.b16 %v75
  %v261 = vunpack.c.l.b16 %v76
  %v262 = vunpack.c.h.b16 %v76
  %v263 = vunpack.c.l.b16 %v77
  %v264 = vunpack.c.h.b16 %v77
  %v265 = vunpack.c.l.b16 %v78
  %v266 = vunpack.c.h.b16 %v78
  %v267 = vunpack.c.l.b16 %v79
  %v268 = vunpack.c.h.b16 %v79
  %v269 = vunpack.c.l.b16 %v80
  %v270 = vunpack.c.h.b16 %v80
  %v271 = vunpack.c.l.b16 %v81
  %v272 = vunpack.c.h.b16 %v81
  %v273 = vunpack.c.l.b16 %v82
  %v274 = vunpack.c.h.b16 %v82
  %v275 = vunpack.c.l.b16 %v83
  %v276 = vunpack.c.h.b16 %v83
  %v277 = vunpack.c.l.b16 %v84
  %v278 = vunpack.c.h.b16 %v84
  %v279 = vunpack.c.l.b16 %v85
  %v280 = vunpack.c.h.b16 %v85
  %v281 = vunpack.c.l.b16 %v86
  %v282 = vunpack.c.h.b16 %v86
  %v283 = vunpack.c.l.b16 %v87
  %v284 = vunpack.c.h.b16 %v87
  %v285 = vunpack.c.l.b16 %v88
  %v286 = vunpack.c.h.b16 %v88
  %v287 = vunpack.c.l.b16 %v89
  %v288 = vunpack.c.h.b16 %v89
  %v289 = vunpack.c.l.b16 %v90
  %v290 = vunpack.c.h.b16 %v90
  %v291 = vunpack.c.l.b16 %v91
  %v292 = vunpack.c.h.b16 %v91
  %v293 = vunpack.c.l.b16 %v92
  %v294 = vunpack.c.h.b16 %v92
  %v295 = vunpack.c.l.b16 %v93
  %v296 = vunpack.c.h.b16 %v93
  %v297 = vunpack.c.l.b16 %v94
  %v298 = vunpack.c.h.b16 %v94
  %v299 = vunpack.c.l.b16 %v95
  %v300 = vunpack.c.h.b16 %v95
  %v301 = vunpack.c.l.b16 %v96
  %v302 = vunpack.c.h.b16 %v96
  %v303 = vunpack.c.l.b16 %v97
  %v304 = vunpack.c.h.b16 %v97
  %v305 = vunpack.c.l.b16 %v98
  %v306 = vunpack.c.h.b16 %v98
  %v307 = vunpack.c.l.b16 %v99
  %v308 = vunpack.c.h.b16 %v99
  %v309 = vunpack.c.l.b16 %v100
  %v310 = vunpack.c.h.b16 %v100
  %v311 = vunpack.c.l.b16 %v101
  %v312 = vunpack.c.h.b16 %v101
  %v313 = vunpack.c.l.b16 %v102
  %v314 = vunpack.c.h.b16 %v102
  %v315 = vpack.c.b16 %v189, %v187
  %v316 = vpack.c.b16 %v190, %v188
  %v317 = vpack.c.b16 %v193, %v191
  %v318 = vpack.c.b16 %v194, %v192
  %v319 = vpack.c.b16 %v197, %v195
  %v320 = vpack.c.b16 %v198, %v196
  %v321 = vpack.c.b16 %v201, %v199
  %v322 = vpack.c.b16 %v202, %v200
  %v323 = vpack.c.b16 %v205, %v203
  %v324 = vpack.c.b16 %v206, %v204
  %v325 = vpack.c.b16 %v209, %v207
  %v326 = vpack.c.b16 %v210, %v208
  %v327 = vpack.c.b16 %v213, %v211
  %v328 = vpack.c.b16 %v214, %v212
  %v329 = vpack.c.b16 %v217, %v215
  %v330 = vpack.c.b16 %v218, %v216
  %v331 = vpack.c.b16 %v221, %v219
  %v332 = vpack.c.b16 %v222, %v220
  %v333 = vpack.c.b16 %v225, %v223
  %v334 = vpack.c.b16 %v226, %v224
  %v335 = vpack.c.b16 %v229, %v227
  %v336 = vpack.c.b16 %v230, %v228
  %v337 = vpack.c.b16 %v233, %v231
  %v338 = vpack.c.b16 %v234, %v232
  %v339 = vpack.c.b16 %v237, %v235
  %v340 = vpack.c.b16 %v238, %v236
  %v341 = vpack.c.b16 %v241, %v239
  %v342 = vpack.c.b16 %v242, %v240
  %v343 = vpack.c.b16 %v245, %v243
  %v344 = vpack.c.b16 %v246, %v244
  %v345 = vpack.c.b16 %v249, %v247
  %v346 = vpack.c.b16 %v250, %v248
  %v347 = vpack.c.b16 %v253, %v251
  %v348 = vpack.c.b16 %v254, %v252
  %v349 = vpack.c.b16 %v257, %v255
  %v350 = vpack.c.b16 %v258, %v256
  %v351 = vpack.c.b16 %v261, %v259
  %v352 = vpack.c.b16 %v262, %v260
  %v353 = vpack.c.b16 %v265, %v263
  %v354 = vpack.c.b16 %v266, %v264
  %v355 = vpack.c.b16 %v269, %v267
  %v356 = vpack.c.b16 %v270, %v268
  %v357 = vpack.c.b16 %v273, %v271
  %v358 = vpack.c.b16 %v274, %v272
  %v359 = vpack.c.b16 %v277, %v275
  %v360 = vpack.c.b16 %v278, %v276
  %v361 = vpack.c.b16 %v281, %v279
  %v362 = vpack.c.b16 %v282, %v280
  %v363 = vpack.c.b16 %v285, %v283
  %v364 = vpack.c.b16 %v286, %v284
  %v365 = vpack.c.b16 %v289, %v287
  %v366 = vpack.c.b16 %v290, %v288
  %v367 = vpack.c.b16 %v293, %v291
  %v368 = vpack.c.b16 %v294, %v292
  %v369 = vpack.c.b16 %v297, %v295
  %v370 = vpack.c.b16 %v298, %v296
  %v371 = vpack.c.b16 %v301, %v299
  %v372 = vpack.c.b16 %v302, %v300
  %v373 = vpack.c.b16 %v305, %v303
  %v374 = vpack.c.b16 %v306, %v304
  %v375 = vpack.c.b16 %v309, %v307
  %v376 = vpack.c.b16 %v310, %v308
  %v377 = vpack.c.b16 %v313, %v311
  %v378 = vpack.c.b16 %v314, %v312
  %443 = vmatprep.subr.bf16.mxu0 %v330
  %444 = vmatpush1.bf16.msra.mxu0 %v329
  %445 = vmatprep.subr.bf16.mxu0 %v328
  %446 = vmatpush1.bf16.msra.mxu0 %v327
  %447 = vmatprep.subr.bf16.mxu0 %v326
  %448 = vmatpush1.bf16.msra.mxu0 %v325
  %449 = vmatprep.subr.bf16.mxu0 %v324
  %450 = vmatpush1.bf16.msra.mxu0 %v323
  %451 = vmatprep.subr.bf16.mxu0 %v322
  %452 = vmatpush1.bf16.msra.mxu0 %v321
  %453 = vmatprep.subr.bf16.mxu0 %v320
  %454 = vmatpush1.bf16.msra.mxu0 %v319
  %455 = vmatprep.subr.bf16.mxu0 %v318
  %456 = vmatpush1.bf16.msra.mxu0 %v317
  %457 = vmatprep.subr.bf16.mxu0 %v316
  %458 = vmatpush1.bf16.msra.mxu0 %v315
  %459 = vmatprep.subr.bf16.mxu0 %v346
  %460 = vmatpush2.bf16.msra.mxu0 %v345
  %461 = vmatprep.subr.bf16.mxu0 %v344
  %462 = vmatpush2.bf16.msra.mxu0 %v343
  %463 = vmatprep.subr.bf16.mxu0 %v342
  %464 = vmatpush2.bf16.msra.mxu0 %v341
  %465 = vmatprep.subr.bf16.mxu0 %v340
  %466 = vmatpush2.bf16.msra.mxu0 %v339
  %467 = vmatprep.subr.bf16.mxu0 %v338
  %468 = vmatpush2.bf16.msra.mxu0 %v337
  %469 = vmatprep.subr.bf16.mxu0 %v336
  %470 = vmatpush2.bf16.msra.mxu0 %v335
  %471 = vmatprep.subr.bf16.mxu0 %v334
  %472 = vmatpush2.bf16.msra.mxu0 %v333
  %473 = vmatprep.subr.bf16.mxu0 %v332
  %474 = vmatpush2.bf16.msra.mxu0 %v331
  %475 = vmatprep.mubr.bf16.mxu0 %v116
  %476 = vmatmul.mubr.bf16.gmra.mxu0 %v115
  %v477 = vpop.f32.mrf.mxu0
  %v478 = vadd.f32 0.0, %v477
  %v479 = vpop.f32.mrf.mxu0
  %v480 = vadd.f32 0.0, %v479
  %v481 = vpop.f32.mrf.mxu0
  %v482 = vadd.f32 0.0, %v481
  %v483 = vpop.f32.mrf.mxu0
  %v484 = vadd.f32 0.0, %v483
  %485 = vdwg.mxu0
  %486 = vmatprep.subr.bf16.mxu0 %v362
  %487 = vmatpush1.bf16.msra.mxu0 %v361
  %488 = vmatprep.subr.bf16.mxu0 %v360
  %489 = vmatpush1.bf16.msra.mxu0 %v359
  %490 = vmatprep.subr.bf16.mxu0 %v358
  %491 = vmatpush1.bf16.msra.mxu0 %v357
  %492 = vmatprep.subr.bf16.mxu0 %v356
  %493 = vmatpush1.bf16.msra.mxu0 %v355
  %494 = vmatprep.subr.bf16.mxu0 %v354
  %495 = vmatpush1.bf16.msra.mxu0 %v353
  %496 = vmatprep.subr.bf16.mxu0 %v352
  %497 = vmatpush1.bf16.msra.mxu0 %v351
  %498 = vmatprep.subr.bf16.mxu0 %v350
  %499 = vmatpush1.bf16.msra.mxu0 %v349
  %500 = vmatprep.subr.bf16.mxu0 %v348
  %501 = vmatpush1.bf16.msra.mxu0 %v347
  %502 = vmatprep.subr.bf16.mxu0 %v378
  %503 = vmatpush2.bf16.msra.mxu0 %v377
  %504 = vmatprep.subr.bf16.mxu0 %v376
  %505 = vmatpush2.bf16.msra.mxu0 %v375
  %506 = vmatprep.subr.bf16.mxu0 %v374
  %507 = vmatpush2.bf16.msra.mxu0 %v373
  %508 = vmatprep.subr.bf16.mxu0 %v372
  %509 = vmatpush2.bf16.msra.mxu0 %v371
  %510 = vmatprep.subr.bf16.mxu0 %v370
  %511 = vmatpush2.bf16.msra.mxu0 %v369
  %512 = vmatprep.subr.bf16.mxu0 %v368
  %513 = vmatpush2.bf16.msra.mxu0 %v367
  %514 = vmatprep.subr.bf16.mxu0 %v366
  %515 = vmatpush2.bf16.msra.mxu0 %v365
  %516 = vmatprep.subr.bf16.mxu0 %v364
  %517 = vmatpush2.bf16.msra.mxu0 %v363
  %518 = vmatprep.mubr.bf16.mxu0 %v118
  %519 = vmatmul.mubr.bf16.gmra.mxu0 %v117
  %v520 = vpop.f32.mrf.mxu0
  %v521 = vadd.f32 %v478, %v520
  %v522 = vpop.f32.mrf.mxu0
  %v523 = vadd.f32 %v480, %v522
  %v524 = vpop.f32.mrf.mxu0
  %v525 = vadd.f32 %v482, %v524
  %v526 = vpop.f32.mrf.mxu0
  %v527 = vadd.f32 %v484, %v526
  %528 = vdwg.mxu0
  %v529 = vadd.f32 %v31, %v521
  %v530 = vadd.f32 %v32, %v523
  %v531 = vadd.f32 %v33, %v525
  %v532 = vadd.f32 %v34, %v527
  %533 = vst [vmem:[#allocation2] sm:$0xff] %v529
  %534 = vst [vmem:[#allocation2 + $0x8] sm:$0xff] %v530
  %535 = vst [vmem:[#allocation2 + $0x10] sm:$0xff] %v531
  %536 = vst [vmem:[#allocation2 + $0x18] sm:$0xff] %v532
  // Predicated region
  $region30: #{mybert_forward.18} parent=0 // pred_check
    %p537 = pneg %p23
  $region31: #{mybert_forward.18} parent=0 // pred_check_branch
    %539 = sbr.rel (%p537) target = $region33
  $region32: #{mybert_forward.18} parent=0 // pred_region
    %v540 = vld [vmem:[#allocation2] sm:$0xff]
    %v541 = vld [vmem:[#allocation2 + $0x8] sm:$0xff]
    %v542 = vld [vmem:[#allocation2 + $0x10] sm:$0xff]
    %v543 = vld [vmem:[#allocation2 + $0x18] sm:$0xff]
    %v544 = vld [vmem:[%s2] sm:$0x3]
    %v545 = vunpack.c.l.bf16 %v544
    %v547 = vlaneseq
    %v548 = vshrl.u32 %v547, 7
    %v549 = vsub.s32 0, %v548
    %v550 = vrot.slane %v545, %v549
    %v551 = vlaneseq
    %v552 = vshrl.u32 %v551, 7
    %v553 = vsub.s32 2, %v552
    %v554 = vrot.slane %v545, %v553
    %v557 = vlaneseq
    %v558 = vshrl.u32 %v557, 7
    %v559 = vsub.s32 0, %v558
    %v560 = vrot.slane %v550, %v559
    %v561 = vlaneseq
    %v562 = vshrl.u32 %v561, 7
    %v563 = vsub.s32 0, %v562
    %v564 = vrot.slane %v554, %v563
    %v565 = vadd.f32 %v540, %v560
    %v566 = vadd.f32 %v541, %v564
    %v567 = vadd.f32 %v542, %v560
    %v568 = vadd.f32 %v543, %v564
    %v569 = vld [vmem:[%s3] sm:$0xff]
    %v570 = vld [vmem:[%s3 + $0x8] sm:$0xff]
    %v571 = vunpack.c.l.bf16 %v569
    %v572 = vunpack.c.h.bf16 %v569
    %v573 = vunpack.c.l.bf16 %v570
    %v574 = vunpack.c.h.bf16 %v570
    %v575 = vadd.f32 %v565, %v571
    %v576 = vadd.f32 %v566, %v572
    %v577 = vadd.f32 %v567, %v573
    %v578 = vadd.f32 %v568, %v574
    %v579 = vadd.f32 %v575, %v576
    %580 = vadd.xlane.f32.xlu0 %v579
    %v581 = vpop.xlane.xlu0 %580
    %v582 = vadd.f32 %v577, %v578
    %583 = vadd.xlane.f32.xlu0 %v582
    %v584 = vpop.xlane.xlu0 %583
    %v585 = vrcp.pop 256.0
    %v586 = vmul.f32 %v581, %v585
    %v587 = vmul.f32 %v584, %v585
    %v588 = vsub.f32 %v575, %v586
    %v589 = vsub.f32 %v576, %v586
    %v590 = vsub.f32 %v577, %v587
    %v591 = vsub.f32 %v578, %v587
    %v592 = vmul.f32 %v588, %v588
    %v593 = vmul.f32 %v589, %v589
    %v594 = vmul.f32 %v590, %v590
    %v595 = vmul.f32 %v591, %v591
    %v596 = vadd.f32 %v592, %v593
    %597 = vadd.xlane.f32.xlu0 %v596
    %v598 = vpop.xlane.xlu0 %597
    %v599 = vadd.f32 %v594, %v595
    %600 = vadd.xlane.f32.xlu0 %v599
    %v601 = vpop.xlane.xlu0 %600
    %v602 = vmul.f32 %v598, %v585
    %v603 = vmul.f32 %v601, %v585
    %v604 = vadd.f32 %v602, 1e-12
    %v605 = vadd.f32 %v603, 1e-12
    %v606 = vrsqrt.pop %v604
    %v607 = vrsqrt.pop %v605
    %v608 = vmul.f32 %v588, %v606
    %v609 = vmul.f32 %v589, %v606
    %v610 = vmul.f32 %v590, %v607
    %v611 = vmul.f32 %v591, %v607
    %v612 = vld [vmem:[%s4] sm:$0x3]
    %v613 = vunpack.c.l.bf16 %v612
    %v615 = vlaneseq
    %v616 = vshrl.u32 %v615, 7
    %v617 = vsub.s32 0, %v616
    %v618 = vrot.slane %v613, %v617
    %v619 = vlaneseq
    %v620 = vshrl.u32 %v619, 7
    %v621 = vsub.s32 2, %v620
    %v622 = vrot.slane %v613, %v621
    %v625 = vlaneseq
    %v626 = vshrl.u32 %v625, 7
    %v627 = vsub.s32 0, %v626
    %v628 = vrot.slane %v618, %v627
    %v629 = vlaneseq
    %v630 = vshrl.u32 %v629, 7
    %v631 = vsub.s32 0, %v630
    %v632 = vrot.slane %v622, %v631
    %v633 = vmul.f32 %v608, %v628
    %v634 = vmul.f32 %v609, %v632
    %v635 = vmul.f32 %v610, %v628
    %v636 = vmul.f32 %v611, %v632
    %v637 = vld [vmem:[%s5] sm:$0x3]
    %v638 = vunpack.c.l.bf16 %v637
    %v640 = vlaneseq
    %v641 = vshrl.u32 %v640, 7
    %v642 = vsub.s32 0, %v641
    %v643 = vrot.slane %v638, %v642
    %v644 = vlaneseq
    %v645 = vshrl.u32 %v644, 7
    %v646 = vsub.s32 2, %v645
    %v647 = vrot.slane %v638, %v646
    %v650 = vlaneseq
    %v651 = vshrl.u32 %v650, 7
    %v652 = vsub.s32 0, %v651
    %v653 = vrot.slane %v643, %v652
    %v654 = vlaneseq
    %v655 = vshrl.u32 %v654, 7
    %v656 = vsub.s32 0, %v655
    %v657 = vrot.slane %v647, %v656
    %v658 = vadd.f32 %v633, %v653
    %v659 = vadd.f32 %v634, %v657
    %v660 = vadd.f32 %v635, %v653
    %v661 = vadd.f32 %v636, %v657
    %v662 = vpack.c.bf16 %v660, %v658
    %v663 = vpack.c.bf16 %v661, %v659
    %v666 = vunpack.c.l.b16 %v662
    %v667 = vunpack.c.l.b16 %v663
    %v668 = vunpack.c.h.b16 %v662
    %v669 = vunpack.c.h.b16 %v663
    %v670 = vpack.c.b16 %v667, %v666
    %v671 = vpack.c.b16 %v669, %v668
    %674 = vst [vmem:[%s6] sm:$0xff] %v670
    %675 = vst [vmem:[%s6 + $0x8] sm:$0xff] %v671
  $region33: #{mybert_forward.18} parent=0 // pred_fallthru
    _
  // Predicated region
  $region34: #{mybert_forward.18} parent=0 // pred_check
    _
  $region35: #{mybert_forward.18} parent=0 // pred_check_branch
    %677 = sbr.rel (0) target = $region37
  $region36: #{mybert_forward.18} parent=0 // pred_region
    _
  $region37: #{mybert_forward.18} parent=0 // pred_fallthru
    _
  // Predicated region
  $region38: #{mybert_forward.18} parent=0 // pred_check
    _
  $region39: #{mybert_forward.18} parent=0 // pred_check_branch
    %679 = sbr.rel (0) target = $region41
  $region40: #{mybert_forward.18} parent=0 // pred_region
    _
  $region41: #{mybert_forward.18} parent=0 // pred_fallthru
    _

// kernel: mybert_forward.17
$region0: #{mybert_forward.17}
  #allocation0 [shape = 'u32[]', space=smem, size = 0x4, offset = 0x4, fixed_abs, tag = 'smem constant byte address 0x4 - core index']
  #allocation1 [shape = 'u32[144,128]{1,0:T(1,128)}', space=vmem, size = 0x12000, scoped, tag = 'internal scratch']
  #allocation2 [shape = 'f32[16,512]{1,0:T(8,128)}', space=vmem, size = 0x8000, scoped, tag = 'scratch operand']
  %s0 = inlined_call_operand.vmem [shape: bf16[16,256], index: 0, kind: input, shape index: {}]
  %s1 = inlined_call_operand.vmem [shape: bf16[256,512], index: 1, kind: input, shape index: {}]
  %s2 = inlined_call_operand.vmem [shape: bf16[1,512], index: 2, kind: input, shape index: {}]
  %s3 = inlined_call_operand.vmem [shape: bf16[16,512], index: 3, kind: output, shape index: {}]
  %s4 = sld [smem:[#allocation0]]
  $region30: #{mybert_forward.17} parent=0
    _
  %s6 = ssub.s32 1, %s4
  %s7 = scalar_select 0, %s6, %s4
  // Predicated region
  $region2: #{mybert_forward.17} parent=0 // pred_check
    _
  $region3: #{mybert_forward.17} parent=0 // pred_check_branch
    %9 = sbr.rel (0) target = $region5
  $region4: #{mybert_forward.17} parent=0 // pred_region
    _
  $region5: #{mybert_forward.17} parent=0 // pred_fallthru
    _
  // Predicated region
  $region6: #{mybert_forward.17} parent=0 // pred_check
    _
  $region7: #{mybert_forward.17} parent=0 // pred_check_branch
    %11 = sbr.rel (0) target = $region9
  $region8: #{mybert_forward.17} parent=0 // pred_region
    _
  $region9: #{mybert_forward.17} parent=0 // pred_fallthru
    _
  // Predicated region
  $region10: #{mybert_forward.17} parent=0 // pred_check
    _
  $region11: #{mybert_forward.17} parent=0 // pred_check_branch
    %13 = sbr.rel (0) target = $region13
  $region12: #{mybert_forward.17} parent=0 // pred_region
    _
  $region13: #{mybert_forward.17} parent=0 // pred_fallthru
    _
  %p14 = scmp.eq.s32.totalorder 0, 0
  // Predicated region
  $region14: #{mybert_forward.17} parent=0 // pred_check
    %p15 = pneg %p14
  $region15: #{mybert_forward.17} parent=0 // pred_check_branch
    %17 = sbr.rel (%p15) target = $region17
  $region16: #{mybert_forward.17} parent=0 // pred_region
    %18 = vst [vmem:[#allocation2] sm:$0xff] 0.0
    %19 = vst [vmem:[#allocation2 + $0x8] sm:$0xff] 0.0
    %20 = vst [vmem:[#allocation2 + $0x10] sm:$0xff] 0.0
    %21 = vst [vmem:[#allocation2 + $0x18] sm:$0xff] 0.0
    %22 = vst [vmem:[#allocation2 + $0x20] sm:$0xff] 0.0
    %23 = vst [vmem:[#allocation2 + $0x28] sm:$0xff] 0.0
    %24 = vst [vmem:[#allocation2 + $0x30] sm:$0xff] 0.0
    %25 = vst [vmem:[#allocation2 + $0x38] sm:$0xff] 0.0
  $region17: #{mybert_forward.17} parent=0 // pred_fallthru
    _
  %v26 = vld [vmem:[#allocation2] sm:$0xff]
  %v27 = vld [vmem:[#allocation2 + $0x8] sm:$0xff]
  %v28 = vld [vmem:[#allocation2 + $0x10] sm:$0xff]
  %v29 = vld [vmem:[#allocation2 + $0x18] sm:$0xff]
  %v30 = vld [vmem:[#allocation2 + $0x20] sm:$0xff]
  %v31 = vld [vmem:[#allocation2 + $0x28] sm:$0xff]
  %v32 = vld [vmem:[#allocation2 + $0x30] sm:$0xff]
  %v33 = vld [vmem:[#allocation2 + $0x38] sm:$0xff]
  %v34 = vld [vmem:[%s0] sm:$0xff]
  %v35 = vld [vmem:[%s0 + $0x8] sm:$0xff]
  %v36 = vld [vmem:[%s1] sm:$0xff]
  %v37 = vld [vmem:[%s1 + $0x8] sm:$0xff]
  %v38 = vld [vmem:[%s1 + $0x10] sm:$0xff]
  %v39 = vld [vmem:[%s1 + $0x18] sm:$0xff]
  %v40 = vld [vmem:[%s1 + $0x20] sm:$0xff]
  %v41 = vld [vmem:[%s1 + $0x28] sm:$0xff]
  %v42 = vld [vmem:[%s1 + $0x30] sm:$0xff]
  %v43 = vld [vmem:[%s1 + $0x38] sm:$0xff]
  %v44 = vld [vmem:[%s1 + $0x40] sm:$0xff]
  %v45 = vld [vmem:[%s1 + $0x48] sm:$0xff]
  %v46 = vld [vmem:[%s1 + $0x50] sm:$0xff]
  %v47 = vld [vmem:[%s1 + $0x58] sm:$0xff]
  %v48 = vld [vmem:[%s1 + $0x60] sm:$0xff]
  %v49 = vld [vmem:[%s1 + $0x68] sm:$0xff]
  %v50 = vld [vmem:[%s1 + $0x70] sm:$0xff]
  %v51 = vld [vmem:[%s1 + $0x78] sm:$0xff]
  %v52 = vld [vmem:[%s1 + $0x80] sm:$0xff]
  %v53 = vld [vmem:[%s1 + $0x88] sm:$0xff]
  %v54 = vld [vmem:[%s1 + $0x90] sm:$0xff]
  %v55 = vld [vmem:[%s1 + $0x98] sm:$0xff]
  %v56 = vld [vmem:[%s1 + $0xa0] sm:$0xff]
  %v57 = vld [vmem:[%s1 + $0xa8] sm:$0xff]
  %v58 = vld [vmem:[%s1 + $0xb0] sm:$0xff]
  %v59 = vld [vmem:[%s1 + $0xb8] sm:$0xff]
  %v60 = vld [vmem:[%s1 + $0xc0] sm:$0xff]
  %v61 = vld [vmem:[%s1 + $0xc8] sm:$0xff]
  %v62 = vld [vmem:[%s1 + $0xd0] sm:$0xff]
  %v63 = vld [vmem:[%s1 + $0xd8] sm:$0xff]
  %v64 = vld [vmem:[%s1 + $0xe0] sm:$0xff]
  %v65 = vld [vmem:[%s1 + $0xe8] sm:$0xff]
  %v66 = vld [vmem:[%s1 + $0xf0] sm:$0xff]
  %v67 = vld [vmem:[%s1 + $0xf8] sm:$0xff]
  %v68 = vld [vmem:[%s1 + $0x100] sm:$0xff]
  %v69 = vld [vmem:[%s1 + $0x108] sm:$0xff]
  %v70 = vld [vmem:[%s1 + $0x110] sm:$0xff]
  %v71 = vld [vmem:[%s1 + $0x118] sm:$0xff]
  %v72 = vld [vmem:[%s1 + $0x120] sm:$0xff]
  %v73 = vld [vmem:[%s1 + $0x128] sm:$0xff]
  %v74 = vld [vmem:[%s1 + $0x130] sm:$0xff]
  %v75 = vld [vmem:[%s1 + $0x138] sm:$0xff]
  %v76 = vld [vmem:[%s1 + $0x140] sm:$0xff]
  %v77 = vld [vmem:[%s1 + $0x148] sm:$0xff]
  %v78 = vld [vmem:[%s1 + $0x150] sm:$0xff]
  %v79 = vld [vmem:[%s1 + $0x158] sm:$0xff]
  %v80 = vld [vmem:[%s1 + $0x160] sm:$0xff]
  %v81 = vld [vmem:[%s1 + $0x168] sm:$0xff]
  %v82 = vld [vmem:[%s1 + $0x170] sm:$0xff]
  %v83 = vld [vmem:[%s1 + $0x178] sm:$0xff]
  %v84 = vld [vmem:[%s1 + $0x180] sm:$0xff]
  %v85 = vld [vmem:[%s1 + $0x188] sm:$0xff]
  %v86 = vld [vmem:[%s1 + $0x190] sm:$0xff]
  %v87 = vld [vmem:[%s1 + $0x198] sm:$0xff]
  %v88 = vld [vmem:[%s1 + $0x1a0] sm:$0xff]
  %v89 = vld [vmem:[%s1 + $0x1a8] sm:$0xff]
  %v90 = vld [vmem:[%s1 + $0x1b0] sm:$0xff]
  %v91 = vld [vmem:[%s1 + $0x1b8] sm:$0xff]
  %v92 = vld [vmem:[%s1 + $0x1c0] sm:$0xff]
  %v93 = vld [vmem:[%s1 + $0x1c8] sm:$0xff]
  %v94 = vld [vmem:[%s1 + $0x1d0] sm:$0xff]
  %v95 = vld [vmem:[%s1 + $0x1d8] sm:$0xff]
  %v96 = vld [vmem:[%s1 + $0x1e0] sm:$0xff]
  %v97 = vld [vmem:[%s1 + $0x1e8] sm:$0xff]
  %v98 = vld [vmem:[%s1 + $0x1f0] sm:$0xff]
  %v99 = vld [vmem:[%s1 + $0x1f8] sm:$0xff]
  %v102 = vunpack.c.l.b16 %v34
  %v103 = vunpack.c.h.b16 %v34
  %v104 = vunpack.c.l.b16 %v35
  %v105 = vunpack.c.h.b16 %v35
  %v106 = vpack.c.b16 %v104, %v102
  %v107 = vpack.c.b16 %v105, %v103
  %v174 = vunpack.c.l.b16 %v36
  %v175 = vunpack.c.h.b16 %v36
  %v176 = vunpack.c.l.b16 %v37
  %v177 = vunpack.c.h.b16 %v37
  %v178 = vunpack.c.l.b16 %v38
  %v179 = vunpack.c.h.b16 %v38
  %v180 = vunpack.c.l.b16 %v39
  %v181 = vunpack.c.h.b16 %v39
  %v182 = vunpack.c.l.b16 %v40
  %v183 = vunpack.c.h.b16 %v40
  %v184 = vunpack.c.l.b16 %v41
  %v185 = vunpack.c.h.b16 %v41
  %v186 = vunpack.c.l.b16 %v42
  %v187 = vunpack.c.h.b16 %v42
  %v188 = vunpack.c.l.b16 %v43
  %v189 = vunpack.c.h.b16 %v43
  %v190 = vunpack.c.l.b16 %v44
  %v191 = vunpack.c.h.b16 %v44
  %v192 = vunpack.c.l.b16 %v45
  %v193 = vunpack.c.h.b16 %v45
  %v194 = vunpack.c.l.b16 %v46
  %v195 = vunpack.c.h.b16 %v46
  %v196 = vunpack.c.l.b16 %v47
  %v197 = vunpack.c.h.b16 %v47
  %v198 = vunpack.c.l.b16 %v48
  %v199 = vunpack.c.h.b16 %v48
  %v200 = vunpack.c.l.b16 %v49
  %v201 = vunpack.c.h.b16 %v49
  %v202 = vunpack.c.l.b16 %v50
  %v203 = vunpack.c.h.b16 %v50
  %v204 = vunpack.c.l.b16 %v51
  %v205 = vunpack.c.h.b16 %v51
  %v206 = vunpack.c.l.b16 %v52
  %v207 = vunpack.c.h.b16 %v52
  %v208 = vunpack.c.l.b16 %v53
  %v209 = vunpack.c.h.b16 %v53
  %v210 = vunpack.c.l.b16 %v54
  %v211 = vunpack.c.h.b16 %v54
  %v212 = vunpack.c.l.b16 %v55
  %v213 = vunpack.c.h.b16 %v55
  %v214 = vunpack.c.l.b16 %v56
  %v215 = vunpack.c.h.b16 %v56
  %v216 = vunpack.c.l.b16 %v57
  %v217 = vunpack.c.h.b16 %v57
  %v218 = vunpack.c.l.b16 %v58
  %v219 = vunpack.c.h.b16 %v58
  %v220 = vunpack.c.l.b16 %v59
  %v221 = vunpack.c.h.b16 %v59
  %v222 = vunpack.c.l.b16 %v60
  %v223 = vunpack.c.h.b16 %v60
  %v224 = vunpack.c.l.b16 %v61
  %v225 = vunpack.c.h.b16 %v61
  %v226 = vunpack.c.l.b16 %v62
  %v227 = vunpack.c.h.b16 %v62
  %v228 = vunpack.c.l.b16 %v63
  %v229 = vunpack.c.h.b16 %v63
  %v230 = vunpack.c.l.b16 %v64
  %v231 = vunpack.c.h.b16 %v64
  %v232 = vunpack.c.l.b16 %v65
  %v233 = vunpack.c.h.b16 %v65
  %v234 = vunpack.c.l.b16 %v66
  %v235 = vunpack.c.h.b16 %v66
  %v236 = vunpack.c.l.b16 %v67
  %v237 = vunpack.c.h.b16 %v67
  %v238 = vunpack.c.l.b16 %v68
  %v239 = vunpack.c.h.b16 %v68
  %v240 = vunpack.c.l.b16 %v69
  %v241 = vunpack.c.h.b16 %v69
  %v242 = vunpack.c.l.b16 %v70
  %v243 = vunpack.c.h.b16 %v70
  %v244 = vunpack.c.l.b16 %v71
  %v245 = vunpack.c.h.b16 %v71
  %v246 = vunpack.c.l.b16 %v72
  %v247 = vunpack.c.h.b16 %v72
  %v248 = vunpack.c.l.b16 %v73
  %v249 = vunpack.c.h.b16 %v73
  %v250 = vunpack.c.l.b16 %v74
  %v251 = vunpack.c.h.b16 %v74
  %v252 = vunpack.c.l.b16 %v75
  %v253 = vunpack.c.h.b16 %v75
  %v254 = vunpack.c.l.b16 %v76
  %v255 = vunpack.c.h.b16 %v76
  %v256 = vunpack.c.l.b16 %v77
  %v257 = vunpack.c.h.b16 %v77
  %v258 = vunpack.c.l.b16 %v78
  %v259 = vunpack.c.h.b16 %v78
  %v260 = vunpack.c.l.b16 %v79
  %v261 = vunpack.c.h.b16 %v79
  %v262 = vunpack.c.l.b16 %v80
  %v263 = vunpack.c.h.b16 %v80
  %v264 = vunpack.c.l.b16 %v81
  %v265 = vunpack.c.h.b16 %v81
  %v266 = vunpack.c.l.b16 %v82
  %v267 = vunpack.c.h.b16 %v82
  %v268 = vunpack.c.l.b16 %v83
  %v269 = vunpack.c.h.b16 %v83
  %v270 = vunpack.c.l.b16 %v84
  %v271 = vunpack.c.h.b16 %v84
  %v272 = vunpack.c.l.b16 %v85
  %v273 = vunpack.c.h.b16 %v85
  %v274 = vunpack.c.l.b16 %v86
  %v275 = vunpack.c.h.b16 %v86
  %v276 = vunpack.c.l.b16 %v87
  %v277 = vunpack.c.h.b16 %v87
  %v278 = vunpack.c.l.b16 %v88
  %v279 = vunpack.c.h.b16 %v88
  %v280 = vunpack.c.l.b16 %v89
  %v281 = vunpack.c.h.b16 %v89
  %v282 = vunpack.c.l.b16 %v90
  %v283 = vunpack.c.h.b16 %v90
  %v284 = vunpack.c.l.b16 %v91
  %v285 = vunpack.c.h.b16 %v91
  %v286 = vunpack.c.l.b16 %v92
  %v287 = vunpack.c.h.b16 %v92
  %v288 = vunpack.c.l.b16 %v93
  %v289 = vunpack.c.h.b16 %v93
  %v290 = vunpack.c.l.b16 %v94
  %v291 = vunpack.c.h.b16 %v94
  %v292 = vunpack.c.l.b16 %v95
  %v293 = vunpack.c.h.b16 %v95
  %v294 = vunpack.c.l.b16 %v96
  %v295 = vunpack.c.h.b16 %v96
  %v296 = vunpack.c.l.b16 %v97
  %v297 = vunpack.c.h.b16 %v97
  %v298 = vunpack.c.l.b16 %v98
  %v299 = vunpack.c.h.b16 %v98
  %v300 = vunpack.c.l.b16 %v99
  %v301 = vunpack.c.h.b16 %v99
  %v302 = vpack.c.b16 %v178, %v174
  %v303 = vpack.c.b16 %v179, %v175
  %v304 = vpack.c.b16 %v180, %v176
  %v305 = vpack.c.b16 %v181, %v177
  %v306 = vpack.c.b16 %v186, %v182
  %v307 = vpack.c.b16 %v187, %v183
  %v308 = vpack.c.b16 %v188, %v184
  %v309 = vpack.c.b16 %v189, %v185
  %v310 = vpack.c.b16 %v194, %v190
  %v311 = vpack.c.b16 %v195, %v191
  %v312 = vpack.c.b16 %v196, %v192
  %v313 = vpack.c.b16 %v197, %v193
  %v314 = vpack.c.b16 %v202, %v198
  %v315 = vpack.c.b16 %v203, %v199
  %v316 = vpack.c.b16 %v204, %v200
  %v317 = vpack.c.b16 %v205, %v201
  %v318 = vpack.c.b16 %v210, %v206
  %v319 = vpack.c.b16 %v211, %v207
  %v320 = vpack.c.b16 %v212, %v208
  %v321 = vpack.c.b16 %v213, %v209
  %v322 = vpack.c.b16 %v218, %v214
  %v323 = vpack.c.b16 %v219, %v215
  %v324 = vpack.c.b16 %v220, %v216
  %v325 = vpack.c.b16 %v221, %v217
  %v326 = vpack.c.b16 %v226, %v222
  %v327 = vpack.c.b16 %v227, %v223
  %v328 = vpack.c.b16 %v228, %v224
  %v329 = vpack.c.b16 %v229, %v225
  %v330 = vpack.c.b16 %v234, %v230
  %v331 = vpack.c.b16 %v235, %v231
  %v332 = vpack.c.b16 %v236, %v232
  %v333 = vpack.c.b16 %v237, %v233
  %v334 = vpack.c.b16 %v242, %v238
  %v335 = vpack.c.b16 %v243, %v239
  %v336 = vpack.c.b16 %v244, %v240
  %v337 = vpack.c.b16 %v245, %v241
  %v338 = vpack.c.b16 %v250, %v246
  %v339 = vpack.c.b16 %v251, %v247
  %v340 = vpack.c.b16 %v252, %v248
  %v341 = vpack.c.b16 %v253, %v249
  %v342 = vpack.c.b16 %v258, %v254
  %v343 = vpack.c.b16 %v259, %v255
  %v344 = vpack.c.b16 %v260, %v256
  %v345 = vpack.c.b16 %v261, %v257
  %v346 = vpack.c.b16 %v266, %v262
  %v347 = vpack.c.b16 %v267, %v263
  %v348 = vpack.c.b16 %v268, %v264
  %v349 = vpack.c.b16 %v269, %v265
  %v350 = vpack.c.b16 %v274, %v270
  %v351 = vpack.c.b16 %v275, %v271
  %v352 = vpack.c.b16 %v276, %v272
  %v353 = vpack.c.b16 %v277, %v273
  %v354 = vpack.c.b16 %v282, %v278
  %v355 = vpack.c.b16 %v283, %v279
  %v356 = vpack.c.b16 %v284, %v280
  %v357 = vpack.c.b16 %v285, %v281
  %v358 = vpack.c.b16 %v290, %v286
  %v359 = vpack.c.b16 %v291, %v287
  %v360 = vpack.c.b16 %v292, %v288
  %v361 = vpack.c.b16 %v293, %v289
  %v362 = vpack.c.b16 %v298, %v294
  %v363 = vpack.c.b16 %v299, %v295
  %v364 = vpack.c.b16 %v300, %v296
  %v365 = vpack.c.b16 %v301, %v297
  %430 = vmatprep.subr.bf16.mxu0 %v331
  %431 = vmatpush1.bf16.msra.mxu0 %v330
  %432 = vmatprep.subr.bf16.mxu0 %v327
  %433 = vmatpush1.bf16.msra.mxu0 %v326
  %434 = vmatprep.subr.bf16.mxu0 %v323
  %435 = vmatpush1.bf16.msra.mxu0 %v322
  %436 = vmatprep.subr.bf16.mxu0 %v319
  %437 = vmatpush1.bf16.msra.mxu0 %v318
  %438 = vmatprep.subr.bf16.mxu0 %v315
  %439 = vmatpush1.bf16.msra.mxu0 %v314
  %440 = vmatprep.subr.bf16.mxu0 %v311
  %441 = vmatpush1.bf16.msra.mxu0 %v310
  %442 = vmatprep.subr.bf16.mxu0 %v307
  %443 = vmatpush1.bf16.msra.mxu0 %v306
  %444 = vmatprep.subr.bf16.mxu0 %v303
  %445 = vmatpush1.bf16.msra.mxu0 %v302
  %446 = vmatprep.subr.bf16.mxu0 %v363
  %447 = vmatpush2.bf16.msra.mxu0 %v362
  %448 = vmatprep.subr.bf16.mxu0 %v359
  %449 = vmatpush2.bf16.msra.mxu0 %v358
  %450 = vmatprep.subr.bf16.mxu0 %v355
  %451 = vmatpush2.bf16.msra.mxu0 %v354
  %452 = vmatprep.subr.bf16.mxu0 %v351
  %453 = vmatpush2.bf16.msra.mxu0 %v350
  %454 = vmatprep.subr.bf16.mxu0 %v347
  %455 = vmatpush2.bf16.msra.mxu0 %v346
  %456 = vmatprep.subr.bf16.mxu0 %v343
  %457 = vmatpush2.bf16.msra.mxu0 %v342
  %458 = vmatprep.subr.bf16.mxu0 %v339
  %459 = vmatpush2.bf16.msra.mxu0 %v338
  %460 = vmatprep.subr.bf16.mxu0 %v335
  %461 = vmatpush2.bf16.msra.mxu0 %v334
  %462 = vmatprep.mubr.bf16.mxu0 %v107
  %463 = vmatmul.mubr.bf16.gmra.mxu0 %v106
  %v464 = vpop.f32.mrf.mxu0
  %v465 = vadd.f32 0.0, %v464
  %v466 = vpop.f32.mrf.mxu0
  %v467 = vadd.f32 0.0, %v466
  %v468 = vpop.f32.mrf.mxu0
  %v469 = vadd.f32 0.0, %v468
  %v470 = vpop.f32.mrf.mxu0
  %v471 = vadd.f32 0.0, %v470
  %472 = vdwg.mxu0
  %473 = vmatprep.subr.bf16.mxu0 %v333
  %474 = vmatpush1.bf16.msra.mxu0 %v332
  %475 = vmatprep.subr.bf16.mxu0 %v329
  %476 = vmatpush1.bf16.msra.mxu0 %v328
  %477 = vmatprep.subr.bf16.mxu0 %v325
  %478 = vmatpush1.bf16.msra.mxu0 %v324
  %479 = vmatprep.subr.bf16.mxu0 %v321
  %480 = vmatpush1.bf16.msra.mxu0 %v320
  %481 = vmatprep.subr.bf16.mxu0 %v317
  %482 = vmatpush1.bf16.msra.mxu0 %v316
  %483 = vmatprep.subr.bf16.mxu0 %v313
  %484 = vmatpush1.bf16.msra.mxu0 %v312
  %485 = vmatprep.subr.bf16.mxu0 %v309
  %486 = vmatpush1.bf16.msra.mxu0 %v308
  %487 = vmatprep.subr.bf16.mxu0 %v305
  %488 = vmatpush1.bf16.msra.mxu0 %v304
  %489 = vmatprep.subr.bf16.mxu0 %v365
  %490 = vmatpush2.bf16.msra.mxu0 %v364
  %491 = vmatprep.subr.bf16.mxu0 %v361
  %492 = vmatpush2.bf16.msra.mxu0 %v360
  %493 = vmatprep.subr.bf16.mxu0 %v357
  %494 = vmatpush2.bf16.msra.mxu0 %v356
  %495 = vmatprep.subr.bf16.mxu0 %v353
  %496 = vmatpush2.bf16.msra.mxu0 %v352
  %497 = vmatprep.subr.bf16.mxu0 %v349
  %498 = vmatpush2.bf16.msra.mxu0 %v348
  %499 = vmatprep.subr.bf16.mxu0 %v345
  %500 = vmatpush2.bf16.msra.mxu0 %v344
  %501 = vmatprep.subr.bf16.mxu0 %v341
  %502 = vmatpush2.bf16.msra.mxu0 %v340
  %503 = vmatprep.subr.bf16.mxu0 %v337
  %504 = vmatpush2.bf16.msra.mxu0 %v336
  %505 = vmatprep.mubr.bf16.mxu0 %v107
  %506 = vmatmul.mubr.bf16.gmra.mxu0 %v106
  %v507 = vpop.f32.mrf.mxu0
  %v508 = vadd.f32 0.0, %v507
  %v509 = vpop.f32.mrf.mxu0
  %v510 = vadd.f32 0.0, %v509
  %v511 = vpop.f32.mrf.mxu0
  %v512 = vadd.f32 0.0, %v511
  %v513 = vpop.f32.mrf.mxu0
  %v514 = vadd.f32 0.0, %v513
  %515 = vdwg.mxu0
  %v516 = vadd.f32 %v26, %v465
  %v517 = vadd.f32 %v27, %v467
  %v518 = vadd.f32 %v28, %v508
  %v519 = vadd.f32 %v29, %v510
  %v520 = vadd.f32 %v30, %v469
  %v521 = vadd.f32 %v31, %v471
  %v522 = vadd.f32 %v32, %v512
  %v523 = vadd.f32 %v33, %v514
  %524 = vst [vmem:[#allocation2] sm:$0xff] %v516
  %525 = vst [vmem:[#allocation2 + $0x8] sm:$0xff] %v517
  %526 = vst [vmem:[#allocation2 + $0x10] sm:$0xff] %v518
  %527 = vst [vmem:[#allocation2 + $0x18] sm:$0xff] %v519
  %528 = vst [vmem:[#allocation2 + $0x20] sm:$0xff] %v520
  %529 = vst [vmem:[#allocation2 + $0x28] sm:$0xff] %v521
  %530 = vst [vmem:[#allocation2 + $0x30] sm:$0xff] %v522
  %531 = vst [vmem:[#allocation2 + $0x38] sm:$0xff] %v523
  // Predicated region
  $region18: #{mybert_forward.17} parent=0 // pred_check
    %p532 = pneg %p14
  $region19: #{mybert_forward.17} parent=0 // pred_check_branch
    %534 = sbr.rel (%p532) target = $region21
  $region20: #{mybert_forward.17} parent=0 // pred_region
    %v535 = vld [vmem:[#allocation2] sm:$0xff]
    %v536 = vld [vmem:[#allocation2 + $0x8] sm:$0xff]
    %v537 = vld [vmem:[#allocation2 + $0x10] sm:$0xff]
    %v538 = vld [vmem:[#allocation2 + $0x18] sm:$0xff]
    %v539 = vld [vmem:[#allocation2 + $0x20] sm:$0xff]
    %v540 = vld [vmem:[#allocation2 + $0x28] sm:$0xff]
    %v541 = vld [vmem:[#allocation2 + $0x30] sm:$0xff]
    %v542 = vld [vmem:[#allocation2 + $0x38] sm:$0xff]
    %v543 = vld [vmem:[%s2] sm:$0xf]
    %v544 = vunpack.c.l.bf16 %v543
    %v546 = vlaneseq
    %v547 = vshrl.u32 %v546, 7
    %v548 = vsub.s32 0, %v547
    %v549 = vrot.slane %v544, %v548
    %v550 = vlaneseq
    %v551 = vshrl.u32 %v550, 7
    %v552 = vsub.s32 2, %v551
    %v553 = vrot.slane %v544, %v552
    %v554 = vlaneseq
    %v555 = vshrl.u32 %v554, 7
    %v556 = vsub.s32 4, %v555
    %v557 = vrot.slane %v544, %v556
    %v558 = vlaneseq
    %v559 = vshrl.u32 %v558, 7
    %v560 = vsub.s32 6, %v559
    %v561 = vrot.slane %v544, %v560
    %v566 = vlaneseq
    %v567 = vshrl.u32 %v566, 7
    %v568 = vsub.s32 0, %v567
    %v569 = vrot.slane %v549, %v568
    %v570 = vlaneseq
    %v571 = vshrl.u32 %v570, 7
    %v572 = vsub.s32 0, %v571
    %v573 = vrot.slane %v553, %v572
    %v574 = vlaneseq
    %v575 = vshrl.u32 %v574, 7
    %v576 = vsub.s32 0, %v575
    %v577 = vrot.slane %v557, %v576
    %v578 = vlaneseq
    %v579 = vshrl.u32 %v578, 7
    %v580 = vsub.s32 0, %v579
    %v581 = vrot.slane %v561, %v580
    %v582 = vadd.f32 %v535, %v569
    %v583 = vadd.f32 %v536, %v573
    %v584 = vadd.f32 %v537, %v577
    %v585 = vadd.f32 %v538, %v581
    %v586 = vadd.f32 %v539, %v569
    %v587 = vadd.f32 %v540, %v573
    %v588 = vadd.f32 %v541, %v577
    %v589 = vadd.f32 %v542, %v581
    %v590 = vmul.f32 %v582, %v582
    %v591 = vmul.f32 %v583, %v583
    %v592 = vmul.f32 %v584, %v584
    %v593 = vmul.f32 %v585, %v585
    %v594 = vmul.f32 %v586, %v586
    %v595 = vmul.f32 %v587, %v587
    %v596 = vmul.f32 %v588, %v588
    %v597 = vmul.f32 %v589, %v589
    %v598 = vmul.f32 %v582, %v590
    %v599 = vmul.f32 %v583, %v591
    %v600 = vmul.f32 %v584, %v592
    %v601 = vmul.f32 %v585, %v593
    %v602 = vmul.f32 %v586, %v594
    %v603 = vmul.f32 %v587, %v595
    %v604 = vmul.f32 %v588, %v596
    %v605 = vmul.f32 %v589, %v597
    %v606 = vmul.f32 %v598, 0.044715
    %v607 = vmul.f32 %v599, 0.044715
    %v608 = vmul.f32 %v600, 0.044715
    %v609 = vmul.f32 %v601, 0.044715
    %v610 = vmul.f32 %v602, 0.044715
    %v611 = vmul.f32 %v603, 0.044715
    %v612 = vmul.f32 %v604, 0.044715
    %v613 = vmul.f32 %v605, 0.044715
    %v614 = vadd.f32 %v582, %v606
    %v615 = vadd.f32 %v583, %v607
    %v616 = vadd.f32 %v584, %v608
    %v617 = vadd.f32 %v585, %v609
    %v618 = vadd.f32 %v586, %v610
    %v619 = vadd.f32 %v587, %v611
    %v620 = vadd.f32 %v588, %v612
    %v621 = vadd.f32 %v589, %v613
    %v622 = vmul.f32 %v614, 0.7978846
    %v623 = vmul.f32 %v615, 0.7978846
    %v624 = vmul.f32 %v616, 0.7978846
    %v625 = vmul.f32 %v617, 0.7978846
    %v626 = vmul.f32 %v618, 0.7978846
    %v627 = vmul.f32 %v619, 0.7978846
    %v628 = vmul.f32 %v620, 0.7978846
    %v629 = vmul.f32 %v621, 0.7978846
    %v630 = vtanh.pop %v622
    %v631 = vtanh.pop %v623
    %v632 = vtanh.pop %v624
    %v633 = vtanh.pop %v625
    %v634 = vtanh.pop %v626
    %v635 = vtanh.pop %v627
    %v636 = vtanh.pop %v628
    %v637 = vtanh.pop %v629
    %v638 = vadd.f32 %v630, 1.0
    %v639 = vadd.f32 %v631, 1.0
    %v640 = vadd.f32 %v632, 1.0
    %v641 = vadd.f32 %v633, 1.0
    %v642 = vadd.f32 %v634, 1.0
    %v643 = vadd.f32 %v635, 1.0
    %v644 = vadd.f32 %v636, 1.0
    %v645 = vadd.f32 %v637, 1.0
    %v646 = vmul.f32 %v638, 0.5
    %v647 = vmul.f32 %v639, 0.5
    %v648 = vmul.f32 %v640, 0.5
    %v649 = vmul.f32 %v641, 0.5
    %v650 = vmul.f32 %v642, 0.5
    %v651 = vmul.f32 %v643, 0.5
    %v652 = vmul.f32 %v644, 0.5
    %v653 = vmul.f32 %v645, 0.5
    %v654 = vmul.f32 %v582, %v646
    %v655 = vmul.f32 %v583, %v647
    %v656 = vmul.f32 %v584, %v648
    %v657 = vmul.f32 %v585, %v649
    %v658 = vmul.f32 %v586, %v650
    %v659 = vmul.f32 %v587, %v651
    %v660 = vmul.f32 %v588, %v652
    %v661 = vmul.f32 %v589, %v653
    %v662 = vpack.c.bf16 %v658, %v654
    %v663 = vpack.c.bf16 %v659, %v655
    %v664 = vpack.c.bf16 %v660, %v656
    %v665 = vpack.c.bf16 %v661, %v657
    %v670 = vunpack.c.l.b16 %v662
    %v671 = vunpack.c.l.b16 %v663
    %v672 = vunpack.c.l.b16 %v664
    %v673 = vunpack.c.l.b16 %v665
    %v674 = vunpack.c.h.b16 %v662
    %v675 = vunpack.c.h.b16 %v663
    %v676 = vunpack.c.h.b16 %v664
    %v677 = vunpack.c.h.b16 %v665
    %v678 = vpack.c.b16 %v671, %v670
    %v679 = vpack.c.b16 %v673, %v672
    %v680 = vpack.c.b16 %v675, %v674
    %v681 = vpack.c.b16 %v677, %v676
    %686 = vst [vmem:[%s3] sm:$0xff] %v678
    %687 = vst [vmem:[%s3 + $0x8] sm:$0xff] %v679
    %688 = vst [vmem:[%s3 + $0x10] sm:$0xff] %v680
    %689 = vst [vmem:[%s3 + $0x18] sm:$0xff] %v681
  $region21: #{mybert_forward.17} parent=0 // pred_fallthru
    _
  // Predicated region
  $region22: #{mybert_forward.17} parent=0 // pred_check
    _
  $region23: #{mybert_forward.17} parent=0 // pred_check_branch
    %691 = sbr.rel (0) target = $region25
  $region24: #{mybert_forward.17} parent=0 // pred_region
    _
  $region25: #{mybert_forward.17} parent=0 // pred_fallthru
    _
  // Predicated region
  $region26: #{mybert_forward.17} parent=0 // pred_check
    _
  $region27: #{mybert_forward.17} parent=0 // pred_check_branch
    %693 = sbr.rel (0) target = $region29
  $region28: #{mybert_forward.17} parent=0 // pred_region
    _
  $region29: #{mybert_forward.17} parent=0 // pred_fallthru
    _

// kernel: mybert_forward.19
$region0: #{mybert_forward.19}
  #allocation0 [shape = 'u32[]', space=smem, size = 0x4, offset = 0x4, fixed_abs, tag = 'smem constant byte address 0x4 - core index']
  #allocation1 [shape = 'u32[144,128]{1,0:T(1,128)}', space=vmem, size = 0x12000, scoped, tag = 'internal scratch']
  #allocation2 [shape = 'f32[16,384]{1,0:T(8,128)}', space=vmem, size = 0x6000, scoped, tag = 'scratch operand']
  %s0 = inlined_call_operand.vmem [shape: bf16[16,256], index: 0, kind: input, shape index: {}]
  %s1 = inlined_call_operand.vmem [shape: bf16[256,768], index: 1, kind: input, shape index: {}]
  %s2 = inlined_call_operand.vmem [shape: bf16[1,768], index: 2, kind: input, shape index: {}]
  %s3 = inlined_call_operand.vmem [shape: bf16[16,768], index: 3, kind: output, shape index: {}]
  %s4 = sld [smem:[#allocation0]]
  $region101: #{mybert_forward.19} parent=0
    _
  %s6 = ssub.s32 1, %s4
  %s7 = scalar_select 0, %s6, %s4
  $region1: #{mybert_forward.19} parent=0
    #allocation3 [shape = 'u8[393216]{0}', space=vmem, size = 0x60000, scoped, tag = 'input window, operand 1']
    #allocation4 [shape = 'u8[24576]{0}', space=vmem, size = 0x6000, scoped, tag = 'output window, operand 0']
    loop: start=0, step=1, limit=4
    $region2: #{mybert_forward.19} parent=1 // loop_pre_header
      _
    $region3: #{mybert_forward.19} parent=1 // loop_header
      %s9 = sphi 0, %s13
      %p10 = scmp.ge.s32.totalorder %s9, 4
      %s16 = sphi 0, %s35
      %s17 = sphi 0, %s31
      %s18 = sphi 0, %s27
      %s19 = sphi 0, %s16
      %s20 = sphi 0, %s17
      %s21 = sphi 0, %s18
      %s22 = sphi 0, %s19
      %s23 = sphi 0, %s20
      %s24 = sphi 0, %s21
      %s40 = sphi 0, %s42
      %s43 = sphi 0, %s40
      %s44 = sphi 0, %s43
      %s60 = sphi 0, %s44
      %s68 = sphi 0, %s70
      %s71 = sphi 0, %s68
      %s72 = sphi 0, %s71
      %s88 = sphi 0, %s72
      %s94 = sphi 0, %s96
      %s97 = sphi 0, %s94
      %s98 = sphi 0, %s97
      %s114 = sphi 0, %s98
      %s122 = sphi 0, %s124
      %s125 = sphi 0, %s122
      %s126 = sphi 0, %s125
      %s142 = sphi 0, %s126
    $region4: #{mybert_forward.19} parent=1 // loop_header_branch
      %12 = sbr.rel (%p10) target = $region8
    $region5: #{mybert_forward.19} parent=1 // loop_body
      %s14 = ssub.s32 %s9, 1
      %s15 = ssub.s32 %s9, 2
      %s25 = sadd.s32 1, %s18
      %p26 = scmp.ge.s32.totalorder %s25, 1
      %s27 = scalar_select %p26, 0, %s25
      %s28 = sadd.s32 1, %s17
      %s29 = scalar_select %p26, %s28, %s17
      %p30 = scmp.ge.s32.totalorder %s29, 2
      %s31 = scalar_select %p30, 0, %s29
      %s32 = sadd.s32 1, %s16
      %s33 = scalar_select %p30, %s32, %s16
      %p34 = scmp.ge.s32.totalorder %s33, 1
      %s35 = scalar_select %p34, 0, %s33
      %s36 = ssub.s32 %s16, %s35
      %s37 = ssub.s32 %s18, %s27
      %s38 = sor.u32 %s36, %s37
      %p39 = scmp.eq.s32.totalorder %s38, 0
      %s41 = sadd.s32 %s40, 1
      %s42 = scalar_select %p39, %s40, %s41
      %p45 = pneg %p39
      %p46 = scmp.eq.s32.totalorder %s9, 1
      %p47 = por %p45, %p46
      %p48 = scmp.ne.s32.totalorder %s40, %s43
      %p49 = scmp.eq.s32.totalorder %s9, 0
      %p50 = por %p48, %p49
      %p51 = scmp.ne.s32.totalorder %s40, %s43
      %p52 = scmp.eq.s32.totalorder %s14, 1
      %p53 = por %p51, %p52
      %p54 = scmp.ne.s32.totalorder %s43, %s44
      %p55 = scmp.eq.s32.totalorder %s14, 0
      %p56 = por %p54, %p55
      %p57 = scmp.ne.s32.totalorder %s43, %s44
      %p58 = scmp.eq.s32.totalorder %s15, 1
      %p59 = por %p57, %p58
      %p61 = scmp.ne.s32.totalorder %s44, %s60
      %p62 = scmp.eq.s32.totalorder %s15, 0
      %p63 = por %p61, %p62
      %s64 = ssub.s32 %s18, %s27
      %s65 = ssub.s32 %s17, %s31
      %s66 = sor.u32 %s64, %s65
      %p67 = scmp.eq.s32.totalorder %s66, 0
      %s69 = sadd.s32 %s68, 1
      %s70 = scalar_select %p67, %s68, %s69
      %p73 = pneg %p67
      %p74 = scmp.eq.s32.totalorder %s9, 1
      %p75 = por %p73, %p74
      %p76 = scmp.ne.s32.totalorder %s68, %s71
      %p77 = scmp.eq.s32.totalorder %s9, 0
      %p78 = por %p76, %p77
      %p79 = scmp.ne.s32.totalorder %s68, %s71
      %p80 = scmp.eq.s32.totalorder %s14, 1
      %p81 = por %p79, %p80
      %p82 = scmp.ne.s32.totalorder %s71, %s72
      %p83 = scmp.eq.s32.totalorder %s14, 0
      %p84 = por %p82, %p83
      %p85 = scmp.ne.s32.totalorder %s71, %s72
      %p86 = scmp.eq.s32.totalorder %s15, 1
      %p87 = por %p85, %p86
      %p89 = scmp.ne.s32.totalorder %s72, %s88
      %p90 = scmp.eq.s32.totalorder %s15, 0
      %p91 = por %p89, %p90
      %s92 = ssub.s32 %s17, %s31
      %p93 = scmp.eq.s32.totalorder %s92, 0
      %s95 = sadd.s32 %s94, 1
      %s96 = scalar_select %p93, %s94, %s95
      %p99 = pneg %p93
      %p100 = scmp.eq.s32.totalorder %s9, 1
      %p101 = por %p99, %p100
      %p102 = scmp.ne.s32.totalorder %s94, %s97
      %p103 = scmp.eq.s32.totalorder %s9, 0
      %p104 = por %p102, %p103
      %p105 = scmp.ne.s32.totalorder %s94, %s97
      %p106 = scmp.eq.s32.totalorder %s14, 1
      %p107 = por %p105, %p106
      %p108 = scmp.ne.s32.totalorder %s97, %s98
      %p109 = scmp.eq.s32.totalorder %s14, 0
      %p110 = por %p108, %p109
      %p111 = scmp.ne.s32.totalorder %s97, %s98
      %p112 = scmp.eq.s32.totalorder %s15, 1
      %p113 = por %p111, %p112
      %p115 = scmp.ne.s32.totalorder %s98, %s114
      %p116 = scmp.eq.s32.totalorder %s15, 0
      %p117 = por %p115, %p116
      %s118 = ssub.s32 %s16, %s35
      %s119 = ssub.s32 %s17, %s31
      %s120 = sor.u32 %s118, %s119
      %p121 = scmp.eq.s32.totalorder %s120, 0
      %s123 = sadd.s32 %s122, 1
      %s124 = scalar_select %p121, %s122, %s123
      %p127 = pneg %p121
      %p128 = scmp.eq.s32.totalorder %s9, 1
      %p129 = por %p127, %p128
      %p130 = scmp.ne.s32.totalorder %s122, %s125
      %p131 = scmp.eq.s32.totalorder %s9, 0
      %p132 = por %p130, %p131
      %p133 = scmp.ne.s32.totalorder %s122, %s125
      %p134 = scmp.eq.s32.totalorder %s14, 1
      %p135 = por %p133, %p134
      %p136 = scmp.ne.s32.totalorder %s125, %s126
      %p137 = scmp.eq.s32.totalorder %s14, 0
      %p138 = por %p136, %p137
      %p139 = scmp.ne.s32.totalorder %s125, %s126
      %p140 = scmp.eq.s32.totalorder %s15, 1
      %p141 = por %p139, %p140
      %p143 = scmp.ne.s32.totalorder %s126, %s142
      %p144 = scmp.eq.s32.totalorder %s15, 0
      %p145 = por %p143, %p144
      %p146 = scmp.le.s32.totalorder 1, %s9
      %p147 = scmp.lt.s32.totalorder %s9, 3
      %p148 = pnand %p146, %p147
      %p149 = pneg %p148
      // Predicated region
      $region9: #{mybert_forward.19} parent=5 // pred_check
        _
      $region10: #{mybert_forward.19} parent=5 // pred_check_branch
        %151 = sbr.rel (%p148) target = $region12
      $region11: #{mybert_forward.19} parent=5 // pred_region
        %s152 = ssub.s32 %s9, 1
        // Predicated region
        $region13: #{mybert_forward.19} parent=11 // pred_check
          %p153 = pneg %p56
        $region14: #{mybert_forward.19} parent=11 // pred_check_branch
          %155 = sbr.rel (%p153) target = $region16
        $region15: #{mybert_forward.19} parent=11 // pred_region
          %s156 = smul.u32 2, %s19
          %s157 = smul.u32 2, %s21
          %p158 = scmp.lt.s32.totalorder %s156, 1
          %s159 = scalar_select %p158, %s156, 1
          %p160 = scmp.lt.s32.totalorder %s157, 1
          %s161 = scalar_select %p160, %s157, 1
          %s162 = smul.addr %s159, 2
          %s163 = sadd.s32 %s161, %s162
          %s164 = smul.addr %s163, 4
          %s165 = scalar_lea.vmem %s0, %s164
          %s166 = smul.u32 2, %s19
          %s167 = smul.u32 2, %s21
        $region16: #{mybert_forward.19} parent=11 // pred_fallthru
          _
      $region12: #{mybert_forward.19} parent=5 // pred_fallthru
        _
      %p168 = scmp.lt.s32.totalorder %s9, 2
      // Predicated region
      $region17: #{mybert_forward.19} parent=5 // pred_check
        %p169 = pneg %p168
      $region18: #{mybert_forward.19} parent=5 // pred_check_branch
        %171 = sbr.rel (%p169) target = $region20
      $region19: #{mybert_forward.19} parent=5 // pred_region
        // Predicated region
        $region21: #{mybert_forward.19} parent=19 // pred_check
          %p172 = pneg %p78
        $region22: #{mybert_forward.19} parent=19 // pred_check_branch
          %174 = sbr.rel (%p172) target = $region24
        $region23: #{mybert_forward.19} parent=19 // pred_region
          %s175 = sand.u32 %s68, 1
          %s176 = sand.u32 %s68, 1
          %s177 = smul.addr %s176, 384
          %s178 = scalar_lea.vmem [#allocation3], %s177
          %s179 = smul.u32 32, %s18
          %s180 = smul.u32 3, %s17
          %s181 = smul.addr %s179, 6
          %s182 = sadd.s32 %s180, %s181
          %s183 = smul.addr %s182, 4
          %s184 = scalar_lea.vmem %s1, %s183
          // Predicated region
          $region25: #{mybert_forward.19} parent=23 // pred_check
            _
          $region26: #{mybert_forward.19} parent=23 // pred_check_branch
            %186 = sbr.rel (0) target = $region28
          $region27: #{mybert_forward.19} parent=23 // pred_region
            // Predicated region
            $region29: #{mybert_forward.19} parent=27 // pred_check
              _
            $region30: #{mybert_forward.19} parent=27 // pred_check_branch
              %188 = sbr.rel (0) target = $region32
            $region31: #{mybert_forward.19} parent=27 // pred_region
              %s189 = scalar_lea.vmem %s184, 8
              %s190 = scalar_lea.vmem %s178, 8 [#allocation3]
              loop: start=0, step=1, limit=1
              $region33: #{mybert_forward.19} parent=31 // loop_pre_header
                _
              $region34: #{mybert_forward.19} parent=31 // loop_header
                %s192 = sphi 0, %s196
                %p193 = scmp.ge.s32.totalorder %s192, 1
                %s197 = sphi %s184, %s184
                %s198 = sphi %s178, %s178
              $region35: #{mybert_forward.19} parent=31 // loop_header_branch
                %195 = sbr.rel (%p193) target = $region39
              $region36: #{mybert_forward.19} parent=31 // loop_body
                %v199 = vld [vmem:[%s197] sm:$0xff]
                %200 = vst [vmem:[%s198] sm:$0xff] %v199
                %v201 = vld [vmem:[%s197 + $0x18] sm:$0xff]
                %202 = vst [vmem:[%s198 + $0xc] sm:$0xff] %v201
                %v203 = vld [vmem:[%s197 + $0x30] sm:$0xff]
                %204 = vst [vmem:[%s198 + $0x18] sm:$0xff] %v203
                %v205 = vld [vmem:[%s197 + $0x48] sm:$0xff]
                %206 = vst [vmem:[%s198 + $0x24] sm:$0xff] %v205
                %v207 = vld [vmem:[%s197 + $0x60] sm:$0xff]
                %208 = vst [vmem:[%s198 + $0x30] sm:$0xff] %v207
                %v209 = vld [vmem:[%s197 + $0x78] sm:$0xff]
                %210 = vst [vmem:[%s198 + $0x3c] sm:$0xff] %v209
                %v211 = vld [vmem:[%s197 + $0x90] sm:$0xff]
                %212 = vst [vmem:[%s198 + $0x48] sm:$0xff] %v211
                %v213 = vld [vmem:[%s197 + $0xa8] sm:$0xff]
                %214 = vst [vmem:[%s198 + $0x54] sm:$0xff] %v213
                %v215 = vld [vmem:[%s197 + $0xc0] sm:$0xff]
                %216 = vst [vmem:[%s198 + $0x60] sm:$0xff] %v215
                %v217 = vld [vmem:[%s197 + $0xd8] sm:$0xff]
                %218 = vst [vmem:[%s198 + $0x6c] sm:$0xff] %v217
                %v219 = vld [vmem:[%s197 + $0xf0] sm:$0xff]
                %220 = vst [vmem:[%s198 + $0x78] sm:$0xff] %v219
                %v221 = vld [vmem:[%s197 + $0x108] sm:$0xff]
                %222 = vst [vmem:[%s198 + $0x84] sm:$0xff] %v221
                %v223 = vld [vmem:[%s197 + $0x120] sm:$0xff]
                %224 = vst [vmem:[%s198 + $0x90] sm:$0xff] %v223
                %v225 = vld [vmem:[%s197 + $0x138] sm:$0xff]
                %226 = vst [vmem:[%s198 + $0x9c] sm:$0xff] %v225
                %v227 = vld [vmem:[%s197 + $0x150] sm:$0xff]
                %228 = vst [vmem:[%s198 + $0xa8] sm:$0xff] %v227
                %v229 = vld [vmem:[%s197 + $0x168] sm:$0xff]
                %230 = vst [vmem:[%s198 + $0xb4] sm:$0xff] %v229
                %v231 = vld [vmem:[%s197 + $0x180] sm:$0xff]
                %232 = vst [vmem:[%s198 + $0xc0] sm:$0xff] %v231
                %v233 = vld [vmem:[%s197 + $0x198] sm:$0xff]
                %234 = vst [vmem:[%s198 + $0xcc] sm:$0xff] %v233
                %v235 = vld [vmem:[%s197 + $0x1b0] sm:$0xff]
                %236 = vst [vmem:[%s198 + $0xd8] sm:$0xff] %v235
                %v237 = vld [vmem:[%s197 + $0x1c8] sm:$0xff]
                %238 = vst [vmem:[%s198 + $0xe4] sm:$0xff] %v237
                %v239 = vld [vmem:[%s197 + $0x1e0] sm:$0xff]
                %240 = vst [vmem:[%s198 + $0xf0] sm:$0xff] %v239
                %v241 = vld [vmem:[%s197 + $0x1f8] sm:$0xff]
                %242 = vst [vmem:[%s198 + $0xfc] sm:$0xff] %v241
                %v243 = vld [vmem:[%s197 + $0x210] sm:$0xff]
                %244 = vst [vmem:[%s198 + $0x108] sm:$0xff] %v243
                %v245 = vld [vmem:[%s197 + $0x228] sm:$0xff]
                %246 = vst [vmem:[%s198 + $0x114] sm:$0xff] %v245
                %v247 = vld [vmem:[%s197 + $0x240] sm:$0xff]
                %248 = vst [vmem:[%s198 + $0x120] sm:$0xff] %v247
                %v249 = vld [vmem:[%s197 + $0x258] sm:$0xff]
                %250 = vst [vmem:[%s198 + $0x12c] sm:$0xff] %v249
                %v251 = vld [vmem:[%s197 + $0x270] sm:$0xff]
                %252 = vst [vmem:[%s198 + $0x138] sm:$0xff] %v251
                %v253 = vld [vmem:[%s197 + $0x288] sm:$0xff]
                %254 = vst [vmem:[%s198 + $0x144] sm:$0xff] %v253
                %v255 = vld [vmem:[%s197 + $0x2a0] sm:$0xff]
                %256 = vst [vmem:[%s198 + $0x150] sm:$0xff] %v255
                %v257 = vld [vmem:[%s197 + $0x2b8] sm:$0xff]
                %258 = vst [vmem:[%s198 + $0x15c] sm:$0xff] %v257
                %v259 = vld [vmem:[%s197 + $0x2d0] sm:$0xff]
                %260 = vst [vmem:[%s198 + $0x168] sm:$0xff] %v259
                %v261 = vld [vmem:[%s197 + $0x2e8] sm:$0xff]
                %262 = vst [vmem:[%s198 + $0x174] sm:$0xff] %v261
              $region37: #{mybert_forward.19} parent=31 // loop_footer
                %s196 = sadd.s32 1, %s192
              $region38: #{mybert_forward.19} parent=31 // loop_footer_branch
                %191 = sbr.rel target = $region34
              $region39: #{mybert_forward.19} parent=31 // loop_exit
                _
              %s264 = ssub.s32 16, 1
              loop: start=0, step=1, limit=1
              $region40: #{mybert_forward.19} parent=31 // loop_pre_header
                _
              $region41: #{mybert_forward.19} parent=31 // loop_header
                %s266 = sphi 0, %s270
                %p267 = scmp.ge.s32.totalorder %s266, 1
                %s271 = sphi %s189, %s189
                %s272 = sphi %s190, %s190
              $region42: #{mybert_forward.19} parent=31 // loop_header_branch
                %269 = sbr.rel (%p267) target = $region46
              $region43: #{mybert_forward.19} parent=31 // loop_body
                %v273 = vld [vmem:[%s271] sm:%s264]
                %274 = vst [vmem:[%s272] sm:%s264] %v273
                %v275 = vld [vmem:[%s271 + $0x18] sm:%s264]
                %276 = vst [vmem:[%s272 + $0xc] sm:%s264] %v275
                %v277 = vld [vmem:[%s271 + $0x30] sm:%s264]
                %278 = vst [vmem:[%s272 + $0x18] sm:%s264] %v277
                %v279 = vld [vmem:[%s271 + $0x48] sm:%s264]
                %280 = vst [vmem:[%s272 + $0x24] sm:%s264] %v279
                %v281 = vld [vmem:[%s271 + $0x60] sm:%s264]
                %282 = vst [vmem:[%s272 + $0x30] sm:%s264] %v281
                %v283 = vld [vmem:[%s271 + $0x78] sm:%s264]
                %284 = vst [vmem:[%s272 + $0x3c] sm:%s264] %v283
                %v285 = vld [vmem:[%s271 + $0x90] sm:%s264]
                %286 = vst [vmem:[%s272 + $0x48] sm:%s264] %v285
                %v287 = vld [vmem:[%s271 + $0xa8] sm:%s264]
                %288 = vst [vmem:[%s272 + $0x54] sm:%s264] %v287
                %v289 = vld [vmem:[%s271 + $0xc0] sm:%s264]
                %290 = vst [vmem:[%s272 + $0x60] sm:%s264] %v289
                %v291 = vld [vmem:[%s271 + $0xd8] sm:%s264]
                %292 = vst [vmem:[%s272 + $0x6c] sm:%s264] %v291
                %v293 = vld [vmem:[%s271 + $0xf0] sm:%s264]
                %294 = vst [vmem:[%s272 + $0x78] sm:%s264] %v293
                %v295 = vld [vmem:[%s271 + $0x108] sm:%s264]
                %296 = vst [vmem:[%s272 + $0x84] sm:%s264] %v295
                %v297 = vld [vmem:[%s271 + $0x120] sm:%s264]
                %298 = vst [vmem:[%s272 + $0x90] sm:%s264] %v297
                %v299 = vld [vmem:[%s271 + $0x138] sm:%s264]
                %300 = vst [vmem:[%s272 + $0x9c] sm:%s264] %v299
                %v301 = vld [vmem:[%s271 + $0x150] sm:%s264]
                %302 = vst [vmem:[%s272 + $0xa8] sm:%s264] %v301
                %v303 = vld [vmem:[%s271 + $0x168] sm:%s264]
                %304 = vst [vmem:[%s272 + $0xb4] sm:%s264] %v303
                %v305 = vld [vmem:[%s271 + $0x180] sm:%s264]
                %306 = vst [vmem:[%s272 + $0xc0] sm:%s264] %v305
                %v307 = vld [vmem:[%s271 + $0x198] sm:%s264]
                %308 = vst [vmem:[%s272 + $0xcc] sm:%s264] %v307
                %v309 = vld [vmem:[%s271 + $0x1b0] sm:%s264]
                %310 = vst [vmem:[%s272 + $0xd8] sm:%s264] %v309
                %v311 = vld [vmem:[%s271 + $0x1c8] sm:%s264]
                %312 = vst [vmem:[%s272 + $0xe4] sm:%s264] %v311
                %v313 = vld [vmem:[%s271 + $0x1e0] sm:%s264]
                %314 = vst [vmem:[%s272 + $0xf0] sm:%s264] %v313
                %v315 = vld [vmem:[%s271 + $0x1f8] sm:%s264]
                %316 = vst [vmem:[%s272 + $0xfc] sm:%s264] %v315
                %v317 = vld [vmem:[%s271 + $0x210] sm:%s264]
                %318 = vst [vmem:[%s272 + $0x108] sm:%s264] %v317
                %v319 = vld [vmem:[%s271 + $0x228] sm:%s264]
                %320 = vst [vmem:[%s272 + $0x114] sm:%s264] %v319
                %v321 = vld [vmem:[%s271 + $0x240] sm:%s264]
                %322 = vst [vmem:[%s272 + $0x120] sm:%s264] %v321
                %v323 = vld [vmem:[%s271 + $0x258] sm:%s264]
                %324 = vst [vmem:[%s272 + $0x12c] sm:%s264] %v323
                %v325 = vld [vmem:[%s271 + $0x270] sm:%s264]
                %326 = vst [vmem:[%s272 + $0x138] sm:%s264] %v325
                %v327 = vld [vmem:[%s271 + $0x288] sm:%s264]
                %328 = vst [vmem:[%s272 + $0x144] sm:%s264] %v327
                %v329 = vld [vmem:[%s271 + $0x2a0] sm:%s264]
                %330 = vst [vmem:[%s272 + $0x150] sm:%s264] %v329
                %v331 = vld [vmem:[%s271 + $0x2b8] sm:%s264]
                %332 = vst [vmem:[%s272 + $0x15c] sm:%s264] %v331
                %v333 = vld [vmem:[%s271 + $0x2d0] sm:%s264]
                %334 = vst [vmem:[%s272 + $0x168] sm:%s264] %v333
                %v335 = vld [vmem:[%s271 + $0x2e8] sm:%s264]
                %336 = vst [vmem:[%s272 + $0x174] sm:%s264] %v335
              $region44: #{mybert_forward.19} parent=31 // loop_footer
                %s270 = sadd.s32 1, %s266
              $region45: #{mybert_forward.19} parent=31 // loop_footer_branch
                %265 = sbr.rel target = $region41
              $region46: #{mybert_forward.19} parent=31 // loop_exit
                _
            $region32: #{mybert_forward.19} parent=27 // pred_fallthru
              _
          $region28: #{mybert_forward.19} parent=23 // pred_fallthru
            _
          %337 = vnop
        $region24: #{mybert_forward.19} parent=19 // pred_fallthru
          _
        // Predicated region
        $region47: #{mybert_forward.19} parent=19 // pred_check
          %p338 = pneg %p104
        $region48: #{mybert_forward.19} parent=19 // pred_check_branch
          %340 = sbr.rel (%p338) target = $region50
        $region49: #{mybert_forward.19} parent=19 // pred_region
          %s341 = smul.u32 3, %s17
          %p342 = scmp.lt.s32.totalorder %s341, 5
          %s343 = scalar_select %p342, %s341, 5
          %s344 = scalar_lea.vmem %s2, %s343
          %s345 = smul.u32 3, %s17
        $region50: #{mybert_forward.19} parent=19 // pred_fallthru
          _
      $region20: #{mybert_forward.19} parent=5 // pred_fallthru
        _
      %p346 = scmp.le.s32.totalorder 1, %s9
      %p347 = scmp.lt.s32.totalorder %s9, 3
      %p348 = pnand %p346, %p347
      %p349 = pneg %p348
      // Predicated region
      $region51: #{mybert_forward.19} parent=5 // pred_check
        _
      $region52: #{mybert_forward.19} parent=5 // pred_check_branch
        %351 = sbr.rel (%p348) target = $region54
      $region53: #{mybert_forward.19} parent=5 // pred_region
        %s352 = ssub.s32 %s9, 1
        %s353 = sand.u32 %s71, 1
        %s354 = sand.u32 %s71, 1
        %s355 = smul.addr %s354, 384
        %s356 = scalar_lea.vmem [#allocation3], %s355
        // Predicated region
        $region55: #{mybert_forward.19} parent=53 // pred_check
          %p357 = pneg %p84
        $region56: #{mybert_forward.19} parent=53 // pred_check_branch
          %359 = sbr.rel (%p357) target = $region58
        $region57: #{mybert_forward.19} parent=53 // pred_region
          _
        $region58: #{mybert_forward.19} parent=53 // pred_fallthru
          _
        %s360 = smul.u32 2, %s19
        %s361 = smul.u32 2, %s21
        %p362 = scmp.lt.s32.totalorder %s360, 1
        %s363 = scalar_select %p362, %s360, 1
        %p364 = scmp.lt.s32.totalorder %s361, 1
        %s365 = scalar_select %p364, %s361, 1
        %s366 = smul.addr %s363, 2
        %s367 = sadd.s32 %s365, %s366
        %s368 = smul.addr %s367, 4
        %s369 = scalar_lea.vmem %s0, %s368
        %p370 = pneg %p56
        %p371 = pneg %p53
        %s372 = sand.u32 %s71, 1
        %s373 = sand.u32 %s71, 1
        %s374 = smul.addr %s373, 384
        %s375 = scalar_lea.vmem [#allocation3], %s374
        %p376 = pneg %p84
        %p377 = pneg %p81
        %s378 = smul.u32 3, %s20
        %p379 = scmp.lt.s32.totalorder %s378, 5
        %s380 = scalar_select %p379, %s378, 5
        %s381 = scalar_lea.vmem %s2, %s380
        %p382 = pneg %p110
        %p383 = pneg %p107
        %p384 = pneg %p138
        %p385 = pneg %p135
        %s386 = sand.u32 %s125, 1
        %s387 = sand.u32 %s125, 1
        %s388 = smul.addr %s387, 24
        %s389 = scalar_lea.vmem [#allocation4], %s388
        %s390 = smul.u32 2, %s19
        %s391 = smul.u32 2, %s21
        %p392 = scmp.lt.s32.totalorder %s390, 1
        %s393 = scalar_select %p392, %s390, 1
        %p394 = scmp.lt.s32.totalorder %s391, 1
        %s395 = scalar_select %p394, %s391, 1
        %s396 = smul.addr %s393, 2
        %s397 = sadd.s32 %s395, %s396
        %s398 = smul.addr %s397, 4
        %s399 = scalar_lea.vmem %s0, %s398
        %s400 = smul.u32 2, %s19
        %s401 = smul.u32 2, %s21
        %s402 = smul.u32 32, %s21
        %s403 = smul.u32 3, %s20
        %s404 = smul.u32 3, %s20
        %p405 = scmp.lt.s32.totalorder %s404, 5
        %s406 = scalar_select %p405, %s404, 5
        %s407 = scalar_lea.vmem %s2, %s406
        %s408 = smul.u32 3, %s20
        %s409 = smul.u32 2, %s19
        %s410 = smul.u32 3, %s20
        %p412 = scmp.eq.s32.totalorder %s21, 0
        // Predicated region
        $region59: #{mybert_forward.19} parent=53 // pred_check
          %p413 = pneg %p412
        $region60: #{mybert_forward.19} parent=53 // pred_check_branch
          %415 = sbr.rel (%p413) target = $region62
        $region61: #{mybert_forward.19} parent=53 // pred_region
          %416 = vst [vmem:[#allocation2] sm:$0xff] 0.0
          %417 = vst [vmem:[#allocation2 + $0x8] sm:$0xff] 0.0
          %418 = vst [vmem:[#allocation2 + $0x10] sm:$0xff] 0.0
          %419 = vst [vmem:[#allocation2 + $0x18] sm:$0xff] 0.0
          %420 = vst [vmem:[#allocation2 + $0x20] sm:$0xff] 0.0
          %421 = vst [vmem:[#allocation2 + $0x28] sm:$0xff] 0.0
        $region62: #{mybert_forward.19} parent=53 // pred_fallthru
          _
        %v422 = vld [vmem:[#allocation2] sm:$0xff]
        %v423 = vld [vmem:[#allocation2 + $0x8] sm:$0xff]
        %v424 = vld [vmem:[#allocation2 + $0x10] sm:$0xff]
        %v425 = vld [vmem:[#allocation2 + $0x18] sm:$0xff]
        %v426 = vld [vmem:[#allocation2 + $0x20] sm:$0xff]
        %v427 = vld [vmem:[#allocation2 + $0x28] sm:$0xff]
        %v428 = vld [vmem:[%s399] sm:$0xff]
        %v429 = vld [vmem:[%s399 + $0x8] sm:$0xff]
        %v430 = vld [vmem:[%s356] sm:$0xff]
        %v431 = vld [vmem:[%s356 + $0x8] sm:$0xf]
        %v432 = vld [vmem:[%s356 + $0xc] sm:$0xff]
        %v433 = vld [vmem:[%s356 + $0x14] sm:$0xf]
        %v434 = vld [vmem:[%s356 + $0x18] sm:$0xff]
        %v435 = vld [vmem:[%s356 + $0x20] sm:$0xf]
        %v436 = vld [vmem:[%s356 + $0x24] sm:$0xff]
        %v437 = vld [vmem:[%s356 + $0x2c] sm:$0xf]
        %v438 = vld [vmem:[%s356 + $0x30] sm:$0xff]
        %v439 = vld [vmem:[%s356 + $0x38] sm:$0xf]
        %v440 = vld [vmem:[%s356 + $0x3c] sm:$0xff]
        %v441 = vld [vmem:[%s356 + $0x44] sm:$0xf]
        %v442 = vld [vmem:[%s356 + $0x48] sm:$0xff]
        %v443 = vld [vmem:[%s356 + $0x50] sm:$0xf]
        %v444 = vld [vmem:[%s356 + $0x54] sm:$0xff]
        %v445 = vld [vmem:[%s356 + $0x5c] sm:$0xf]
        %v446 = vld [vmem:[%s356 + $0x60] sm:$0xff]
        %v447 = vld [vmem:[%s356 + $0x68] sm:$0xf]
        %v448 = vld [vmem:[%s356 + $0x6c] sm:$0xff]
        %v449 = vld [vmem:[%s356 + $0x74] sm:$0xf]
        %v450 = vld [vmem:[%s356 + $0x78] sm:$0xff]
        %v451 = vld [vmem:[%s356 + $0x80] sm:$0xf]
        %v452 = vld [vmem:[%s356 + $0x84] sm:$0xff]
        %v453 = vld [vmem:[%s356 + $0x8c] sm:$0xf]
        %v454 = vld [vmem:[%s356 + $0x90] sm:$0xff]
        %v455 = vld [vmem:[%s356 + $0x98] sm:$0xf]
        %v456 = vld [vmem:[%s356 + $0x9c] sm:$0xff]
        %v457 = vld [vmem:[%s356 + $0xa4] sm:$0xf]
        %v458 = vld [vmem:[%s356 + $0xa8] sm:$0xff]
        %v459 = vld [vmem:[%s356 + $0xb0] sm:$0xf]
        %v460 = vld [vmem:[%s356 + $0xb4] sm:$0xff]
        %v461 = vld [vmem:[%s356 + $0xbc] sm:$0xf]
        %v462 = vld [vmem:[%s356 + $0xc0] sm:$0xff]
        %v463 = vld [vmem:[%s356 + $0xc8] sm:$0xf]
        %v464 = vld [vmem:[%s356 + $0xcc] sm:$0xff]
        %v465 = vld [vmem:[%s356 + $0xd4] sm:$0xf]
        %v466 = vld [vmem:[%s356 + $0xd8] sm:$0xff]
        %v467 = vld [vmem:[%s356 + $0xe0] sm:$0xf]
        %v468 = vld [vmem:[%s356 + $0xe4] sm:$0xff]
        %v469 = vld [vmem:[%s356 + $0xec] sm:$0xf]
        %v470 = vld [vmem:[%s356 + $0xf0] sm:$0xff]
        %v471 = vld [vmem:[%s356 + $0xf8] sm:$0xf]
        %v472 = vld [vmem:[%s356 + $0xfc] sm:$0xff]
        %v473 = vld [vmem:[%s356 + $0x104] sm:$0xf]
        %v474 = vld [vmem:[%s356 + $0x108] sm:$0xff]
        %v475 = vld [vmem:[%s356 + $0x110] sm:$0xf]
        %v476 = vld [vmem:[%s356 + $0x114] sm:$0xff]
        %v477 = vld [vmem:[%s356 + $0x11c] sm:$0xf]
        %v478 = vld [vmem:[%s356 + $0x120] sm:$0xff]
        %v479 = vld [vmem:[%s356 + $0x128] sm:$0xf]
        %v480 = vld [vmem:[%s356 + $0x12c] sm:$0xff]
        %v481 = vld [vmem:[%s356 + $0x134] sm:$0xf]
        %v482 = vld [vmem:[%s356 + $0x138] sm:$0xff]
        %v483 = vld [vmem:[%s356 + $0x140] sm:$0xf]
        %v484 = vld [vmem:[%s356 + $0x144] sm:$0xff]
        %v485 = vld [vmem:[%s356 + $0x14c] sm:$0xf]
        %v486 = vld [vmem:[%s356 + $0x150] sm:$0xff]
        %v487 = vld [vmem:[%s356 + $0x158] sm:$0xf]
        %v488 = vld [vmem:[%s356 + $0x15c] sm:$0xff]
        %v489 = vld [vmem:[%s356 + $0x164] sm:$0xf]
        %v490 = vld [vmem:[%s356 + $0x168] sm:$0xff]
        %v491 = vld [vmem:[%s356 + $0x170] sm:$0xf]
        %v492 = vld [vmem:[%s356 + $0x174] sm:$0xff]
        %v493 = vld [vmem:[%s356 + $0x17c] sm:$0xf]
        %v496 = vunpack.c.l.b16 %v428
        %v497 = vunpack.c.h.b16 %v428
        %v498 = vunpack.c.l.b16 %v429
        %v499 = vunpack.c.h.b16 %v429
        %v500 = vpack.c.b16 %v498, %v496
        %v501 = vpack.c.b16 %v499, %v497
        %v568 = vunpack.c.l.b16 %v430
        %v569 = vunpack.c.h.b16 %v430
        %v570 = vunpack.c.l.b16 %v431
        %v571 = vunpack.c.l.b16 %v432
        %v572 = vunpack.c.h.b16 %v432
        %v573 = vunpack.c.l.b16 %v433
        %v574 = vunpack.c.l.b16 %v434
        %v575 = vunpack.c.h.b16 %v434
        %v576 = vunpack.c.l.b16 %v435
        %v577 = vunpack.c.l.b16 %v436
        %v578 = vunpack.c.h.b16 %v436
        %v579 = vunpack.c.l.b16 %v437
        %v580 = vunpack.c.l.b16 %v438
        %v581 = vunpack.c.h.b16 %v438
        %v582 = vunpack.c.l.b16 %v439
        %v583 = vunpack.c.l.b16 %v440
        %v584 = vunpack.c.h.b16 %v440
        %v585 = vunpack.c.l.b16 %v441
        %v586 = vunpack.c.l.b16 %v442
        %v587 = vunpack.c.h.b16 %v442
        %v588 = vunpack.c.l.b16 %v443
        %v589 = vunpack.c.l.b16 %v444
        %v590 = vunpack.c.h.b16 %v444
        %v591 = vunpack.c.l.b16 %v445
        %v592 = vunpack.c.l.b16 %v446
        %v593 = vunpack.c.h.b16 %v446
        %v594 = vunpack.c.l.b16 %v447
        %v595 = vunpack.c.l.b16 %v448
        %v596 = vunpack.c.h.b16 %v448
        %v597 = vunpack.c.l.b16 %v449
        %v598 = vunpack.c.l.b16 %v450
        %v599 = vunpack.c.h.b16 %v450
        %v600 = vunpack.c.l.b16 %v451
        %v601 = vunpack.c.l.b16 %v452
        %v602 = vunpack.c.h.b16 %v452
        %v603 = vunpack.c.l.b16 %v453
        %v604 = vunpack.c.l.b16 %v454
        %v605 = vunpack.c.h.b16 %v454
        %v606 = vunpack.c.l.b16 %v455
        %v607 = vunpack.c.l.b16 %v456
        %v608 = vunpack.c.h.b16 %v456
        %v609 = vunpack.c.l.b16 %v457
        %v610 = vunpack.c.l.b16 %v458
        %v611 = vunpack.c.h.b16 %v458
        %v612 = vunpack.c.l.b16 %v459
        %v613 = vunpack.c.l.b16 %v460
        %v614 = vunpack.c.h.b16 %v460
        %v615 = vunpack.c.l.b16 %v461
        %v616 = vunpack.c.l.b16 %v462
        %v617 = vunpack.c.h.b16 %v462
        %v618 = vunpack.c.l.b16 %v463
        %v619 = vunpack.c.l.b16 %v464
        %v620 = vunpack.c.h.b16 %v464
        %v621 = vunpack.c.l.b16 %v465
        %v622 = vunpack.c.l.b16 %v466
        %v623 = vunpack.c.h.b16 %v466
        %v624 = vunpack.c.l.b16 %v467
        %v625 = vunpack.c.l.b16 %v468
        %v626 = vunpack.c.h.b16 %v468
        %v627 = vunpack.c.l.b16 %v469
        %v628 = vunpack.c.l.b16 %v470
        %v629 = vunpack.c.h.b16 %v470
        %v630 = vunpack.c.l.b16 %v471
        %v631 = vunpack.c.l.b16 %v472
        %v632 = vunpack.c.h.b16 %v472
        %v633 = vunpack.c.l.b16 %v473
        %v634 = vunpack.c.l.b16 %v474
        %v635 = vunpack.c.h.b16 %v474
        %v636 = vunpack.c.l.b16 %v475
        %v637 = vunpack.c.l.b16 %v476
        %v638 = vunpack.c.h.b16 %v476
        %v639 = vunpack.c.l.b16 %v477
        %v640 = vunpack.c.l.b16 %v478
        %v641 = vunpack.c.h.b16 %v478
        %v642 = vunpack.c.l.b16 %v479
        %v643 = vunpack.c.l.b16 %v480
        %v644 = vunpack.c.h.b16 %v480
        %v645 = vunpack.c.l.b16 %v481
        %v646 = vunpack.c.l.b16 %v482
        %v647 = vunpack.c.h.b16 %v482
        %v648 = vunpack.c.l.b16 %v483
        %v649 = vunpack.c.l.b16 %v484
        %v650 = vunpack.c.h.b16 %v484
        %v651 = vunpack.c.l.b16 %v485
        %v652 = vunpack.c.l.b16 %v486
        %v653 = vunpack.c.h.b16 %v486
        %v654 = vunpack.c.l.b16 %v487
        %v655 = vunpack.c.l.b16 %v488
        %v656 = vunpack.c.h.b16 %v488
        %v657 = vunpack.c.l.b16 %v489
        %v658 = vunpack.c.l.b16 %v490
        %v659 = vunpack.c.h.b16 %v490
        %v660 = vunpack.c.l.b16 %v491
        %v661 = vunpack.c.l.b16 %v492
        %v662 = vunpack.c.h.b16 %v492
        %v663 = vunpack.c.l.b16 %v493
        %v664 = vpack.c.b16 %v571, %v568
        %v665 = vpack.c.b16 %v572, %v569
        %v666 = vpack.c.b16 %v573, %v570
        %v667 = vpack.c.b16 %v577, %v574
        %v668 = vpack.c.b16 %v578, %v575
        %v669 = vpack.c.b16 %v579, %v576
        %v670 = vpack.c.b16 %v583, %v580
        %v671 = vpack.c.b16 %v584, %v581
        %v672 = vpack.c.b16 %v585, %v582
        %v673 = vpack.c.b16 %v589, %v586
        %v674 = vpack.c.b16 %v590, %v587
        %v675 = vpack.c.b16 %v591, %v588
        %v676 = vpack.c.b16 %v595, %v592
        %v677 = vpack.c.b16 %v596, %v593
        %v678 = vpack.c.b16 %v597, %v594
        %v679 = vpack.c.b16 %v601, %v598
        %v680 = vpack.c.b16 %v602, %v599
        %v681 = vpack.c.b16 %v603, %v600
        %v682 = vpack.c.b16 %v607, %v604
        %v683 = vpack.c.b16 %v608, %v605
        %v684 = vpack.c.b16 %v609, %v606
        %v685 = vpack.c.b16 %v613, %v610
        %v686 = vpack.c.b16 %v614, %v611
        %v687 = vpack.c.b16 %v615, %v612
        %v688 = vpack.c.b16 %v619, %v616
        %v689 = vpack.c.b16 %v620, %v617
        %v690 = vpack.c.b16 %v621, %v618
        %v691 = vpack.c.b16 %v625, %v622
        %v692 = vpack.c.b16 %v626, %v623
        %v693 = vpack.c.b16 %v627, %v624
        %v694 = vpack.c.b16 %v631, %v628
        %v695 = vpack.c.b16 %v632, %v629
        %v696 = vpack.c.b16 %v633, %v630
        %v697 = vpack.c.b16 %v637, %v634
        %v698 = vpack.c.b16 %v638, %v635
        %v699 = vpack.c.b16 %v639, %v636
        %v700 = vpack.c.b16 %v643, %v640
        %v701 = vpack.c.b16 %v644, %v641
        %v702 = vpack.c.b16 %v645, %v642
        %v703 = vpack.c.b16 %v649, %v646
        %v704 = vpack.c.b16 %v650, %v647
        %v705 = vpack.c.b16 %v651, %v648
        %v706 = vpack.c.b16 %v655, %v652
        %v707 = vpack.c.b16 %v656, %v653
        %v708 = vpack.c.b16 %v657, %v654
        %v709 = vpack.c.b16 %v661, %v658
        %v710 = vpack.c.b16 %v662, %v659
        %v711 = vpack.c.b16 %v663, %v660
        %760 = vmatprep.subr.bf16.mxu0 %v686
        %761 = vmatpush1.bf16.msra.mxu0 %v685
        %762 = vmatprep.subr.bf16.mxu0 %v683
        %763 = vmatpush1.bf16.msra.mxu0 %v682
        %764 = vmatprep.subr.bf16.mxu0 %v680
        %765 = vmatpush1.bf16.msra.mxu0 %v679
        %766 = vmatprep.subr.bf16.mxu0 %v677
        %767 = vmatpush1.bf16.msra.mxu0 %v676
        %768 = vmatprep.subr.bf16.mxu0 %v674
        %769 = vmatpush1.bf16.msra.mxu0 %v673
        %770 = vmatprep.subr.bf16.mxu0 %v671
        %771 = vmatpush1.bf16.msra.mxu0 %v670
        %772 = vmatprep.subr.bf16.mxu0 %v668
        %773 = vmatpush1.bf16.msra.mxu0 %v667
        %774 = vmatprep.subr.bf16.mxu0 %v665
        %775 = vmatpush1.bf16.msra.mxu0 %v664
        %776 = vmatprep.subr.bf16.mxu0 %v710
        %777 = vmatpush2.bf16.msra.mxu0 %v709
        %778 = vmatprep.subr.bf16.mxu0 %v707
        %779 = vmatpush2.bf16.msra.mxu0 %v706
        %780 = vmatprep.subr.bf16.mxu0 %v704
        %781 = vmatpush2.bf16.msra.mxu0 %v703
        %782 = vmatprep.subr.bf16.mxu0 %v701
        %783 = vmatpush2.bf16.msra.mxu0 %v700
        %784 = vmatprep.subr.bf16.mxu0 %v698
        %785 = vmatpush2.bf16.msra.mxu0 %v697
        %786 = vmatprep.subr.bf16.mxu0 %v695
        %787 = vmatpush2.bf16.msra.mxu0 %v694
        %788 = vmatprep.subr.bf16.mxu0 %v692
        %789 = vmatpush2.bf16.msra.mxu0 %v691
        %790 = vmatprep.subr.bf16.mxu0 %v689
        %791 = vmatpush2.bf16.msra.mxu0 %v688
        %792 = vmatprep.mubr.bf16.mxu0 %v501
        %793 = vmatmul.mubr.bf16.gmra.mxu0 %v500
        %v794 = vpop.f32.mrf.mxu0
        %v795 = vadd.f32 0.0, %v794
        %v796 = vpop.f32.mrf.mxu0
        %v797 = vadd.f32 0.0, %v796
        %v798 = vpop.f32.mrf.mxu0
        %v799 = vadd.f32 0.0, %v798
        %v800 = vpop.f32.mrf.mxu0
        %v801 = vadd.f32 0.0, %v800
        %802 = vdwg.mxu0
        %803 = vmatprep.subr.bf16.mxu0 0
        %804 = vmatpush1.bf16.msra.mxu0 %v687
        %805 = vmatprep.subr.bf16.mxu0 0
        %806 = vmatpush1.bf16.msra.mxu0 %v684
        %807 = vmatprep.subr.bf16.mxu0 0
        %808 = vmatpush1.bf16.msra.mxu0 %v681
        %809 = vmatprep.subr.bf16.mxu0 0
        %810 = vmatpush1.bf16.msra.mxu0 %v678
        %811 = vmatprep.subr.bf16.mxu0 0
        %812 = vmatpush1.bf16.msra.mxu0 %v675
        %813 = vmatprep.subr.bf16.mxu0 0
        %814 = vmatpush1.bf16.msra.mxu0 %v672
        %815 = vmatprep.subr.bf16.mxu0 0
        %816 = vmatpush1.bf16.msra.mxu0 %v669
        %817 = vmatprep.subr.bf16.mxu0 0
        %818 = vmatpush1.bf16.msra.mxu0 %v666
        %819 = vmatprep.subr.bf16.mxu0 0
        %820 = vmatpush2.bf16.msra.mxu0 %v711
        %821 = vmatprep.subr.bf16.mxu0 0
        %822 = vmatpush2.bf16.msra.mxu0 %v708
        %823 = vmatprep.subr.bf16.mxu0 0
        %824 = vmatpush2.bf16.msra.mxu0 %v705
        %825 = vmatprep.subr.bf16.mxu0 0
        %826 = vmatpush2.bf16.msra.mxu0 %v702
        %827 = vmatprep.subr.bf16.mxu0 0
        %828 = vmatpush2.bf16.msra.mxu0 %v699
        %829 = vmatprep.subr.bf16.mxu0 0
        %830 = vmatpush2.bf16.msra.mxu0 %v696
        %831 = vmatprep.subr.bf16.mxu0 0
        %832 = vmatpush2.bf16.msra.mxu0 %v693
        %833 = vmatprep.subr.bf16.mxu0 0
        %834 = vmatpush2.bf16.msra.mxu0 %v690
        %835 = vmatprep.mubr.bf16.mxu0 %v501
        %836 = vmatmul.mubr.bf16.gmra.mxu0 %v500
        %v837 = vpop.f32.mrf.mxu0
        %v838 = vadd.f32 0.0, %v837
        %v839 = vpop.f32.mrf.mxu0
        %v840 = vpop.f32.mrf.mxu0
        %v841 = vadd.f32 0.0, %v840
        %v842 = vpop.f32.mrf.mxu0
        %843 = vdwg.mxu0
        %v844 = vadd.f32 %v422, %v795
        %v845 = vadd.f32 %v423, %v797
        %v846 = vadd.f32 %v424, %v838
        %v847 = vadd.f32 %v425, %v799
        %v848 = vadd.f32 %v426, %v801
        %v849 = vadd.f32 %v427, %v841
        %850 = vst [vmem:[#allocation2] sm:$0xff] %v844
        %851 = vst [vmem:[#allocation2 + $0x8] sm:$0xff] %v845
        %852 = vst [vmem:[#allocation2 + $0x10] sm:$0xff] %v846
        %853 = vst [vmem:[#allocation2 + $0x18] sm:$0xff] %v847
        %854 = vst [vmem:[#allocation2 + $0x20] sm:$0xff] %v848
        %855 = vst [vmem:[#allocation2 + $0x28] sm:$0xff] %v849
        // Predicated region
        $region63: #{mybert_forward.19} parent=53 // pred_check
          %p856 = pneg %p412
        $region64: #{mybert_forward.19} parent=53 // pred_check_branch
          %858 = sbr.rel (%p856) target = $region66
        $region65: #{mybert_forward.19} parent=53 // pred_region
          %v859 = vld [vmem:[#allocation2] sm:$0xff]
          %v860 = vld [vmem:[#allocation2 + $0x8] sm:$0xff]
          %v861 = vld [vmem:[#allocation2 + $0x10] sm:$0xff]
          %v862 = vld [vmem:[#allocation2 + $0x18] sm:$0xff]
          %v863 = vld [vmem:[#allocation2 + $0x20] sm:$0xff]
          %v864 = vld [vmem:[#allocation2 + $0x28] sm:$0xff]
          %v865 = vld [vmem:[%s407] sm:$0x7]
          %v866 = vunpack.c.l.bf16 %v865
          %v868 = vlaneseq
          %v869 = vshrl.u32 %v868, 7
          %v870 = vsub.s32 0, %v869
          %v871 = vrot.slane %v866, %v870
          %v872 = vlaneseq
          %v873 = vshrl.u32 %v872, 7
          %v874 = vsub.s32 2, %v873
          %v875 = vrot.slane %v866, %v874
          %v876 = vlaneseq
          %v877 = vshrl.u32 %v876, 7
          %v878 = vsub.s32 4, %v877
          %v879 = vrot.slane %v866, %v878
          %v883 = vlaneseq
          %v884 = vshrl.u32 %v883, 7
          %v885 = vsub.s32 0, %v884
          %v886 = vrot.slane %v871, %v885
          %v887 = vlaneseq
          %v888 = vshrl.u32 %v887, 7
          %v889 = vsub.s32 0, %v888
          %v890 = vrot.slane %v875, %v889
          %v891 = vlaneseq
          %v892 = vshrl.u32 %v891, 7
          %v893 = vsub.s32 0, %v892
          %v894 = vrot.slane %v879, %v893
          %v895 = vadd.f32 %v859, %v886
          %v896 = vadd.f32 %v860, %v890
          %v897 = vadd.f32 %v861, %v894
          %v898 = vadd.f32 %v862, %v886
          %v899 = vadd.f32 %v863, %v890
          %v900 = vadd.f32 %v864, %v894
          %v901 = vpack.c.bf16 %v898, %v895
          %v902 = vpack.c.bf16 %v899, %v896
          %v903 = vpack.c.bf16 %v900, %v897
          %v907 = vunpack.c.l.b16 %v901
          %v908 = vunpack.c.l.b16 %v902
          %v909 = vunpack.c.l.b16 %v903
          %v910 = vunpack.c.h.b16 %v901
          %v911 = vunpack.c.h.b16 %v902
          %v912 = vunpack.c.h.b16 %v903
          %v913 = vpack.c.b16 %v908, %v907
          %v914 = vpack.c.b16 %v909, %v909
          %v915 = vpack.c.b16 %v911, %v910
          %v916 = vpack.c.b16 %v912, %v912
          %921 = vst [vmem:[%s389] sm:$0xff] %v913
          %922 = vst [vmem:[%s389 + $0x8] sm:$0xf] %v914
          %923 = vst [vmem:[%s389 + $0xc] sm:$0xff] %v915
          %924 = vst [vmem:[%s389 + $0x14] sm:$0xf] %v916
        $region66: #{mybert_forward.19} parent=53 // pred_fallthru
          _
        %s925 = sand.u32 %s125, 1
        %s926 = sand.u32 %s125, 1
        %s927 = smul.addr %s926, 24
        %s928 = scalar_lea.vmem [#allocation4], %s927
        // Predicated region
        $region67: #{mybert_forward.19} parent=53 // pred_check
          %p929 = pneg %p135
        $region68: #{mybert_forward.19} parent=53 // pred_check_branch
          %931 = sbr.rel (%p929) target = $region70
        $region69: #{mybert_forward.19} parent=53 // pred_region
          %s932 = smul.u32 2, %s19
          %s933 = smul.u32 3, %s20
          %s934 = smul.addr %s932, 6
          %s935 = sadd.s32 %s933, %s934
          %s936 = smul.addr %s935, 4
          %s937 = scalar_lea.vmem %s3, %s936
          // Predicated region
          $region71: #{mybert_forward.19} parent=69 // pred_check
            _
          $region72: #{mybert_forward.19} parent=69 // pred_check_branch
            %939 = sbr.rel (0) target = $region74
          $region73: #{mybert_forward.19} parent=69 // pred_region
            // Predicated region
            $region75: #{mybert_forward.19} parent=73 // pred_check
              _
            $region76: #{mybert_forward.19} parent=73 // pred_check_branch
              %941 = sbr.rel (0) target = $region78
            $region77: #{mybert_forward.19} parent=73 // pred_region
              %s942 = scalar_lea.vmem %s928, 8 [#allocation4]
              %s943 = scalar_lea.vmem %s937, 8
              loop: start=0, step=1, limit=1
              $region79: #{mybert_forward.19} parent=77 // loop_pre_header
                _
              $region80: #{mybert_forward.19} parent=77 // loop_header
                %s945 = sphi 0, %s949
                %p946 = scmp.ge.s32.totalorder %s945, 1
                %s950 = sphi %s928, %s928
                %s951 = sphi %s937, %s937
              $region81: #{mybert_forward.19} parent=77 // loop_header_branch
                %948 = sbr.rel (%p946) target = $region85
              $region82: #{mybert_forward.19} parent=77 // loop_body
                %v952 = vld [vmem:[%s950] sm:$0xff]
                %953 = vst [vmem:[%s951] sm:$0xff] %v952
                %v954 = vld [vmem:[%s950 + $0xc] sm:$0xff]
                %955 = vst [vmem:[%s951 + $0x18] sm:$0xff] %v954
              $region83: #{mybert_forward.19} parent=77 // loop_footer
                %s949 = sadd.s32 1, %s945
              $region84: #{mybert_forward.19} parent=77 // loop_footer_branch
                %944 = sbr.rel target = $region80
              $region85: #{mybert_forward.19} parent=77 // loop_exit
                _
              %s957 = ssub.s32 16, 1
              loop: start=0, step=1, limit=1
              $region86: #{mybert_forward.19} parent=77 // loop_pre_header
                _
              $region87: #{mybert_forward.19} parent=77 // loop_header
                %s959 = sphi 0, %s963
                %p960 = scmp.ge.s32.totalorder %s959, 1
                %s964 = sphi %s942, %s942
                %s965 = sphi %s943, %s943
              $region88: #{mybert_forward.19} parent=77 // loop_header_branch
                %962 = sbr.rel (%p960) target = $region92
              $region89: #{mybert_forward.19} parent=77 // loop_body
                %v966 = vld [vmem:[%s964] sm:%s957]
                %967 = vst [vmem:[%s965] sm:%s957] %v966
                %v968 = vld [vmem:[%s964 + $0xc] sm:%s957]
                %969 = vst [vmem:[%s965 + $0x18] sm:%s957] %v968
              $region90: #{mybert_forward.19} parent=77 // loop_footer
                %s963 = sadd.s32 1, %s959
              $region91: #{mybert_forward.19} parent=77 // loop_footer_branch
                %958 = sbr.rel target = $region87
              $region92: #{mybert_forward.19} parent=77 // loop_exit
                _
            $region78: #{mybert_forward.19} parent=73 // pred_fallthru
              _
          $region74: #{mybert_forward.19} parent=69 // pred_fallthru
            _
          %970 = vnop
        $region70: #{mybert_forward.19} parent=53 // pred_fallthru
          _
      $region54: #{mybert_forward.19} parent=5 // pred_fallthru
        _
      %p971 = scmp.le.s32.totalorder 2, %s9
      // Predicated region
      $region93: #{mybert_forward.19} parent=5 // pred_check
        %p972 = pneg %p971
      $region94: #{mybert_forward.19} parent=5 // pred_check_branch
        %974 = sbr.rel (%p972) target = $region96
      $region95: #{mybert_forward.19} parent=5 // pred_region
        %s975 = ssub.s32 %s9, 2
        // Predicated region
        $region97: #{mybert_forward.19} parent=95 // pred_check
          %p976 = pneg %p141
        $region98: #{mybert_forward.19} parent=95 // pred_check_branch
          %978 = sbr.rel (%p976) target = $region100
        $region99: #{mybert_forward.19} parent=95 // pred_region
          %s979 = sand.u32 %s126, 1
          %s980 = sand.u32 %s126, 1
          %s981 = smul.addr %s980, 24
          %s982 = scalar_lea.vmem [#allocation4], %s981
        $region100: #{mybert_forward.19} parent=95 // pred_fallthru
          _
      $region96: #{mybert_forward.19} parent=5 // pred_fallthru
        _
    $region6: #{mybert_forward.19} parent=1 // loop_footer
      %s13 = sadd.s32 1, %s9
    $region7: #{mybert_forward.19} parent=1 // loop_footer_branch
      %8 = sbr.rel target = $region3
    $region8: #{mybert_forward.19} parent=1 // loop_exit
      _

</llo_original>
